<compile_context>
chip_gen: v7x
topology: tpu7x:2x2x1
jax: 0.10.0
libtpu: 0.0.40
codegen_flags: <defaults>
</compile_context>

<pallas_src>
import jax
import jax.numpy as jnp
from jax.experimental import pallas as pl
from jax.experimental.pallas import tpu as pltpu

F_DIM = 512 + 64   # encoder feature (512) + graph-attention global feature (64)
H_DIM = 256        # attention_gate_share hidden size


def fine_lstm_kernel(
    coarse_ref,        # (L, 3)        coarse_landmarks (initial predict)
    feat_ref,          # (T, L, Fp)    per-iteration features (zero-padded lanes)
    w_share_ref,       # (Fp, H)       attention_gate_share Linear weight (in->out)
    b_share_ref,       # (2L, H)       bias pre-broadcast to both gate paths
    w_head2_ref,       # (2L, H)       attention_gate_head weight, tiled x2
    b_head2_ref,       # (2L, 1)
    w_dec_ref,         # (L, 3, Fp)    stacked x/y/z decoder weights
    b_dec_ref,         # (L, 3)        stacked x/y/z decoder biases
    sinv_ref,          # (1, 3)        size_tensor_inv
    out_ref,           # (T, L, 3)     predicts
):
    T = feat_ref.shape[0]
    L = coarse_ref.shape[0]

    # ---- loop-invariant loads, hoisted once ----
    coarse = coarse_ref[...]
    w_share = w_share_ref[...]
    b_share = b_share_ref[...]
    w_head2 = w_head2_ref[...]
    b_head2 = b_head2_ref[...]
    w_dec = w_dec_ref[...]
    b_dec = b_dec_ref[...]
    sinv = sinv_ref[...]

    def decode(h, c):
        # grouped Conv1d (x, y, z) == per-landmark dot products, fused into one
        # multiply + one lane reduction -> (L, 3) offsets directly.
        d = jnp.sum(h[:, None, :] * w_dec, axis=-1) + b_dec        # (L, 3)
        return d * sinv + c

    # ---- iteration 0: h_state = features, c_state = ROIs = coarse ----
    h = feat_ref[0]                                                # (L, Fp)
    c = coarse
    pred = decode(h, c)
    out_ref[0] = pred

    # ---- iterations 1..T-1, fully unrolled (T is small & static) ----
    for t in range(1, T):
        feat = feat_ref[t]                                         # (L, Fp)
        rois = pred                                                # adjustment == identity

        # attention_gate_share on h-path and feature-path: one fused MXU matmul
        hf = jnp.concatenate([h, feat], axis=0)                    # (2L, Fp)
        s = jnp.tanh(
            jnp.dot(hf, w_share, preferred_element_type=jnp.float32) + b_share
        )                                                          # (2L, H)

        # attention_gate_head (grouped conv == row-wise dot): one fused reduce
        g = jnp.sum(s * w_head2, axis=-1, keepdims=True) + b_head2  # (2L, 1)

        # softmax over the two gate logits == sigmoid of their difference
        gate0 = 1.0 / (1.0 + jnp.exp(g[L:] - g[:L]))               # weight on h / c_state
        gate1 = 1.0 - gate0                                        # weight on feat / ROIs

        h = h * gate0 + feat * gate1
        c = c * gate0 + rois * gate1
        pred = decode(h, c)
        out_ref[t] = pred


def fine_lstm_forward(coarse, features, w_share, b_share, w_head, b_head,
                      w_dx, b_dx, w_dy, b_dy, w_dz, b_dz, size_inv):
    T, L, F = features.shape
    H = w_share.shape[1]

    # zero-pad the feature dim to a multiple of 128 lanes (576 -> 640)
    F_pad = ((F + 127) // 128) * 128
    p = F_pad - F
    if p:
        features = jnp.pad(features, ((0, 0), (0, 0), (0, p)))
        w_share = jnp.pad(w_share, ((0, p), (0, 0)))
        w_dx = jnp.pad(w_dx, ((0, 0), (0, p)))
        w_dy = jnp.pad(w_dy, ((0, 0), (0, p)))
        w_dz = jnp.pad(w_dz, ((0, 0), (0, p)))

    # layout plumbing (wrapper-side packing, no extra in-kernel work):
    w_dec = jnp.stack([w_dx, w_dy, w_dz], axis=1)        # (L, 3, F_pad)
    b_dec = jnp.concatenate([b_dx, b_dy, b_dz], axis=1)  # (L, 3)
    w_head2 = jnp.concatenate([w_head, w_head], axis=0)  # (2L, H)
    b_head2 = jnp.concatenate([b_head, b_head], axis=0)  # (2L, 1)
    b_share2 = jnp.broadcast_to(b_share, (2 * L, H))     # (2L, H)

    vmem = pl.BlockSpec(memory_space=pltpu.MemorySpace.VMEM)
    return pl.pallas_call(
        fine_lstm_kernel,
        out_shape=jax.ShapeDtypeStruct((T, L, 3), jnp.float32),
        in_specs=[vmem] * 9,
        out_specs=vmem,
    )(coarse, features, w_share, b_share2, w_head2, b_head2, w_dec, b_dec,
      size_inv)


def fine_lstm_reference(coarse, features, w_share, b_share, w_head, b_head,
                        w_dx, b_dx, w_dy, b_dy, w_dz, b_dz, size_inv):
    """Pure-JAX reference mirroring the torch forward (eval path)."""
    T = features.shape[0]
    pred = coarse
    h = None
    c = None
    outs = []
    for t in range(T):
        feat = features[t]
        if t == 0:
            h = feat
            c = coarse
        else:
            rois = pred
            sh = jnp.tanh(h @ w_share + b_share)
            sf = jnp.tanh(feat @ w_share + b_share)
            g_h = jnp.sum(sh * w_head, axis=-1, keepdims=True) + b_head
            g_a = jnp.sum(sf * w_head, axis=-1, keepdims=True) + b_head
            g = jax.nn.softmax(jnp.concatenate([g_h, g_a], axis=-1), axis=-1)
            g0, g1 = g[:, 0:1], g[:, 1:2]
            h = h * g0 + feat * g1
            c = c * g0 + rois * g1
        x = jnp.sum(h * w_dx, axis=-1, keepdims=True) + b_dx
        y = jnp.sum(h * w_dy, axis=-1, keepdims=True) + b_dy
        z = jnp.sum(h * w_dz, axis=-1, keepdims=True) + b_dz
        pred = jnp.concatenate([x, y, z], axis=-1) * size_inv + c
        outs.append(pred)
    return jnp.stack(outs, axis=0)


if __name__ == "__main__":
    L = 8    # landmarkNum
    T = 4    # iteration
    f32 = jnp.float32

    key = jax.random.PRNGKey(0)
    ks = jax.random.split(key, 14)
    coarse = jax.random.uniform(ks[0], (L, 3), f32)                   # coarse_landmarks
    features = 0.1 * jax.random.normal(ks[1], (T, L, F_DIM), f32)     # encoder+graph stand-in
    w_share = 0.05 * jax.random.normal(ks[2], (F_DIM, H_DIM), f32)
    b_share = 0.05 * jax.random.normal(ks[3], (1, H_DIM), f32)
    w_head = 0.05 * jax.random.normal(ks[4], (L, H_DIM), f32)
    b_head = 0.05 * jax.random.normal(ks[5], (L, 1), f32)
    w_dx = 0.05 * jax.random.normal(ks[6], (L, F_DIM), f32)
    b_dx = 0.01 * jax.random.normal(ks[7], (L, 1), f32)
    w_dy = 0.05 * jax.random.normal(ks[8], (L, F_DIM), f32)
    b_dy = 0.01 * jax.random.normal(ks[9], (L, 1), f32)
    w_dz = 0.05 * jax.random.normal(ks[10], (L, F_DIM), f32)
    b_dz = 0.01 * jax.random.normal(ks[11], (L, 1), f32)
    # size_tensor = [1/255, 1/255, 1/7]  ->  size_tensor_inv = [255, 255, 7]
    size_inv = jnp.array([[255.0, 255.0, 7.0]], dtype=f32)

    args = (coarse, features, w_share, b_share, w_head, b_head,
            w_dx, b_dx, w_dy, b_dy, w_dz, b_dz, size_inv)

    out = fine_lstm_forward(*args)
    out = jax.block_until_ready(out)

    ref = fine_lstm_reference(*args)
    assert out.shape == (T, L, 3), out.shape
    max_err = float(jnp.max(jnp.abs(out - ref)))
    assert jnp.allclose(out, ref, rtol=5e-4, atol=5e-4), max_err

    print("KERNEL_OK")
</pallas_src>

<mosaic_0001>
module attributes {stable_mosaic.version = 11 : i64} {
  func.func @fine_lstm_kernel(%arg0: memref<8x3xf32, #tpu.memory_space<vmem>>, %arg1: memref<4x8x640xf32, #tpu.memory_space<vmem>>, %arg2: memref<640x256xf32, #tpu.memory_space<vmem>>, %arg3: memref<16x256xf32, #tpu.memory_space<vmem>>, %arg4: memref<16x256xf32, #tpu.memory_space<vmem>>, %arg5: memref<16x1xf32, #tpu.memory_space<vmem>>, %arg6: memref<8x3x640xf32, #tpu.memory_space<vmem>>, %arg7: memref<8x3xf32, #tpu.memory_space<vmem>>, %arg8: memref<1x3xf32, #tpu.memory_space<vmem>>, %arg9: memref<4x8x3xf32, #tpu.memory_space<vmem>>) attributes {dimension_semantics = [], scalar_prefetch = 0 : i64, scratch_operands = 0 : i64, tpu.core_type = #tpu.core_type<tc>} {
    %c0 = arith.constant 0 : index
    %c0_0 = arith.constant 0 : index
    %0 = vector.load %arg0[%c0, %c0_0] : memref<8x3xf32, #tpu.memory_space<vmem>>, vector<8x3xf32>
    %c0_1 = arith.constant 0 : index
    %c0_2 = arith.constant 0 : index
    %1 = vector.load %arg2[%c0_1, %c0_2] : memref<640x256xf32, #tpu.memory_space<vmem>>, vector<640x256xf32>
    %c0_3 = arith.constant 0 : index
    %c0_4 = arith.constant 0 : index
    %2 = vector.load %arg3[%c0_3, %c0_4] : memref<16x256xf32, #tpu.memory_space<vmem>>, vector<16x256xf32>
    %c0_5 = arith.constant 0 : index
    %c0_6 = arith.constant 0 : index
    %3 = vector.load %arg4[%c0_5, %c0_6] : memref<16x256xf32, #tpu.memory_space<vmem>>, vector<16x256xf32>
    %c0_7 = arith.constant 0 : index
    %c0_8 = arith.constant 0 : index
    %4 = vector.load %arg5[%c0_7, %c0_8] : memref<16x1xf32, #tpu.memory_space<vmem>>, vector<16x1xf32>
    %c0_9 = arith.constant 0 : index
    %c0_10 = arith.constant 0 : index
    %c0_11 = arith.constant 0 : index
    %5 = vector.load %arg6[%c0_9, %c0_10, %c0_11] : memref<8x3x640xf32, #tpu.memory_space<vmem>>, vector<8x3x640xf32>
    %c0_12 = arith.constant 0 : index
    %c0_13 = arith.constant 0 : index
    %6 = vector.load %arg7[%c0_12, %c0_13] : memref<8x3xf32, #tpu.memory_space<vmem>>, vector<8x3xf32>
    %c0_14 = arith.constant 0 : index
    %c0_15 = arith.constant 0 : index
    %7 = vector.load %arg8[%c0_14, %c0_15] : memref<1x3xf32, #tpu.memory_space<vmem>>, vector<1x3xf32>
    %c0_16 = arith.constant 0 : index
    %c0_17 = arith.constant 0 : index
    %c0_18 = arith.constant 0 : index
    %8 = vector.load %arg1[%c0_16, %c0_17, %c0_18] : memref<4x8x640xf32, #tpu.memory_space<vmem>>, vector<1x8x640xf32>
    %9 = vector.shape_cast %8 : vector<1x8x640xf32> to vector<8x640xf32>
    %10 = vector.shape_cast %9 : vector<8x640xf32> to vector<8x1x640xf32>
    %11 = vector.broadcast %10 : vector<8x1x640xf32> to vector<8x3x640xf32>
    %12 = arith.mulf %11, %5 : vector<8x3x640xf32>
    %cst = arith.constant dense<0.000000e+00> : vector<8x3xf32>
    %13 = vector.multi_reduction <add>, %12, %cst [2] : vector<8x3x640xf32> to vector<8x3xf32>
    %14 = arith.addf %13, %6 : vector<8x3xf32>
    %15 = vector.broadcast %7 : vector<1x3xf32> to vector<8x3xf32>
    %16 = arith.mulf %14, %15 : vector<8x3xf32>
    %17 = arith.addf %16, %0 : vector<8x3xf32>
    %c0_19 = arith.constant 0 : index
    %c0_20 = arith.constant 0 : index
    %c0_21 = arith.constant 0 : index
    %18 = vector.load %arg9[%c0_19, %c0_20, %c0_21] : memref<4x8x3xf32, #tpu.memory_space<vmem>>, vector<1x8x3xf32>
    %19 = vector.shape_cast %18 : vector<1x8x3xf32> to vector<8x3xf32>
    %20 = vector.shape_cast %17 : vector<8x3xf32> to vector<1x8x3xf32>
    tpu.vector_store %arg9[%c0_19, %c0_20, %c0_21], %20 {strides = array<i32>} : memref<4x8x3xf32, #tpu.memory_space<vmem>>, vector<1x8x3xf32>,
    %c1 = arith.constant 1 : index
    %c0_22 = arith.constant 0 : index
    %c0_23 = arith.constant 0 : index
    %21 = vector.load %arg1[%c1, %c0_22, %c0_23] : memref<4x8x640xf32, #tpu.memory_space<vmem>>, vector<1x8x640xf32>
    %22 = vector.shape_cast %21 : vector<1x8x640xf32> to vector<8x640xf32>
    %23 = tpu.concatenate %9, %22 in 0 : vector<8x640xf32>, vector<8x640xf32> -> vector<16x640xf32>
    %cst_24 = arith.constant dense<0.000000e+00> : vector<16x256xf32>
    %24 = tpu.matmul %23, %1, %cst_24 {dimension_numbers = #tpu.dot_dimension_numbers<[1], [0], [0], [1], [0, 0, 1, 1], [], []>} : vector<16x640xf32>, vector<640x256xf32>, vector<16x256xf32> -> vector<16x256xf32>
    %25 = arith.addf %24, %2 : vector<16x256xf32>
    %26 = math.tanh %25 : vector<16x256xf32>
    %27 = arith.mulf %26, %3 : vector<16x256xf32>
    %cst_25 = arith.constant dense<0.000000e+00> : vector<16xf32>
    %28 = vector.multi_reduction <add>, %27, %cst_25 [1] : vector<16x256xf32> to vector<16xf32>
    %29 = vector.shape_cast %28 : vector<16xf32> to vector<16x1xf32>
    %30 = arith.addf %29, %4 : vector<16x1xf32>
    %31 = vector.extract_strided_slice %30 {offsets = [8, 0], sizes = [8, 1], strides = [1, 1]} : vector<16x1xf32> to vector<8x1xf32>
    %32 = vector.extract_strided_slice %30 {offsets = [0, 0], sizes = [8, 1], strides = [1, 1]} : vector<16x1xf32> to vector<8x1xf32>
    %33 = arith.subf %31, %32 : vector<8x1xf32>
    %34 = math.exp %33 : vector<8x1xf32>
    %cst_26 = arith.constant 1.000000e+00 : f32
    %35 = vector.broadcast %cst_26 : f32 to vector<8x1xf32>
    %36 = arith.addf %35, %34 : vector<8x1xf32>
    %cst_27 = arith.constant 1.000000e+00 : f32
    %37 = vector.broadcast %cst_27 : f32 to vector<8x1xf32>
    %38 = arith.divf %37, %36 : vector<8x1xf32>
    %cst_28 = arith.constant 1.000000e+00 : f32
    %39 = vector.broadcast %cst_28 : f32 to vector<8x1xf32>
    %40 = arith.subf %39, %38 : vector<8x1xf32>
    %41 = vector.broadcast %38 : vector<8x1xf32> to vector<8x640xf32>
    %42 = arith.mulf %9, %41 : vector<8x640xf32>
    %43 = vector.broadcast %40 : vector<8x1xf32> to vector<8x640xf32>
    %44 = arith.mulf %22, %43 : vector<8x640xf32>
    %45 = arith.addf %42, %44 : vector<8x640xf32>
    %46 = vector.broadcast %38 : vector<8x1xf32> to vector<8x3xf32>
    %47 = arith.mulf %0, %46 : vector<8x3xf32>
    %48 = vector.broadcast %40 : vector<8x1xf32> to vector<8x3xf32>
    %49 = arith.mulf %17, %48 : vector<8x3xf32>
    %50 = arith.addf %47, %49 : vector<8x3xf32>
    %51 = vector.shape_cast %45 : vector<8x640xf32> to vector<8x1x640xf32>
    %52 = vector.broadcast %51 : vector<8x1x640xf32> to vector<8x3x640xf32>
    %53 = arith.mulf %52, %5 : vector<8x3x640xf32>
    %cst_29 = arith.constant dense<0.000000e+00> : vector<8x3xf32>
    %54 = vector.multi_reduction <add>, %53, %cst_29 [2] : vector<8x3x640xf32> to vector<8x3xf32>
    %55 = arith.addf %54, %6 : vector<8x3xf32>
    %56 = vector.broadcast %7 : vector<1x3xf32> to vector<8x3xf32>
    %57 = arith.mulf %55, %56 : vector<8x3xf32>
    %58 = arith.addf %57, %50 : vector<8x3xf32>
    %c1_30 = arith.constant 1 : index
    %c0_31 = arith.constant 0 : index
    %c0_32 = arith.constant 0 : index
    %59 = vector.load %arg9[%c1_30, %c0_31, %c0_32] : memref<4x8x3xf32, #tpu.memory_space<vmem>>, vector<1x8x3xf32>
    %60 = vector.shape_cast %59 : vector<1x8x3xf32> to vector<8x3xf32>
    %61 = vector.shape_cast %58 : vector<8x3xf32> to vector<1x8x3xf32>
    tpu.vector_store %arg9[%c1_30, %c0_31, %c0_32], %61 {strides = array<i32>} : memref<4x8x3xf32, #tpu.memory_space<vmem>>, vector<1x8x3xf32>,
    %c2 = arith.constant 2 : index
    %c0_33 = arith.constant 0 : index
    %c0_34 = arith.constant 0 : index
    %62 = vector.load %arg1[%c2, %c0_33, %c0_34] : memref<4x8x640xf32, #tpu.memory_space<vmem>>, vector<1x8x640xf32>
    %63 = vector.shape_cast %62 : vector<1x8x640xf32> to vector<8x640xf32>
    %64 = tpu.concatenate %45, %63 in 0 : vector<8x640xf32>, vector<8x640xf32> -> vector<16x640xf32>
    %cst_35 = arith.constant dense<0.000000e+00> : vector<16x256xf32>
    %65 = tpu.matmul %64, %1, %cst_35 {dimension_numbers = #tpu.dot_dimension_numbers<[1], [0], [0], [1], [0, 0, 1, 1], [], []>} : vector<16x640xf32>, vector<640x256xf32>, vector<16x256xf32> -> vector<16x256xf32>
    %66 = arith.addf %65, %2 : vector<16x256xf32>
    %67 = math.tanh %66 : vector<16x256xf32>
    %68 = arith.mulf %67, %3 : vector<16x256xf32>
    %cst_36 = arith.constant dense<0.000000e+00> : vector<16xf32>
    %69 = vector.multi_reduction <add>, %68, %cst_36 [1] : vector<16x256xf32> to vector<16xf32>
    %70 = vector.shape_cast %69 : vector<16xf32> to vector<16x1xf32>
    %71 = arith.addf %70, %4 : vector<16x1xf32>
    %72 = vector.extract_strided_slice %71 {offsets = [8, 0], sizes = [8, 1], strides = [1, 1]} : vector<16x1xf32> to vector<8x1xf32>
    %73 = vector.extract_strided_slice %71 {offsets = [0, 0], sizes = [8, 1], strides = [1, 1]} : vector<16x1xf32> to vector<8x1xf32>
    %74 = arith.subf %72, %73 : vector<8x1xf32>
    %75 = math.exp %74 : vector<8x1xf32>
    %cst_37 = arith.constant 1.000000e+00 : f32
    %76 = vector.broadcast %cst_37 : f32 to vector<8x1xf32>
    %77 = arith.addf %76, %75 : vector<8x1xf32>
    %cst_38 = arith.constant 1.000000e+00 : f32
    %78 = vector.broadcast %cst_38 : f32 to vector<8x1xf32>
    %79 = arith.divf %78, %77 : vector<8x1xf32>
    %cst_39 = arith.constant 1.000000e+00 : f32
    %80 = vector.broadcast %cst_39 : f32 to vector<8x1xf32>
    %81 = arith.subf %80, %79 : vector<8x1xf32>
    %82 = vector.broadcast %79 : vector<8x1xf32> to vector<8x640xf32>
    %83 = arith.mulf %45, %82 : vector<8x640xf32>
    %84 = vector.broadcast %81 : vector<8x1xf32> to vector<8x640xf32>
    %85 = arith.mulf %63, %84 : vector<8x640xf32>
    %86 = arith.addf %83, %85 : vector<8x640xf32>
    %87 = vector.broadcast %79 : vector<8x1xf32> to vector<8x3xf32>
    %88 = arith.mulf %50, %87 : vector<8x3xf32>
    %89 = vector.broadcast %81 : vector<8x1xf32> to vector<8x3xf32>
    %90 = arith.mulf %58, %89 : vector<8x3xf32>
    %91 = arith.addf %88, %90 : vector<8x3xf32>
    %92 = vector.shape_cast %86 : vector<8x640xf32> to vector<8x1x640xf32>
    %93 = vector.broadcast %92 : vector<8x1x640xf32> to vector<8x3x640xf32>
    %94 = arith.mulf %93, %5 : vector<8x3x640xf32>
    %cst_40 = arith.constant dense<0.000000e+00> : vector<8x3xf32>
    %95 = vector.multi_reduction <add>, %94, %cst_40 [2] : vector<8x3x640xf32> to vector<8x3xf32>
    %96 = arith.addf %95, %6 : vector<8x3xf32>
    %97 = vector.broadcast %7 : vector<1x3xf32> to vector<8x3xf32>
    %98 = arith.mulf %96, %97 : vector<8x3xf32>
    %99 = arith.addf %98, %91 : vector<8x3xf32>
    %c2_41 = arith.constant 2 : index
    %c0_42 = arith.constant 0 : index
    %c0_43 = arith.constant 0 : index
    %100 = vector.load %arg9[%c2_41, %c0_42, %c0_43] : memref<4x8x3xf32, #tpu.memory_space<vmem>>, vector<1x8x3xf32>
    %101 = vector.shape_cast %100 : vector<1x8x3xf32> to vector<8x3xf32>
    %102 = vector.shape_cast %99 : vector<8x3xf32> to vector<1x8x3xf32>
    tpu.vector_store %arg9[%c2_41, %c0_42, %c0_43], %102 {strides = array<i32>} : memref<4x8x3xf32, #tpu.memory_space<vmem>>, vector<1x8x3xf32>,
    %c3 = arith.constant 3 : index
    %c0_44 = arith.constant 0 : index
    %c0_45 = arith.constant 0 : index
    %103 = vector.load %arg1[%c3, %c0_44, %c0_45] : memref<4x8x640xf32, #tpu.memory_space<vmem>>, vector<1x8x640xf32>
    %104 = vector.shape_cast %103 : vector<1x8x640xf32> to vector<8x640xf32>
    %105 = tpu.concatenate %86, %104 in 0 : vector<8x640xf32>, vector<8x640xf32> -> vector<16x640xf32>
    %cst_46 = arith.constant dense<0.000000e+00> : vector<16x256xf32>
    %106 = tpu.matmul %105, %1, %cst_46 {dimension_numbers = #tpu.dot_dimension_numbers<[1], [0], [0], [1], [0, 0, 1, 1], [], []>} : vector<16x640xf32>, vector<640x256xf32>, vector<16x256xf32> -> vector<16x256xf32>
    %107 = arith.addf %106, %2 : vector<16x256xf32>
    %108 = math.tanh %107 : vector<16x256xf32>
    %109 = arith.mulf %108, %3 : vector<16x256xf32>
    %cst_47 = arith.constant dense<0.000000e+00> : vector<16xf32>
    %110 = vector.multi_reduction <add>, %109, %cst_47 [1] : vector<16x256xf32> to vector<16xf32>
    %111 = vector.shape_cast %110 : vector<16xf32> to vector<16x1xf32>
    %112 = arith.addf %111, %4 : vector<16x1xf32>
    %113 = vector.extract_strided_slice %112 {offsets = [8, 0], sizes = [8, 1], strides = [1, 1]} : vector<16x1xf32> to vector<8x1xf32>
    %114 = vector.extract_strided_slice %112 {offsets = [0, 0], sizes = [8, 1], strides = [1, 1]} : vector<16x1xf32> to vector<8x1xf32>
    %115 = arith.subf %113, %114 : vector<8x1xf32>
    %116 = math.exp %115 : vector<8x1xf32>
    %cst_48 = arith.constant 1.000000e+00 : f32
    %117 = vector.broadcast %cst_48 : f32 to vector<8x1xf32>
    %118 = arith.addf %117, %116 : vector<8x1xf32>
    %cst_49 = arith.constant 1.000000e+00 : f32
    %119 = vector.broadcast %cst_49 : f32 to vector<8x1xf32>
    %120 = arith.divf %119, %118 : vector<8x1xf32>
    %cst_50 = arith.constant 1.000000e+00 : f32
    %121 = vector.broadcast %cst_50 : f32 to vector<8x1xf32>
    %122 = arith.subf %121, %120 : vector<8x1xf32>
    %123 = vector.broadcast %120 : vector<8x1xf32> to vector<8x640xf32>
    %124 = arith.mulf %86, %123 : vector<8x640xf32>
    %125 = vector.broadcast %122 : vector<8x1xf32> to vector<8x640xf32>
    %126 = arith.mulf %104, %125 : vector<8x640xf32>
    %127 = arith.addf %124, %126 : vector<8x640xf32>
    %128 = vector.broadcast %120 : vector<8x1xf32> to vector<8x3xf32>
    %129 = arith.mulf %91, %128 : vector<8x3xf32>
    %130 = vector.broadcast %122 : vector<8x1xf32> to vector<8x3xf32>
    %131 = arith.mulf %99, %130 : vector<8x3xf32>
    %132 = arith.addf %129, %131 : vector<8x3xf32>
    %133 = vector.shape_cast %127 : vector<8x640xf32> to vector<8x1x640xf32>
    %134 = vector.broadcast %133 : vector<8x1x640xf32> to vector<8x3x640xf32>
    %135 = arith.mulf %134, %5 : vector<8x3x640xf32>
    %cst_51 = arith.constant dense<0.000000e+00> : vector<8x3xf32>
    %136 = vector.multi_reduction <add>, %135, %cst_51 [2] : vector<8x3x640xf32> to vector<8x3xf32>
    %137 = arith.addf %136, %6 : vector<8x3xf32>
    %138 = vector.broadcast %7 : vector<1x3xf32> to vector<8x3xf32>
    %139 = arith.mulf %137, %138 : vector<8x3xf32>
    %140 = arith.addf %139, %132 : vector<8x3xf32>
    %c3_52 = arith.constant 3 : index
    %c0_53 = arith.constant 0 : index
    %c0_54 = arith.constant 0 : index
    %141 = vector.load %arg9[%c3_52, %c0_53, %c0_54] : memref<4x8x3xf32, #tpu.memory_space<vmem>>, vector<1x8x3xf32>
    %142 = vector.shape_cast %141 : vector<1x8x3xf32> to vector<8x3xf32>
    %143 = vector.shape_cast %140 : vector<8x3xf32> to vector<1x8x3xf32>
    tpu.vector_store %arg9[%c3_52, %c0_53, %c0_54], %143 {strides = array<i32>} : memref<4x8x3xf32, #tpu.memory_space<vmem>>, vector<1x8x3xf32>,
    return
  }
}

</mosaic_0001>

<llo_original>
// kernel: tpu_custom_call.1
$region0: #{tpu_custom_call.1}
  #allocation0 [shape = 'u32[]', space=smem, size = 0x4, offset = 0x4, fixed_abs, tag = 'smem constant byte address 0x4 - core index']
  #allocation1 [shape = 'u32[144,128]{1,0:T(1,128)}', space=vmem, size = 0x12000, scoped, tag = 'internal scratch']
  %s0 = inlined_call_operand.vmem [shape: f32[8,3], index: 0, kind: input, shape index: {}]
  %s1 = inlined_call_operand.vmem [shape: f32[4,8,640], index: 1, kind: input, shape index: {}]
  %s2 = inlined_call_operand.hbm [shape: f32[640,256], index: 2, kind: input, shape index: {}]
  %s3 = inlined_call_operand.vmem [shape: f32[16,256], index: 3, kind: input, shape index: {}]
  %s4 = inlined_call_operand.vmem [shape: f32[16,256], index: 4, kind: input, shape index: {}]
  %s5 = inlined_call_operand.vmem [shape: f32[16,1], index: 5, kind: input, shape index: {}]
  %s6 = inlined_call_operand.vmem [shape: f32[8,3,640], index: 6, kind: input, shape index: {}]
  %s7 = inlined_call_operand.vmem [shape: f32[8,3], index: 7, kind: input, shape index: {}]
  %s8 = inlined_call_operand.vmem [shape: f32[1,3], index: 8, kind: input, shape index: {}]
  %s9 = inlined_call_operand.vmem [shape: f32[4,8,3], index: 9, kind: output, shape index: {}]
  %s10 = sld [smem:[#allocation0]]
  $region50: #{tpu_custom_call.1} parent=0
    _
  %s12 = ssub.s32 1, %s10
  %s13 = scalar_select 0, %s12, %s10
  $region1: #{tpu_custom_call.1} parent=0
    #allocation2 [shape = 'u8[655360]{0}', space=vmem, size = 0xa0000, scoped, tag = 'input window, operand 2, single buffered']
    #allocation3 [shape = 's32[1]{0}', space=sflag, size = 0x4, scoped, tag = 'scoped memory for tpu_custom_call.1']
    %14 = vsyncpa [#allocation3], 0
    // Predicated region
    $region2: #{tpu_custom_call.1} parent=1 // pred_check
      _
    $region3: #{tpu_custom_call.1} parent=1 // pred_check_branch
      %16 = sbr.rel (0) target = $region5
    $region4: #{tpu_custom_call.1} parent=1 // pred_region
      _
    $region5: #{tpu_custom_call.1} parent=1 // pred_fallthru
      _
    // Predicated region
    $region6: #{tpu_custom_call.1} parent=1 // pred_check
      _
    $region7: #{tpu_custom_call.1} parent=1 // pred_check_branch
      %18 = sbr.rel (0) target = $region9
    $region8: #{tpu_custom_call.1} parent=1 // pred_region
      _
    $region9: #{tpu_custom_call.1} parent=1 // pred_fallthru
      _
    // Predicated region
    $region10: #{tpu_custom_call.1} parent=1 // pred_check
      _
    $region11: #{tpu_custom_call.1} parent=1 // pred_check_branch
      %20 = sbr.rel (0) target = $region13
    $region12: #{tpu_custom_call.1} parent=1 // pred_region
      %s22 = ssub.s32 20480, 20480
      %23 = vsyncadd [#allocation3], %s22
      %s24 = sshll.u32 [#allocation2], 4
      %s25 = int_to_ptr.vmem [resolvable:$true] %s24
      %30 = dma.hbm_to_vmem [thread:$0]  %s2, 20480, %s25, [#allocation3], 256, 256, 16
    $region13: #{tpu_custom_call.1} parent=1 // pred_fallthru
      _
    // Predicated region
    $region14: #{tpu_custom_call.1} parent=1 // pred_check
      _
    $region15: #{tpu_custom_call.1} parent=1 // pred_check_branch
      %32 = sbr.rel (0) target = $region17
    $region16: #{tpu_custom_call.1} parent=1 // pred_region
      _
    $region17: #{tpu_custom_call.1} parent=1 // pred_fallthru
      _
    // Predicated region
    $region18: #{tpu_custom_call.1} parent=1 // pred_check
      _
    $region19: #{tpu_custom_call.1} parent=1 // pred_check_branch
      %34 = sbr.rel (0) target = $region21
    $region20: #{tpu_custom_call.1} parent=1 // pred_region
      _
    $region21: #{tpu_custom_call.1} parent=1 // pred_fallthru
      _
    // Predicated region
    $region22: #{tpu_custom_call.1} parent=1 // pred_check
      _
    $region23: #{tpu_custom_call.1} parent=1 // pred_check_branch
      %36 = sbr.rel (0) target = $region25
    $region24: #{tpu_custom_call.1} parent=1 // pred_region
      _
    $region25: #{tpu_custom_call.1} parent=1 // pred_fallthru
      _
    // Predicated region
    $region26: #{tpu_custom_call.1} parent=1 // pred_check
      _
    $region27: #{tpu_custom_call.1} parent=1 // pred_check_branch
      %38 = sbr.rel (0) target = $region29
    $region28: #{tpu_custom_call.1} parent=1 // pred_region
      _
    $region29: #{tpu_custom_call.1} parent=1 // pred_fallthru
      _
    // Predicated region
    $region30: #{tpu_custom_call.1} parent=1 // pred_check
      _
    $region31: #{tpu_custom_call.1} parent=1 // pred_check_branch
      %40 = sbr.rel (0) target = $region33
    $region32: #{tpu_custom_call.1} parent=1 // pred_region
      _
    $region33: #{tpu_custom_call.1} parent=1 // pred_fallthru
      _
    // Predicated region
    $region34: #{tpu_custom_call.1} parent=1 // pred_check
      _
    $region35: #{tpu_custom_call.1} parent=1 // pred_check_branch
      %42 = sbr.rel (0) target = $region37
    $region36: #{tpu_custom_call.1} parent=1 // pred_region
      _
    $region37: #{tpu_custom_call.1} parent=1 // pred_fallthru
      _
    // Predicated region
    $region38: #{tpu_custom_call.1} parent=1 // pred_check
      _
    $region39: #{tpu_custom_call.1} parent=1 // pred_check_branch
      %44 = sbr.rel (0) target = $region41
    $region40: #{tpu_custom_call.1} parent=1 // pred_region
      %45 = dma.done [#allocation3], 20480
    $region41: #{tpu_custom_call.1} parent=1 // pred_fallthru
      _
    %v46 = vld [vmem:[%s0] sm:$0xff]
    %v47 = vld [vmem:[#allocation2] sm:$0xff]
    %v48 = vld [vmem:[#allocation2 + $0x8] sm:$0xff]
    %v49 = vld [vmem:[#allocation2 + $0x10] sm:$0xff]
    %v50 = vld [vmem:[#allocation2 + $0x18] sm:$0xff]
    %v51 = vld [vmem:[#allocation2 + $0x20] sm:$0xff]
    %v52 = vld [vmem:[#allocation2 + $0x28] sm:$0xff]
    %v53 = vld [vmem:[#allocation2 + $0x30] sm:$0xff]
    %v54 = vld [vmem:[#allocation2 + $0x38] sm:$0xff]
    %v55 = vld [vmem:[#allocation2 + $0x40] sm:$0xff]
    %v56 = vld [vmem:[#allocation2 + $0x48] sm:$0xff]
    %v57 = vld [vmem:[#allocation2 + $0x50] sm:$0xff]
    %v58 = vld [vmem:[#allocation2 + $0x58] sm:$0xff]
    %v59 = vld [vmem:[#allocation2 + $0x60] sm:$0xff]
    %v60 = vld [vmem:[#allocation2 + $0x68] sm:$0xff]
    %v61 = vld [vmem:[#allocation2 + $0x70] sm:$0xff]
    %v62 = vld [vmem:[#allocation2 + $0x78] sm:$0xff]
    %v63 = vld [vmem:[#allocation2 + $0x80] sm:$0xff]
    %v64 = vld [vmem:[#allocation2 + $0x88] sm:$0xff]
    %v65 = vld [vmem:[#allocation2 + $0x90] sm:$0xff]
    %v66 = vld [vmem:[#allocation2 + $0x98] sm:$0xff]
    %v67 = vld [vmem:[#allocation2 + $0xa0] sm:$0xff]
    %v68 = vld [vmem:[#allocation2 + $0xa8] sm:$0xff]
    %v69 = vld [vmem:[#allocation2 + $0xb0] sm:$0xff]
    %v70 = vld [vmem:[#allocation2 + $0xb8] sm:$0xff]
    %v71 = vld [vmem:[#allocation2 + $0xc0] sm:$0xff]
    %v72 = vld [vmem:[#allocation2 + $0xc8] sm:$0xff]
    %v73 = vld [vmem:[#allocation2 + $0xd0] sm:$0xff]
    %v74 = vld [vmem:[#allocation2 + $0xd8] sm:$0xff]
    %v75 = vld [vmem:[#allocation2 + $0xe0] sm:$0xff]
    %v76 = vld [vmem:[#allocation2 + $0xe8] sm:$0xff]
    %v77 = vld [vmem:[#allocation2 + $0xf0] sm:$0xff]
    %v78 = vld [vmem:[#allocation2 + $0xf8] sm:$0xff]
    %v79 = vld [vmem:[#allocation2 + $0x100] sm:$0xff]
    %v80 = vld [vmem:[#allocation2 + $0x108] sm:$0xff]
    %v81 = vld [vmem:[#allocation2 + $0x110] sm:$0xff]
    %v82 = vld [vmem:[#allocation2 + $0x118] sm:$0xff]
    %v83 = vld [vmem:[#allocation2 + $0x120] sm:$0xff]
    %v84 = vld [vmem:[#allocation2 + $0x128] sm:$0xff]
    %v85 = vld [vmem:[#allocation2 + $0x130] sm:$0xff]
    %v86 = vld [vmem:[#allocation2 + $0x138] sm:$0xff]
    %v87 = vld [vmem:[#allocation2 + $0x140] sm:$0xff]
    %v88 = vld [vmem:[#allocation2 + $0x148] sm:$0xff]
    %v89 = vld [vmem:[#allocation2 + $0x150] sm:$0xff]
    %v90 = vld [vmem:[#allocation2 + $0x158] sm:$0xff]
    %v91 = vld [vmem:[#allocation2 + $0x160] sm:$0xff]
    %v92 = vld [vmem:[#allocation2 + $0x168] sm:$0xff]
    %v93 = vld [vmem:[#allocation2 + $0x170] sm:$0xff]
    %v94 = vld [vmem:[#allocation2 + $0x178] sm:$0xff]
    %v95 = vld [vmem:[#allocation2 + $0x180] sm:$0xff]
    %v96 = vld [vmem:[#allocation2 + $0x188] sm:$0xff]
    %v97 = vld [vmem:[#allocation2 + $0x190] sm:$0xff]
    %v98 = vld [vmem:[#allocation2 + $0x198] sm:$0xff]
    %v99 = vld [vmem:[#allocation2 + $0x1a0] sm:$0xff]
    %v100 = vld [vmem:[#allocation2 + $0x1a8] sm:$0xff]
    %v101 = vld [vmem:[#allocation2 + $0x1b0] sm:$0xff]
    %v102 = vld [vmem:[#allocation2 + $0x1b8] sm:$0xff]
    %v103 = vld [vmem:[#allocation2 + $0x1c0] sm:$0xff]
    %v104 = vld [vmem:[#allocation2 + $0x1c8] sm:$0xff]
    %v105 = vld [vmem:[#allocation2 + $0x1d0] sm:$0xff]
    %v106 = vld [vmem:[#allocation2 + $0x1d8] sm:$0xff]
    %v107 = vld [vmem:[#allocation2 + $0x1e0] sm:$0xff]
    %v108 = vld [vmem:[#allocation2 + $0x1e8] sm:$0xff]
    %v109 = vld [vmem:[#allocation2 + $0x1f0] sm:$0xff]
    %v110 = vld [vmem:[#allocation2 + $0x1f8] sm:$0xff]
    %v111 = vld [vmem:[#allocation2 + $0x200] sm:$0xff]
    %v112 = vld [vmem:[#allocation2 + $0x208] sm:$0xff]
    %v113 = vld [vmem:[#allocation2 + $0x210] sm:$0xff]
    %v114 = vld [vmem:[#allocation2 + $0x218] sm:$0xff]
    %v115 = vld [vmem:[#allocation2 + $0x220] sm:$0xff]
    %v116 = vld [vmem:[#allocation2 + $0x228] sm:$0xff]
    %v117 = vld [vmem:[#allocation2 + $0x230] sm:$0xff]
    %v118 = vld [vmem:[#allocation2 + $0x238] sm:$0xff]
    %v119 = vld [vmem:[#allocation2 + $0x240] sm:$0xff]
    %v120 = vld [vmem:[#allocation2 + $0x248] sm:$0xff]
    %v121 = vld [vmem:[#allocation2 + $0x250] sm:$0xff]
    %v122 = vld [vmem:[#allocation2 + $0x258] sm:$0xff]
    %v123 = vld [vmem:[#allocation2 + $0x260] sm:$0xff]
    %v124 = vld [vmem:[#allocation2 + $0x268] sm:$0xff]
    %v125 = vld [vmem:[#allocation2 + $0x270] sm:$0xff]
    %v126 = vld [vmem:[#allocation2 + $0x278] sm:$0xff]
    %v127 = vld [vmem:[#allocation2 + $0x280] sm:$0xff]
    %v128 = vld [vmem:[#allocation2 + $0x288] sm:$0xff]
    %v129 = vld [vmem:[#allocation2 + $0x290] sm:$0xff]
    %v130 = vld [vmem:[#allocation2 + $0x298] sm:$0xff]
    %v131 = vld [vmem:[#allocation2 + $0x2a0] sm:$0xff]
    %v132 = vld [vmem:[#allocation2 + $0x2a8] sm:$0xff]
    %v133 = vld [vmem:[#allocation2 + $0x2b0] sm:$0xff]
    %v134 = vld [vmem:[#allocation2 + $0x2b8] sm:$0xff]
    %v135 = vld [vmem:[#allocation2 + $0x2c0] sm:$0xff]
    %v136 = vld [vmem:[#allocation2 + $0x2c8] sm:$0xff]
    %v137 = vld [vmem:[#allocation2 + $0x2d0] sm:$0xff]
    %v138 = vld [vmem:[#allocation2 + $0x2d8] sm:$0xff]
    %v139 = vld [vmem:[#allocation2 + $0x2e0] sm:$0xff]
    %v140 = vld [vmem:[#allocation2 + $0x2e8] sm:$0xff]
    %v141 = vld [vmem:[#allocation2 + $0x2f0] sm:$0xff]
    %v142 = vld [vmem:[#allocation2 + $0x2f8] sm:$0xff]
    %v143 = vld [vmem:[#allocation2 + $0x300] sm:$0xff]
    %v144 = vld [vmem:[#allocation2 + $0x308] sm:$0xff]
    %v145 = vld [vmem:[#allocation2 + $0x310] sm:$0xff]
    %v146 = vld [vmem:[#allocation2 + $0x318] sm:$0xff]
    %v147 = vld [vmem:[#allocation2 + $0x320] sm:$0xff]
    %v148 = vld [vmem:[#allocation2 + $0x328] sm:$0xff]
    %v149 = vld [vmem:[#allocation2 + $0x330] sm:$0xff]
    %v150 = vld [vmem:[#allocation2 + $0x338] sm:$0xff]
    %v151 = vld [vmem:[#allocation2 + $0x340] sm:$0xff]
    %v152 = vld [vmem:[#allocation2 + $0x348] sm:$0xff]
    %v153 = vld [vmem:[#allocation2 + $0x350] sm:$0xff]
    %v154 = vld [vmem:[#allocation2 + $0x358] sm:$0xff]
    %v155 = vld [vmem:[#allocation2 + $0x360] sm:$0xff]
    %v156 = vld [vmem:[#allocation2 + $0x368] sm:$0xff]
    %v157 = vld [vmem:[#allocation2 + $0x370] sm:$0xff]
    %v158 = vld [vmem:[#allocation2 + $0x378] sm:$0xff]
    %v159 = vld [vmem:[#allocation2 + $0x380] sm:$0xff]
    %v160 = vld [vmem:[#allocation2 + $0x388] sm:$0xff]
    %v161 = vld [vmem:[#allocation2 + $0x390] sm:$0xff]
    %v162 = vld [vmem:[#allocation2 + $0x398] sm:$0xff]
    %v163 = vld [vmem:[#allocation2 + $0x3a0] sm:$0xff]
    %v164 = vld [vmem:[#allocation2 + $0x3a8] sm:$0xff]
    %v165 = vld [vmem:[#allocation2 + $0x3b0] sm:$0xff]
    %v166 = vld [vmem:[#allocation2 + $0x3b8] sm:$0xff]
    %v167 = vld [vmem:[#allocation2 + $0x3c0] sm:$0xff]
    %v168 = vld [vmem:[#allocation2 + $0x3c8] sm:$0xff]
    %v169 = vld [vmem:[#allocation2 + $0x3d0] sm:$0xff]
    %v170 = vld [vmem:[#allocation2 + $0x3d8] sm:$0xff]
    %v171 = vld [vmem:[#allocation2 + $0x3e0] sm:$0xff]
    %v172 = vld [vmem:[#allocation2 + $0x3e8] sm:$0xff]
    %v173 = vld [vmem:[#allocation2 + $0x3f0] sm:$0xff]
    %v174 = vld [vmem:[#allocation2 + $0x3f8] sm:$0xff]
    %v175 = vld [vmem:[#allocation2 + $0x400] sm:$0xff]
    %v176 = vld [vmem:[#allocation2 + $0x408] sm:$0xff]
    %v177 = vld [vmem:[#allocation2 + $0x410] sm:$0xff]
    %v178 = vld [vmem:[#allocation2 + $0x418] sm:$0xff]
    %v179 = vld [vmem:[#allocation2 + $0x420] sm:$0xff]
    %v180 = vld [vmem:[#allocation2 + $0x428] sm:$0xff]
    %v181 = vld [vmem:[#allocation2 + $0x430] sm:$0xff]
    %v182 = vld [vmem:[#allocation2 + $0x438] sm:$0xff]
    %v183 = vld [vmem:[#allocation2 + $0x440] sm:$0xff]
    %v184 = vld [vmem:[#allocation2 + $0x448] sm:$0xff]
    %v185 = vld [vmem:[#allocation2 + $0x450] sm:$0xff]
    %v186 = vld [vmem:[#allocation2 + $0x458] sm:$0xff]
    %v187 = vld [vmem:[#allocation2 + $0x460] sm:$0xff]
    %v188 = vld [vmem:[#allocation2 + $0x468] sm:$0xff]
    %v189 = vld [vmem:[#allocation2 + $0x470] sm:$0xff]
    %v190 = vld [vmem:[#allocation2 + $0x478] sm:$0xff]
    %v191 = vld [vmem:[#allocation2 + $0x480] sm:$0xff]
    %v192 = vld [vmem:[#allocation2 + $0x488] sm:$0xff]
    %v193 = vld [vmem:[#allocation2 + $0x490] sm:$0xff]
    %v194 = vld [vmem:[#allocation2 + $0x498] sm:$0xff]
    %v195 = vld [vmem:[#allocation2 + $0x4a0] sm:$0xff]
    %v196 = vld [vmem:[#allocation2 + $0x4a8] sm:$0xff]
    %v197 = vld [vmem:[#allocation2 + $0x4b0] sm:$0xff]
    %v198 = vld [vmem:[#allocation2 + $0x4b8] sm:$0xff]
    %v199 = vld [vmem:[#allocation2 + $0x4c0] sm:$0xff]
    %v200 = vld [vmem:[#allocation2 + $0x4c8] sm:$0xff]
    %v201 = vld [vmem:[#allocation2 + $0x4d0] sm:$0xff]
    %v202 = vld [vmem:[#allocation2 + $0x4d8] sm:$0xff]
    %v203 = vld [vmem:[#allocation2 + $0x4e0] sm:$0xff]
    %v204 = vld [vmem:[#allocation2 + $0x4e8] sm:$0xff]
    %v205 = vld [vmem:[#allocation2 + $0x4f0] sm:$0xff]
    %v206 = vld [vmem:[#allocation2 + $0x4f8] sm:$0xff]
    %v207 = vld [vmem:[%s3] sm:$0xff]
    %v208 = vld [vmem:[%s3 + $0x8] sm:$0xff]
    %v209 = vld [vmem:[%s3 + $0x10] sm:$0xff]
    %v210 = vld [vmem:[%s3 + $0x18] sm:$0xff]
    %v211 = vld [vmem:[%s4] sm:$0xff]
    %v212 = vld [vmem:[%s4 + $0x8] sm:$0xff]
    %v213 = vld [vmem:[%s4 + $0x10] sm:$0xff]
    %v214 = vld [vmem:[%s4 + $0x18] sm:$0xff]
    %v215 = vld [vmem:[%s5] sm:$0xff]
    %v216 = vld [vmem:[%s5 + $0x8] sm:$0xff]
    %v217 = vld [vmem:[%s6] sm:$0x77]
    %v218 = vld [vmem:[%s6 + $0x8] sm:$0x77]
    %v219 = vld [vmem:[%s6 + $0x10] sm:$0x7]
    %v220 = vld [vmem:[%s6 + $0x14] sm:$0x77]
    %v221 = vld [vmem:[%s6 + $0x1c] sm:$0x77]
    %v222 = vld [vmem:[%s6 + $0x24] sm:$0x7]
    %v223 = vld [vmem:[%s6 + $0x28] sm:$0x77]
    %v224 = vld [vmem:[%s6 + $0x30] sm:$0x77]
    %v225 = vld [vmem:[%s6 + $0x38] sm:$0x7]
    %v226 = vld [vmem:[%s6 + $0x3c] sm:$0x77]
    %v227 = vld [vmem:[%s6 + $0x44] sm:$0x77]
    %v228 = vld [vmem:[%s6 + $0x4c] sm:$0x7]
    %v229 = vld [vmem:[%s6 + $0x50] sm:$0x77]
    %v230 = vld [vmem:[%s6 + $0x58] sm:$0x77]
    %v231 = vld [vmem:[%s6 + $0x60] sm:$0x7]
    %v232 = vld [vmem:[%s6 + $0x64] sm:$0x77]
    %v233 = vld [vmem:[%s6 + $0x6c] sm:$0x77]
    %v234 = vld [vmem:[%s6 + $0x74] sm:$0x7]
    %v235 = vld [vmem:[%s6 + $0x78] sm:$0x77]
    %v236 = vld [vmem:[%s6 + $0x80] sm:$0x77]
    %v237 = vld [vmem:[%s6 + $0x88] sm:$0x7]
    %v238 = vld [vmem:[%s6 + $0x8c] sm:$0x77]
    %v239 = vld [vmem:[%s6 + $0x94] sm:$0x77]
    %v240 = vld [vmem:[%s6 + $0x9c] sm:$0x7]
    %v241 = vld [vmem:[%s7] sm:$0xff]
    %v242 = vld [vmem:[%s8] sm:$0x1]
    %v243 = vld [vmem:[%s1] sm:$0xff]
    %v244 = vld [vmem:[%s1 + $0x8] sm:$0xff]
    %v245 = vld [vmem:[%s1 + $0x10] sm:$0xff]
    %v246 = vld [vmem:[%s1 + $0x18] sm:$0xff]
    %v247 = vld [vmem:[%s1 + $0x20] sm:$0xff]
    %v253 = vcombine.low %v243, %v244
    %v254 = vcombine.high %v243, %v244
    %v255 = vcombine.low %v245, %v246
    %v256 = vcombine.high %v245, %v246
    %v257 = vcombine.high %v247, %v247
    %v259 = vunpack.c.l.s4 1966171168
    %v260 = vunpack.c.0.s8 %v259
    %v261 = vlaneseq
    %v262 = vshrl.u32 %v261, 7
    %v263 = vsub.s32 %v260, %v262
    %v264 = vrot.slane %v253, %v263
    %v266 = vunpack.c.l.s4 1966171168
    %v267 = vunpack.c.0.s8 %v266
    %v268 = vlaneseq
    %v269 = vshrl.u32 %v268, 7
    %v270 = vsub.s32 %v267, %v269
    %v271 = vrot.slane %v254, %v270
    %v273 = vunpack.c.l.s4 1966171168
    %v274 = vunpack.c.0.s8 %v273
    %v275 = vlaneseq
    %v276 = vshrl.u32 %v275, 7
    %v277 = vsub.s32 %v274, %v276
    %v278 = vrot.slane %v255, %v277
    %v280 = vunpack.c.l.s4 1966171168
    %v281 = vunpack.c.0.s8 %v280
    %v282 = vlaneseq
    %v283 = vshrl.u32 %v282, 7
    %v284 = vsub.s32 %v281, %v283
    %v285 = vrot.slane %v256, %v284
    %v287 = vunpack.c.l.s4 1966171168
    %v288 = vunpack.c.0.s8 %v287
    %v289 = vlaneseq
    %v290 = vshrl.u32 %v289, 7
    %v291 = vsub.s32 %v288, %v290
    %v292 = vrot.slane %v247, %v291
    %v294 = vunpack.c.l.s4 1966171168
    %v295 = vunpack.c.0.s8 %v294
    %v296 = vlaneseq
    %v297 = vshrl.u32 %v296, 7
    %v298 = vsub.s32 %v295, %v297
    %v299 = vrot.slane %v257, %v298
    %v300 = vcombine.low %v264, %v278
    %v301 = vcombine.high %v264, %v278
    %v302 = vcombine.low %v271, %v285
    %v303 = vcombine.high %v271, %v285
    %v304 = vcombine.high %v292, %v292
    %v305 = vcombine.high %v299, %v299
    %v307 = vunpack.c.l.s4 1966171168
    %v308 = vunpack.c.0.s8 %v307
    %v309 = vlaneseq
    %v310 = vshrl.u32 %v309, 7
    %v311 = vsub.s32 %v308, %v310
    %v312 = vrot.slane %v300, %v311
    %v314 = vunpack.c.l.s4 1966171168
    %v315 = vunpack.c.0.s8 %v314
    %v316 = vlaneseq
    %v317 = vshrl.u32 %v316, 7
    %v318 = vsub.s32 %v315, %v317
    %v319 = vrot.slane %v302, %v318
    %v321 = vunpack.c.l.s4 1966171168
    %v322 = vunpack.c.0.s8 %v321
    %v323 = vlaneseq
    %v324 = vshrl.u32 %v323, 7
    %v325 = vsub.s32 %v322, %v324
    %v326 = vrot.slane %v301, %v325
    %v328 = vunpack.c.l.s4 1966171168
    %v329 = vunpack.c.0.s8 %v328
    %v330 = vlaneseq
    %v331 = vshrl.u32 %v330, 7
    %v332 = vsub.s32 %v329, %v331
    %v333 = vrot.slane %v303, %v332
    %v335 = vunpack.c.l.s4 1966171168
    %v336 = vunpack.c.0.s8 %v335
    %v337 = vlaneseq
    %v338 = vshrl.u32 %v337, 7
    %v339 = vsub.s32 %v336, %v338
    %v340 = vrot.slane %v292, %v339
    %v342 = vunpack.c.l.s4 1966171168
    %v343 = vunpack.c.0.s8 %v342
    %v344 = vlaneseq
    %v345 = vshrl.u32 %v344, 7
    %v346 = vsub.s32 %v343, %v345
    %v347 = vrot.slane %v299, %v346
    %v349 = vunpack.c.l.s4 1966171168
    %v350 = vunpack.c.0.s8 %v349
    %v351 = vlaneseq
    %v352 = vshrl.u32 %v351, 7
    %v353 = vsub.s32 %v350, %v352
    %v354 = vrot.slane %v304, %v353
    %v356 = vunpack.c.l.s4 1966171168
    %v357 = vunpack.c.0.s8 %v356
    %v358 = vlaneseq
    %v359 = vshrl.u32 %v358, 7
    %v360 = vsub.s32 %v357, %v359
    %v361 = vrot.slane %v305, %v360
    %v362 = vcombine.low %v312, %v340
    %v363 = vcombine.high %v312, %v340
    %v364 = vcombine.low %v319, %v347
    %v365 = vcombine.high %v319, %v347
    %v366 = vcombine.low %v326, %v354
    %v367 = vcombine.high %v326, %v354
    %v368 = vcombine.low %v333, %v361
    %v369 = vcombine.high %v333, %v361
    %v370 = vlaneseq
    %v371 = vshrl.u32 %v370, 7
    %v372 = vsub.s32 0, %v371
    %v373 = vrot.slane %v362, %v372
    %v374 = vlaneseq
    %v375 = vshrl.u32 %v374, 7
    %v376 = vsub.s32 1, %v375
    %v377 = vrot.slane %v362, %v376
    %v378 = vlaneseq
    %v379 = vshrl.u32 %v378, 7
    %v380 = vsub.s32 2, %v379
    %v381 = vrot.slane %v362, %v380
    %v382 = vlaneseq
    %v383 = vshrl.u32 %v382, 7
    %v384 = vsub.s32 3, %v383
    %v385 = vrot.slane %v362, %v384
    %v386 = vlaneseq
    %v387 = vshrl.u32 %v386, 7
    %v388 = vsub.s32 4, %v387
    %v389 = vrot.slane %v362, %v388
    %v390 = vlaneseq
    %v391 = vshrl.u32 %v390, 7
    %v392 = vsub.s32 0, %v391
    %v393 = vrot.slane %v366, %v392
    %v394 = vlaneseq
    %v395 = vshrl.u32 %v394, 7
    %v396 = vsub.s32 1, %v395
    %v397 = vrot.slane %v366, %v396
    %v398 = vlaneseq
    %v399 = vshrl.u32 %v398, 7
    %v400 = vsub.s32 2, %v399
    %v401 = vrot.slane %v366, %v400
    %v402 = vlaneseq
    %v403 = vshrl.u32 %v402, 7
    %v404 = vsub.s32 3, %v403
    %v405 = vrot.slane %v366, %v404
    %v406 = vlaneseq
    %v407 = vshrl.u32 %v406, 7
    %v408 = vsub.s32 4, %v407
    %v409 = vrot.slane %v366, %v408
    %v410 = vlaneseq
    %v411 = vshrl.u32 %v410, 7
    %v412 = vsub.s32 0, %v411
    %v413 = vrot.slane %v363, %v412
    %v414 = vlaneseq
    %v415 = vshrl.u32 %v414, 7
    %v416 = vsub.s32 1, %v415
    %v417 = vrot.slane %v363, %v416
    %v418 = vlaneseq
    %v419 = vshrl.u32 %v418, 7
    %v420 = vsub.s32 2, %v419
    %v421 = vrot.slane %v363, %v420
    %v422 = vlaneseq
    %v423 = vshrl.u32 %v422, 7
    %v424 = vsub.s32 3, %v423
    %v425 = vrot.slane %v363, %v424
    %v426 = vlaneseq
    %v427 = vshrl.u32 %v426, 7
    %v428 = vsub.s32 4, %v427
    %v429 = vrot.slane %v363, %v428
    %v430 = vlaneseq
    %v431 = vshrl.u32 %v430, 7
    %v432 = vsub.s32 0, %v431
    %v433 = vrot.slane %v367, %v432
    %v434 = vlaneseq
    %v435 = vshrl.u32 %v434, 7
    %v436 = vsub.s32 1, %v435
    %v437 = vrot.slane %v367, %v436
    %v438 = vlaneseq
    %v439 = vshrl.u32 %v438, 7
    %v440 = vsub.s32 2, %v439
    %v441 = vrot.slane %v367, %v440
    %v442 = vlaneseq
    %v443 = vshrl.u32 %v442, 7
    %v444 = vsub.s32 3, %v443
    %v445 = vrot.slane %v367, %v444
    %v446 = vlaneseq
    %v447 = vshrl.u32 %v446, 7
    %v448 = vsub.s32 4, %v447
    %v449 = vrot.slane %v367, %v448
    %v450 = vlaneseq
    %v451 = vshrl.u32 %v450, 7
    %v452 = vsub.s32 0, %v451
    %v453 = vrot.slane %v364, %v452
    %v454 = vlaneseq
    %v455 = vshrl.u32 %v454, 7
    %v456 = vsub.s32 1, %v455
    %v457 = vrot.slane %v364, %v456
    %v458 = vlaneseq
    %v459 = vshrl.u32 %v458, 7
    %v460 = vsub.s32 2, %v459
    %v461 = vrot.slane %v364, %v460
    %v462 = vlaneseq
    %v463 = vshrl.u32 %v462, 7
    %v464 = vsub.s32 3, %v463
    %v465 = vrot.slane %v364, %v464
    %v466 = vlaneseq
    %v467 = vshrl.u32 %v466, 7
    %v468 = vsub.s32 4, %v467
    %v469 = vrot.slane %v364, %v468
    %v470 = vlaneseq
    %v471 = vshrl.u32 %v470, 7
    %v472 = vsub.s32 0, %v471
    %v473 = vrot.slane %v368, %v472
    %v474 = vlaneseq
    %v475 = vshrl.u32 %v474, 7
    %v476 = vsub.s32 1, %v475
    %v477 = vrot.slane %v368, %v476
    %v478 = vlaneseq
    %v479 = vshrl.u32 %v478, 7
    %v480 = vsub.s32 2, %v479
    %v481 = vrot.slane %v368, %v480
    %v482 = vlaneseq
    %v483 = vshrl.u32 %v482, 7
    %v484 = vsub.s32 3, %v483
    %v485 = vrot.slane %v368, %v484
    %v486 = vlaneseq
    %v487 = vshrl.u32 %v486, 7
    %v488 = vsub.s32 4, %v487
    %v489 = vrot.slane %v368, %v488
    %v490 = vlaneseq
    %v491 = vshrl.u32 %v490, 7
    %v492 = vsub.s32 0, %v491
    %v493 = vrot.slane %v365, %v492
    %v494 = vlaneseq
    %v495 = vshrl.u32 %v494, 7
    %v496 = vsub.s32 1, %v495
    %v497 = vrot.slane %v365, %v496
    %v498 = vlaneseq
    %v499 = vshrl.u32 %v498, 7
    %v500 = vsub.s32 2, %v499
    %v501 = vrot.slane %v365, %v500
    %v502 = vlaneseq
    %v503 = vshrl.u32 %v502, 7
    %v504 = vsub.s32 3, %v503
    %v505 = vrot.slane %v365, %v504
    %v506 = vlaneseq
    %v507 = vshrl.u32 %v506, 7
    %v508 = vsub.s32 4, %v507
    %v509 = vrot.slane %v365, %v508
    %v510 = vlaneseq
    %v511 = vshrl.u32 %v510, 7
    %v512 = vsub.s32 0, %v511
    %v513 = vrot.slane %v369, %v512
    %v514 = vlaneseq
    %v515 = vshrl.u32 %v514, 7
    %v516 = vsub.s32 1, %v515
    %v517 = vrot.slane %v369, %v516
    %v518 = vlaneseq
    %v519 = vshrl.u32 %v518, 7
    %v520 = vsub.s32 2, %v519
    %v521 = vrot.slane %v369, %v520
    %v522 = vlaneseq
    %v523 = vshrl.u32 %v522, 7
    %v524 = vsub.s32 3, %v523
    %v525 = vrot.slane %v369, %v524
    %v526 = vlaneseq
    %v527 = vshrl.u32 %v526, 7
    %v528 = vsub.s32 4, %v527
    %v529 = vrot.slane %v369, %v528
    %v586 = vcombine.high %v217, %v217
    %v587 = vcombine.high %v218, %v218
    %v588 = vcombine.high %v220, %v220
    %v589 = vcombine.high %v221, %v221
    %v590 = vcombine.high %v223, %v223
    %v591 = vcombine.high %v224, %v224
    %v592 = vcombine.high %v226, %v226
    %v593 = vcombine.high %v227, %v227
    %v594 = vcombine.high %v229, %v229
    %v595 = vcombine.high %v230, %v230
    %v596 = vcombine.high %v232, %v232
    %v597 = vcombine.high %v233, %v233
    %v598 = vcombine.high %v235, %v235
    %v599 = vcombine.high %v236, %v236
    %v600 = vcombine.high %v238, %v238
    %v601 = vcombine.high %v239, %v239
    %v618 = vmul.f32 %v373, %v217
    %v619 = vmul.f32 %v377, %v586
    %v620 = vmul.f32 %v381, %v218
    %v621 = vmul.f32 %v385, %v587
    %v622 = vmul.f32 %v389, %v219
    %v623 = vmul.f32 %v393, %v220
    %v624 = vmul.f32 %v397, %v588
    %v625 = vmul.f32 %v401, %v221
    %v626 = vmul.f32 %v405, %v589
    %v627 = vmul.f32 %v409, %v222
    %v628 = vmul.f32 %v413, %v223
    %v629 = vmul.f32 %v417, %v590
    %v630 = vmul.f32 %v421, %v224
    %v631 = vmul.f32 %v425, %v591
    %v632 = vmul.f32 %v429, %v225
    %v633 = vmul.f32 %v433, %v226
    %v634 = vmul.f32 %v437, %v592
    %v635 = vmul.f32 %v441, %v227
    %v636 = vmul.f32 %v445, %v593
    %v637 = vmul.f32 %v449, %v228
    %v638 = vmul.f32 %v453, %v229
    %v639 = vmul.f32 %v457, %v594
    %v640 = vmul.f32 %v461, %v230
    %v641 = vmul.f32 %v465, %v595
    %v642 = vmul.f32 %v469, %v231
    %v643 = vmul.f32 %v473, %v232
    %v644 = vmul.f32 %v477, %v596
    %v645 = vmul.f32 %v481, %v233
    %v646 = vmul.f32 %v485, %v597
    %v647 = vmul.f32 %v489, %v234
    %v648 = vmul.f32 %v493, %v235
    %v649 = vmul.f32 %v497, %v598
    %v650 = vmul.f32 %v501, %v236
    %v651 = vmul.f32 %v505, %v599
    %v652 = vmul.f32 %v509, %v237
    %v653 = vmul.f32 %v513, %v238
    %v654 = vmul.f32 %v517, %v600
    %v655 = vmul.f32 %v521, %v239
    %v656 = vmul.f32 %v525, %v601
    %v657 = vmul.f32 %v529, %v240
    %vm658 = vcmask 1042432
    %v659 = vsel %vm658, %v618, 0.0
    %v660 = vsel %vm658, %v619, 0.0
    %v661 = vadd.f32 %v659, %v660
    %v662 = vsel %vm658, %v620, 0.0
    %v663 = vadd.f32 %v661, %v662
    %v664 = vsel %vm658, %v621, 0.0
    %v665 = vadd.f32 %v663, %v664
    %v666 = vsel %vm658, %v622, 0.0
    %v667 = vadd.f32 %v665, %v666
    %668 = vadd.xlane.f32.xlu0 %v667
    %v669 = vpop.xlane.xlu0 %668
    %v670 = vsel %vm658, %v623, 0.0
    %v671 = vsel %vm658, %v624, 0.0
    %v672 = vadd.f32 %v670, %v671
    %v673 = vsel %vm658, %v625, 0.0
    %v674 = vadd.f32 %v672, %v673
    %v675 = vsel %vm658, %v626, 0.0
    %v676 = vadd.f32 %v674, %v675
    %v677 = vsel %vm658, %v627, 0.0
    %v678 = vadd.f32 %v676, %v677
    %679 = vadd.xlane.f32.xlu0 %v678
    %v680 = vpop.xlane.xlu0 %679
    %v681 = vsel %vm658, %v628, 0.0
    %v682 = vsel %vm658, %v629, 0.0
    %v683 = vadd.f32 %v681, %v682
    %v684 = vsel %vm658, %v630, 0.0
    %v685 = vadd.f32 %v683, %v684
    %v686 = vsel %vm658, %v631, 0.0
    %v687 = vadd.f32 %v685, %v686
    %v688 = vsel %vm658, %v632, 0.0
    %v689 = vadd.f32 %v687, %v688
    %690 = vadd.xlane.f32.xlu0 %v689
    %v691 = vpop.xlane.xlu0 %690
    %v692 = vsel %vm658, %v633, 0.0
    %v693 = vsel %vm658, %v634, 0.0
    %v694 = vadd.f32 %v692, %v693
    %v695 = vsel %vm658, %v635, 0.0
    %v696 = vadd.f32 %v694, %v695
    %v697 = vsel %vm658, %v636, 0.0
    %v698 = vadd.f32 %v696, %v697
    %v699 = vsel %vm658, %v637, 0.0
    %v700 = vadd.f32 %v698, %v699
    %701 = vadd.xlane.f32.xlu0 %v700
    %v702 = vpop.xlane.xlu0 %701
    %v703 = vsel %vm658, %v638, 0.0
    %v704 = vsel %vm658, %v639, 0.0
    %v705 = vadd.f32 %v703, %v704
    %v706 = vsel %vm658, %v640, 0.0
    %v707 = vadd.f32 %v705, %v706
    %v708 = vsel %vm658, %v641, 0.0
    %v709 = vadd.f32 %v707, %v708
    %v710 = vsel %vm658, %v642, 0.0
    %v711 = vadd.f32 %v709, %v710
    %712 = vadd.xlane.f32.xlu0 %v711
    %v713 = vpop.xlane.xlu0 %712
    %v714 = vsel %vm658, %v643, 0.0
    %v715 = vsel %vm658, %v644, 0.0
    %v716 = vadd.f32 %v714, %v715
    %v717 = vsel %vm658, %v645, 0.0
    %v718 = vadd.f32 %v716, %v717
    %v719 = vsel %vm658, %v646, 0.0
    %v720 = vadd.f32 %v718, %v719
    %v721 = vsel %vm658, %v647, 0.0
    %v722 = vadd.f32 %v720, %v721
    %723 = vadd.xlane.f32.xlu0 %v722
    %v724 = vpop.xlane.xlu0 %723
    %v725 = vsel %vm658, %v648, 0.0
    %v726 = vsel %vm658, %v649, 0.0
    %v727 = vadd.f32 %v725, %v726
    %v728 = vsel %vm658, %v650, 0.0
    %v729 = vadd.f32 %v727, %v728
    %v730 = vsel %vm658, %v651, 0.0
    %v731 = vadd.f32 %v729, %v730
    %v732 = vsel %vm658, %v652, 0.0
    %v733 = vadd.f32 %v731, %v732
    %734 = vadd.xlane.f32.xlu0 %v733
    %v735 = vpop.xlane.xlu0 %734
    %v736 = vsel %vm658, %v653, 0.0
    %v737 = vsel %vm658, %v654, 0.0
    %v738 = vadd.f32 %v736, %v737
    %v739 = vsel %vm658, %v655, 0.0
    %v740 = vadd.f32 %v738, %v739
    %v741 = vsel %vm658, %v656, 0.0
    %v742 = vadd.f32 %v740, %v741
    %v743 = vsel %vm658, %v657, 0.0
    %v744 = vadd.f32 %v742, %v743
    %745 = vadd.xlane.f32.xlu0 %v744
    %v746 = vpop.xlane.xlu0 %745
    %v748 = vlaneseq
    %v749 = vshrl.u32 %v748, 7
    %v750 = vsub.s32 0, %v749
    %v751 = vrot.slane %v241, %v750
    %753 = vbcast.lane.b32.xlu0 %v751, 256
    %v754 = vpop.permute.xlu0 %753
    %v755 = vlaneseq
    %v756 = vshrl.u32 %v755, 7
    %v757 = vsub.s32 1, %v756
    %v758 = vrot.slane %v241, %v757
    %760 = vbcast.lane.b32.xlu0 %v758, 256
    %v761 = vpop.permute.xlu0 %760
    %v762 = vlaneseq
    %v763 = vshrl.u32 %v762, 7
    %v764 = vsub.s32 2, %v763
    %v765 = vrot.slane %v241, %v764
    %767 = vbcast.lane.b32.xlu0 %v765, 256
    %v768 = vpop.permute.xlu0 %767
    %v769 = vlaneseq
    %v770 = vshrl.u32 %v769, 7
    %v771 = vsub.s32 3, %v770
    %v772 = vrot.slane %v241, %v771
    %774 = vbcast.lane.b32.xlu0 %v772, 256
    %v775 = vpop.permute.xlu0 %774
    %v776 = vlaneseq
    %v777 = vshrl.u32 %v776, 7
    %v778 = vsub.s32 4, %v777
    %v779 = vrot.slane %v241, %v778
    %781 = vbcast.lane.b32.xlu0 %v779, 256
    %v782 = vpop.permute.xlu0 %781
    %v783 = vlaneseq
    %v784 = vshrl.u32 %v783, 7
    %v785 = vsub.s32 5, %v784
    %v786 = vrot.slane %v241, %v785
    %788 = vbcast.lane.b32.xlu0 %v786, 256
    %v789 = vpop.permute.xlu0 %788
    %v790 = vlaneseq
    %v791 = vshrl.u32 %v790, 7
    %v792 = vsub.s32 6, %v791
    %v793 = vrot.slane %v241, %v792
    %795 = vbcast.lane.b32.xlu0 %v793, 256
    %v796 = vpop.permute.xlu0 %795
    %v797 = vlaneseq
    %v798 = vshrl.u32 %v797, 7
    %v799 = vsub.s32 7, %v798
    %v800 = vrot.slane %v241, %v799
    %802 = vbcast.lane.b32.xlu0 %v800, 256
    %v803 = vpop.permute.xlu0 %802
    %v812 = vadd.f32 %v669, %v754
    %v813 = vadd.f32 %v680, %v761
    %v814 = vadd.f32 %v691, %v768
    %v815 = vadd.f32 %v702, %v775
    %v816 = vadd.f32 %v713, %v782
    %v817 = vadd.f32 %v724, %v789
    %v818 = vadd.f32 %v735, %v796
    %v819 = vadd.f32 %v746, %v803
    %v821 = vlaneseq
    %v822 = vshrl.u32 %v821, 7
    %v823 = vsub.s32 0, %v822
    %v824 = vrot.slane %v242, %v823
    %826 = vbcast.lane.b32.xlu0 %v824, 256
    %v827 = vpop.permute.xlu0 %826
    %v829 = vmul.f32 %v812, %v827
    %v830 = vmul.f32 %v813, %v827
    %v831 = vmul.f32 %v814, %v827
    %v832 = vmul.f32 %v815, %v827
    %v833 = vmul.f32 %v816, %v827
    %v834 = vmul.f32 %v817, %v827
    %v835 = vmul.f32 %v818, %v827
    %v836 = vmul.f32 %v819, %v827
    %v838 = vlaneseq
    %v839 = vshrl.u32 %v838, 7
    %v840 = vsub.s32 0, %v839
    %v841 = vrot.slane %v46, %v840
    %843 = vbcast.lane.b32.xlu0 %v841, 256
    %v844 = vpop.permute.xlu0 %843
    %v845 = vlaneseq
    %v846 = vshrl.u32 %v845, 7
    %v847 = vsub.s32 1, %v846
    %v848 = vrot.slane %v46, %v847
    %850 = vbcast.lane.b32.xlu0 %v848, 256
    %v851 = vpop.permute.xlu0 %850
    %v852 = vlaneseq
    %v853 = vshrl.u32 %v852, 7
    %v854 = vsub.s32 2, %v853
    %v855 = vrot.slane %v46, %v854
    %857 = vbcast.lane.b32.xlu0 %v855, 256
    %v858 = vpop.permute.xlu0 %857
    %v859 = vlaneseq
    %v860 = vshrl.u32 %v859, 7
    %v861 = vsub.s32 3, %v860
    %v862 = vrot.slane %v46, %v861
    %864 = vbcast.lane.b32.xlu0 %v862, 256
    %v865 = vpop.permute.xlu0 %864
    %v866 = vlaneseq
    %v867 = vshrl.u32 %v866, 7
    %v868 = vsub.s32 4, %v867
    %v869 = vrot.slane %v46, %v868
    %871 = vbcast.lane.b32.xlu0 %v869, 256
    %v872 = vpop.permute.xlu0 %871
    %v873 = vlaneseq
    %v874 = vshrl.u32 %v873, 7
    %v875 = vsub.s32 5, %v874
    %v876 = vrot.slane %v46, %v875
    %878 = vbcast.lane.b32.xlu0 %v876, 256
    %v879 = vpop.permute.xlu0 %878
    %v880 = vlaneseq
    %v881 = vshrl.u32 %v880, 7
    %v882 = vsub.s32 6, %v881
    %v883 = vrot.slane %v46, %v882
    %885 = vbcast.lane.b32.xlu0 %v883, 256
    %v886 = vpop.permute.xlu0 %885
    %v887 = vlaneseq
    %v888 = vshrl.u32 %v887, 7
    %v889 = vsub.s32 7, %v888
    %v890 = vrot.slane %v46, %v889
    %892 = vbcast.lane.b32.xlu0 %v890, 256
    %v893 = vpop.permute.xlu0 %892
    %v902 = vadd.f32 %v829, %v844
    %v903 = vadd.f32 %v830, %v851
    %v904 = vadd.f32 %v831, %v858
    %v905 = vadd.f32 %v832, %v865
    %v906 = vadd.f32 %v833, %v872
    %v907 = vadd.f32 %v834, %v879
    %v908 = vadd.f32 %v835, %v886
    %v909 = vadd.f32 %v836, %v893
    %918 = vset.pattern.permute.xlu0 0
    %919 = vperm.xlu0 %918, %v902
    %v920 = vpop.permute.xlu0 %919
    %921 = vset.pattern.permute.xlu0 0
    %922 = vperm.xlu0 %921, %v903
    %v923 = vpop.permute.xlu0 %922
    %924 = vset.pattern.permute.xlu0 0
    %925 = vperm.xlu0 %924, %v904
    %v926 = vpop.permute.xlu0 %925
    %927 = vset.pattern.permute.xlu0 0
    %928 = vperm.xlu0 %927, %v905
    %v929 = vpop.permute.xlu0 %928
    %930 = vset.pattern.permute.xlu0 0
    %931 = vperm.xlu0 %930, %v906
    %v932 = vpop.permute.xlu0 %931
    %933 = vset.pattern.permute.xlu0 0
    %934 = vperm.xlu0 %933, %v907
    %v935 = vpop.permute.xlu0 %934
    %936 = vset.pattern.permute.xlu0 0
    %937 = vperm.xlu0 %936, %v908
    %v938 = vpop.permute.xlu0 %937
    %939 = vset.pattern.permute.xlu0 0
    %940 = vperm.xlu0 %939, %v909
    %v941 = vpop.permute.xlu0 %940
    %v942 = vlaneseq
    %v943 = vand.u32 %v942, 127
    %v944 = vlaneseq
    %v945 = vshrl.u32 %v944, 7
    %v946 = vsub.s32 %v943, %v945
    %v947 = vrot.slane %v920, %v946
    %v948 = vlaneseq
    %v949 = vshrl.u32 %v948, 7
    %v950 = vsub.s32 %v943, %v949
    %v951 = vrot.slane %v923, %v950
    %v952 = vlaneseq
    %v953 = vshrl.u32 %v952, 7
    %v954 = vsub.s32 %v943, %v953
    %v955 = vrot.slane %v926, %v954
    %v956 = vlaneseq
    %v957 = vshrl.u32 %v956, 7
    %v958 = vsub.s32 %v943, %v957
    %v959 = vrot.slane %v929, %v958
    %v960 = vlaneseq
    %v961 = vshrl.u32 %v960, 7
    %v962 = vsub.s32 %v943, %v961
    %v963 = vrot.slane %v932, %v962
    %v964 = vlaneseq
    %v965 = vshrl.u32 %v964, 7
    %v966 = vsub.s32 %v943, %v965
    %v967 = vrot.slane %v935, %v966
    %v968 = vlaneseq
    %v969 = vshrl.u32 %v968, 7
    %v970 = vsub.s32 %v943, %v969
    %v971 = vrot.slane %v938, %v970
    %v972 = vlaneseq
    %v973 = vshrl.u32 %v972, 7
    %v974 = vsub.s32 %v943, %v973
    %v975 = vrot.slane %v941, %v974
    %vm976 = vcmask 1041409
    %v977 = vsel %vm976, %v951, %v947
    %vm978 = vcmask 1042434
    %v979 = vsel %vm978, %v955, %v977
    %vm980 = vcmask 1043459
    %v981 = vsel %vm980, %v959, %v979
    %vm982 = vcmask 1044484
    %v983 = vsel %vm982, %v963, %v981
    %vm984 = vcmask 1045509
    %v985 = vsel %vm984, %v967, %v983
    %vm986 = vcmask 1046534
    %v987 = vsel %vm986, %v971, %v985
    %vm988 = vcmask 1047559
    %v989 = vsel %vm988, %v975, %v987
    %vm991 = vcmask 23552
    %992 = vst.msk [vmem:[%s9] sm:$0xff] %vm991, %v989
    %s993 = scalar_lea.vmem %s1, 40
    %v994 = vld [vmem:[%s993] sm:$0xff]
    %v995 = vld [vmem:[%s993 + $0x8] sm:$0xff]
    %v996 = vld [vmem:[%s993 + $0x10] sm:$0xff]
    %v997 = vld [vmem:[%s993 + $0x18] sm:$0xff]
    %v998 = vld [vmem:[%s993 + $0x20] sm:$0xff]
    %999 = vmatprep.subr.mxu0 %v48
    %1000 = vmatpush1.msra.mxu0 %v47
    %1001 = vmatprep.subr.mxu0 %v50
    %1002 = vmatpush1.msra.mxu0 %v49
    %1003 = vmatprep.subr.mxu0 %v52
    %1004 = vmatpush1.msra.mxu0 %v51
    %1005 = vmatprep.subr.mxu0 %v54
    %1006 = vmatpush1.msra.mxu0 %v53
    %1007 = vmatprep.subr.mxu0 %v56
    %1008 = vmatpush1.msra.mxu0 %v55
    %1009 = vmatprep.subr.mxu0 %v58
    %1010 = vmatpush1.msra.mxu0 %v57
    %1011 = vmatprep.subr.mxu0 %v60
    %1012 = vmatpush1.msra.mxu0 %v59
    %1013 = vmatprep.subr.mxu0 %v62
    %1014 = vmatpush1.msra.mxu0 %v61
    %1015 = vmatprep.subr.mxu0 %v64
    %1016 = vmatpush1.msra.mxu0 %v63
    %1017 = vmatprep.subr.mxu0 %v66
    %1018 = vmatpush1.msra.mxu0 %v65
    %1019 = vmatprep.subr.mxu0 %v68
    %1020 = vmatpush1.msra.mxu0 %v67
    %1021 = vmatprep.subr.mxu0 %v70
    %1022 = vmatpush1.msra.mxu0 %v69
    %1023 = vmatprep.subr.mxu0 %v72
    %1024 = vmatpush1.msra.mxu0 %v71
    %1025 = vmatprep.subr.mxu0 %v74
    %1026 = vmatpush1.msra.mxu0 %v73
    %1027 = vmatprep.subr.mxu0 %v76
    %1028 = vmatpush1.msra.mxu0 %v75
    %1029 = vmatprep.subr.mxu0 %v78
    %1030 = vmatpush1.msra.mxu0 %v77
    %1031 = vmatprep.subr.mxu0 %v80
    %1032 = vmatpush1.msra.mxu0 %v79
    %1033 = vmatprep.subr.mxu0 %v82
    %1034 = vmatpush1.msra.mxu0 %v81
    %1035 = vmatprep.subr.mxu0 %v84
    %1036 = vmatpush1.msra.mxu0 %v83
    %1037 = vmatprep.subr.mxu0 %v86
    %1038 = vmatpush1.msra.mxu0 %v85
    %1039 = vmatprep.subr.mxu0 %v88
    %1040 = vmatpush1.msra.mxu0 %v87
    %1041 = vmatprep.subr.mxu0 %v90
    %1042 = vmatpush1.msra.mxu0 %v89
    %1043 = vmatprep.subr.mxu0 %v92
    %1044 = vmatpush1.msra.mxu0 %v91
    %1045 = vmatprep.subr.mxu0 %v94
    %1046 = vmatpush1.msra.mxu0 %v93
    %1047 = vmatprep.subr.mxu0 %v96
    %1048 = vmatpush1.msra.mxu0 %v95
    %1049 = vmatprep.subr.mxu0 %v98
    %1050 = vmatpush1.msra.mxu0 %v97
    %1051 = vmatprep.subr.mxu0 %v100
    %1052 = vmatpush1.msra.mxu0 %v99
    %1053 = vmatprep.subr.mxu0 %v102
    %1054 = vmatpush1.msra.mxu0 %v101
    %1055 = vmatprep.subr.mxu0 %v104
    %1056 = vmatpush1.msra.mxu0 %v103
    %1057 = vmatprep.subr.mxu0 %v106
    %1058 = vmatpush1.msra.mxu0 %v105
    %1059 = vmatprep.subr.mxu0 %v108
    %1060 = vmatpush1.msra.mxu0 %v107
    %1061 = vmatprep.subr.mxu0 %v110
    %1062 = vmatpush1.msra.mxu0 %v109
    %1063 = vmatprep.mubr.f32.mxu0 %v244
    %1064 = vmatmul.mubr.f32.gmra.mrb[0].mxu0 %v243
    %v1065 = vpop.f32.mrb[0].mxu0
    %v1066 = vadd.f32 %v207, %v1065
    %v1067 = vpop.f32.mrb[0].mxu0
    %v1068 = vadd.f32 %v208, %v1067
    %1069 = vmatprep.mubr.f32.mxu0 %v995
    %1070 = vmatmul.mubr.f32.gmra.mrb[0].mxu0 %v994
    %v1071 = vpop.f32.mrb[0].mxu0
    %v1072 = vadd.f32 %v209, %v1071
    %v1073 = vpop.f32.mrb[0].mxu0
    %v1074 = vadd.f32 %v210, %v1073
    %1075 = vdwg.mxu0
    %1076 = vmatprep.subr.mxu0 %v112
    %1077 = vmatpush1.msra.mxu0 %v111
    %1078 = vmatprep.subr.mxu0 %v114
    %1079 = vmatpush1.msra.mxu0 %v113
    %1080 = vmatprep.subr.mxu0 %v116
    %1081 = vmatpush1.msra.mxu0 %v115
    %1082 = vmatprep.subr.mxu0 %v118
    %1083 = vmatpush1.msra.mxu0 %v117
    %1084 = vmatprep.subr.mxu0 %v120
    %1085 = vmatpush1.msra.mxu0 %v119
    %1086 = vmatprep.subr.mxu0 %v122
    %1087 = vmatpush1.msra.mxu0 %v121
    %1088 = vmatprep.subr.mxu0 %v124
    %1089 = vmatpush1.msra.mxu0 %v123
    %1090 = vmatprep.subr.mxu0 %v126
    %1091 = vmatpush1.msra.mxu0 %v125
    %1092 = vmatprep.subr.mxu0 %v128
    %1093 = vmatpush1.msra.mxu0 %v127
    %1094 = vmatprep.subr.mxu0 %v130
    %1095 = vmatpush1.msra.mxu0 %v129
    %1096 = vmatprep.subr.mxu0 %v132
    %1097 = vmatpush1.msra.mxu0 %v131
    %1098 = vmatprep.subr.mxu0 %v134
    %1099 = vmatpush1.msra.mxu0 %v133
    %1100 = vmatprep.subr.mxu0 %v136
    %1101 = vmatpush1.msra.mxu0 %v135
    %1102 = vmatprep.subr.mxu0 %v138
    %1103 = vmatpush1.msra.mxu0 %v137
    %1104 = vmatprep.subr.mxu0 %v140
    %1105 = vmatpush1.msra.mxu0 %v139
    %1106 = vmatprep.subr.mxu0 %v142
    %1107 = vmatpush1.msra.mxu0 %v141
    %1108 = vmatprep.subr.mxu0 %v144
    %1109 = vmatpush1.msra.mxu0 %v143
    %1110 = vmatprep.subr.mxu0 %v146
    %1111 = vmatpush1.msra.mxu0 %v145
    %1112 = vmatprep.subr.mxu0 %v148
    %1113 = vmatpush1.msra.mxu0 %v147
    %1114 = vmatprep.subr.mxu0 %v150
    %1115 = vmatpush1.msra.mxu0 %v149
    %1116 = vmatprep.subr.mxu0 %v152
    %1117 = vmatpush1.msra.mxu0 %v151
    %1118 = vmatprep.subr.mxu0 %v154
    %1119 = vmatpush1.msra.mxu0 %v153
    %1120 = vmatprep.subr.mxu0 %v156
    %1121 = vmatpush1.msra.mxu0 %v155
    %1122 = vmatprep.subr.mxu0 %v158
    %1123 = vmatpush1.msra.mxu0 %v157
    %1124 = vmatprep.subr.mxu0 %v160
    %1125 = vmatpush1.msra.mxu0 %v159
    %1126 = vmatprep.subr.mxu0 %v162
    %1127 = vmatpush1.msra.mxu0 %v161
    %1128 = vmatprep.subr.mxu0 %v164
    %1129 = vmatpush1.msra.mxu0 %v163
    %1130 = vmatprep.subr.mxu0 %v166
    %1131 = vmatpush1.msra.mxu0 %v165
    %1132 = vmatprep.subr.mxu0 %v168
    %1133 = vmatpush1.msra.mxu0 %v167
    %1134 = vmatprep.subr.mxu0 %v170
    %1135 = vmatpush1.msra.mxu0 %v169
    %1136 = vmatprep.subr.mxu0 %v172
    %1137 = vmatpush1.msra.mxu0 %v171
    %1138 = vmatprep.subr.mxu0 %v174
    %1139 = vmatpush1.msra.mxu0 %v173
    %1140 = vmatprep.mubr.f32.mxu0 %v246
    %1141 = vmatmul.mubr.f32.gmra.mrb[0].mxu0 %v245
    %v1142 = vpop.f32.mrb[0].mxu0
    %v1143 = vadd.f32 %v1066, %v1142
    %v1144 = vpop.f32.mrb[0].mxu0
    %v1145 = vadd.f32 %v1068, %v1144
    %1146 = vmatprep.mubr.f32.mxu0 %v997
    %1147 = vmatmul.mubr.f32.gmra.mrb[0].mxu0 %v996
    %v1148 = vpop.f32.mrb[0].mxu0
    %v1149 = vadd.f32 %v1072, %v1148
    %v1150 = vpop.f32.mrb[0].mxu0
    %v1151 = vadd.f32 %v1074, %v1150
    %1152 = vdwg.mxu0
    %1153 = vmatprep.subr.mxu0 %v176
    %1154 = vmatpush1.msra.mxu0 %v175
    %1155 = vmatprep.subr.mxu0 %v178
    %1156 = vmatpush1.msra.mxu0 %v177
    %1157 = vmatprep.subr.mxu0 %v180
    %1158 = vmatpush1.msra.mxu0 %v179
    %1159 = vmatprep.subr.mxu0 %v182
    %1160 = vmatpush1.msra.mxu0 %v181
    %1161 = vmatprep.subr.mxu0 %v184
    %1162 = vmatpush1.msra.mxu0 %v183
    %1163 = vmatprep.subr.mxu0 %v186
    %1164 = vmatpush1.msra.mxu0 %v185
    %1165 = vmatprep.subr.mxu0 %v188
    %1166 = vmatpush1.msra.mxu0 %v187
    %1167 = vmatprep.subr.mxu0 %v190
    %1168 = vmatpush1.msra.mxu0 %v189
    %1169 = vmatprep.subr.mxu0 %v192
    %1170 = vmatpush1.msra.mxu0 %v191
    %1171 = vmatprep.subr.mxu0 %v194
    %1172 = vmatpush1.msra.mxu0 %v193
    %1173 = vmatprep.subr.mxu0 %v196
    %1174 = vmatpush1.msra.mxu0 %v195
    %1175 = vmatprep.subr.mxu0 %v198
    %1176 = vmatpush1.msra.mxu0 %v197
    %1177 = vmatprep.subr.mxu0 %v200
    %1178 = vmatpush1.msra.mxu0 %v199
    %1179 = vmatprep.subr.mxu0 %v202
    %1180 = vmatpush1.msra.mxu0 %v201
    %1181 = vmatprep.subr.mxu0 %v204
    %1182 = vmatpush1.msra.mxu0 %v203
    %1183 = vmatprep.subr.mxu0 %v206
    %1184 = vmatpush1.msra.mxu0 %v205
    %1185 = vmatprep.subr.mxu0 0.0
    %1186 = vmatpush1.msra.mxu0 0.0
    %1187 = vmatprep.subr.mxu0 0.0
    %1188 = vmatpush1.msra.mxu0 0.0
    %1189 = vmatprep.subr.mxu0 0.0
    %1190 = vmatpush1.msra.mxu0 0.0
    %1191 = vmatprep.subr.mxu0 0.0
    %1192 = vmatpush1.msra.mxu0 0.0
    %1193 = vmatprep.subr.mxu0 0.0
    %1194 = vmatpush1.msra.mxu0 0.0
    %1195 = vmatprep.subr.mxu0 0.0
    %1196 = vmatpush1.msra.mxu0 0.0
    %1197 = vmatprep.subr.mxu0 0.0
    %1198 = vmatpush1.msra.mxu0 0.0
    %1199 = vmatprep.subr.mxu0 0.0
    %1200 = vmatpush1.msra.mxu0 0.0
    %1201 = vmatprep.subr.mxu0 0.0
    %1202 = vmatpush1.msra.mxu0 0.0
    %1203 = vmatprep.subr.mxu0 0.0
    %1204 = vmatpush1.msra.mxu0 0.0
    %1205 = vmatprep.subr.mxu0 0.0
    %1206 = vmatpush1.msra.mxu0 0.0
    %1207 = vmatprep.subr.mxu0 0.0
    %1208 = vmatpush1.msra.mxu0 0.0
    %1209 = vmatprep.subr.mxu0 0.0
    %1210 = vmatpush1.msra.mxu0 0.0
    %1211 = vmatprep.subr.mxu0 0.0
    %1212 = vmatpush1.msra.mxu0 0.0
    %1213 = vmatprep.subr.mxu0 0.0
    %1214 = vmatpush1.msra.mxu0 0.0
    %1215 = vmatprep.subr.mxu0 0.0
    %1216 = vmatpush1.msra.mxu0 0.0
    %1217 = vmatprep.mubr.f32.mxu0 0.0
    %1218 = vmatmul.mubr.f32.gmra.mrb[0].mxu0 %v247
    %v1219 = vpop.f32.mrb[0].mxu0
    %v1220 = vadd.f32 %v1143, %v1219
    %v1221 = vpop.f32.mrb[0].mxu0
    %v1222 = vadd.f32 %v1145, %v1221
    %1223 = vmatprep.mubr.f32.mxu0 0.0
    %1224 = vmatmul.mubr.f32.gmra.mrb[0].mxu0 %v998
    %v1225 = vpop.f32.mrb[0].mxu0
    %v1226 = vadd.f32 %v1149, %v1225
    %v1227 = vpop.f32.mrb[0].mxu0
    %v1228 = vadd.f32 %v1151, %v1227
    %1229 = vdwg.mxu0
    %v1230 = vtanh.pop %v1220
    %v1231 = vtanh.pop %v1222
    %v1232 = vtanh.pop %v1226
    %v1233 = vtanh.pop %v1228
    %v1234 = vmul.f32 %v1230, %v211
    %v1235 = vmul.f32 %v1231, %v212
    %v1236 = vmul.f32 %v1232, %v213
    %v1237 = vmul.f32 %v1233, %v214
    %v1238 = vadd.f32 %v1234, %v1235
    %1239 = vadd.xlane.f32.xlu0 %v1238
    %v1240 = vpop.xlane.xlu0 %1239
    %v1241 = vadd.f32 %v1236, %v1237
    %1242 = vadd.xlane.f32.xlu0 %v1241
    %v1243 = vpop.xlane.xlu0 %1242
    %v1244 = vadd.f32 %v1240, %v215
    %v1245 = vadd.f32 %v1243, %v216
    %v1246 = vsub.f32 %v1245, %v1244
    %v1247 = vmul.f32 %v1246, 1.442695
    %v1248 = vpow.pop %v1247
    %v1249 = vadd.f32 %v1248, 1.0
    %v1250 = vrcp.pop %v1249
    %v1251 = vmul.f32 1.0, %v1250
    %v1252 = vsub.f32 1.0, %v1251
    %1254 = vset.pattern.permute.xlu0 0
    %1255 = vperm.xlu0 %1254, %v1251
    %v1256 = vpop.permute.xlu0 %1255
    %v1258 = vmul.f32 %v243, %v1256
    %v1259 = vmul.f32 %v244, %v1256
    %v1260 = vmul.f32 %v245, %v1256
    %v1261 = vmul.f32 %v246, %v1256
    %v1262 = vmul.f32 %v247, %v1256
    %1264 = vset.pattern.permute.xlu0 0
    %1265 = vperm.xlu0 %1264, %v1252
    %v1266 = vpop.permute.xlu0 %1265
    %v1268 = vmul.f32 %v994, %v1266
    %v1269 = vmul.f32 %v995, %v1266
    %v1270 = vmul.f32 %v996, %v1266
    %v1271 = vmul.f32 %v997, %v1266
    %v1272 = vmul.f32 %v998, %v1266
    %v1273 = vadd.f32 %v1258, %v1268
    %v1274 = vadd.f32 %v1259, %v1269
    %v1275 = vadd.f32 %v1260, %v1270
    %v1276 = vadd.f32 %v1261, %v1271
    %v1277 = vadd.f32 %v1262, %v1272
    %v1278 = vmul.f32 %v46, %v1256
    %v1279 = vlaneseq
    %v1280 = vshrl.u32 %v1279, 7
    %v1281 = vsub.s32 0, %v1280
    %v1282 = vrot.slane %v1266, %v1281
    %v1283 = vlaneseq
    %v1284 = vshrl.u32 %v1283, 7
    %v1285 = vsub.s32 1, %v1284
    %v1286 = vrot.slane %v1266, %v1285
    %v1287 = vlaneseq
    %v1288 = vshrl.u32 %v1287, 7
    %v1289 = vsub.s32 2, %v1288
    %v1290 = vrot.slane %v1266, %v1289
    %v1291 = vlaneseq
    %v1292 = vshrl.u32 %v1291, 7
    %v1293 = vsub.s32 3, %v1292
    %v1294 = vrot.slane %v1266, %v1293
    %v1295 = vlaneseq
    %v1296 = vshrl.u32 %v1295, 7
    %v1297 = vsub.s32 4, %v1296
    %v1298 = vrot.slane %v1266, %v1297
    %v1299 = vlaneseq
    %v1300 = vshrl.u32 %v1299, 7
    %v1301 = vsub.s32 5, %v1300
    %v1302 = vrot.slane %v1266, %v1301
    %v1303 = vlaneseq
    %v1304 = vshrl.u32 %v1303, 7
    %v1305 = vsub.s32 6, %v1304
    %v1306 = vrot.slane %v1266, %v1305
    %v1307 = vlaneseq
    %v1308 = vshrl.u32 %v1307, 7
    %v1309 = vsub.s32 7, %v1308
    %v1310 = vrot.slane %v1266, %v1309
    %v1319 = vmul.f32 %v902, %v1282
    %v1320 = vmul.f32 %v903, %v1286
    %v1321 = vmul.f32 %v904, %v1290
    %v1322 = vmul.f32 %v905, %v1294
    %v1323 = vmul.f32 %v906, %v1298
    %v1324 = vmul.f32 %v907, %v1302
    %v1325 = vmul.f32 %v908, %v1306
    %v1326 = vmul.f32 %v909, %v1310
    %1335 = vset.pattern.permute.xlu0 0
    %1336 = vperm.xlu0 %1335, %v1319
    %v1337 = vpop.permute.xlu0 %1336
    %1338 = vset.pattern.permute.xlu0 0
    %1339 = vperm.xlu0 %1338, %v1320
    %v1340 = vpop.permute.xlu0 %1339
    %1341 = vset.pattern.permute.xlu0 0
    %1342 = vperm.xlu0 %1341, %v1321
    %v1343 = vpop.permute.xlu0 %1342
    %1344 = vset.pattern.permute.xlu0 0
    %1345 = vperm.xlu0 %1344, %v1322
    %v1346 = vpop.permute.xlu0 %1345
    %1347 = vset.pattern.permute.xlu0 0
    %1348 = vperm.xlu0 %1347, %v1323
    %v1349 = vpop.permute.xlu0 %1348
    %1350 = vset.pattern.permute.xlu0 0
    %1351 = vperm.xlu0 %1350, %v1324
    %v1352 = vpop.permute.xlu0 %1351
    %1353 = vset.pattern.permute.xlu0 0
    %1354 = vperm.xlu0 %1353, %v1325
    %v1355 = vpop.permute.xlu0 %1354
    %1356 = vset.pattern.permute.xlu0 0
    %1357 = vperm.xlu0 %1356, %v1326
    %v1358 = vpop.permute.xlu0 %1357
    %v1359 = vlaneseq
    %v1360 = vshrl.u32 %v1359, 7
    %v1361 = vsub.s32 %v943, %v1360
    %v1362 = vrot.slane %v1337, %v1361
    %v1363 = vlaneseq
    %v1364 = vshrl.u32 %v1363, 7
    %v1365 = vsub.s32 %v943, %v1364
    %v1366 = vrot.slane %v1340, %v1365
    %v1367 = vlaneseq
    %v1368 = vshrl.u32 %v1367, 7
    %v1369 = vsub.s32 %v943, %v1368
    %v1370 = vrot.slane %v1343, %v1369
    %v1371 = vlaneseq
    %v1372 = vshrl.u32 %v1371, 7
    %v1373 = vsub.s32 %v943, %v1372
    %v1374 = vrot.slane %v1346, %v1373
    %v1375 = vlaneseq
    %v1376 = vshrl.u32 %v1375, 7
    %v1377 = vsub.s32 %v943, %v1376
    %v1378 = vrot.slane %v1349, %v1377
    %v1379 = vlaneseq
    %v1380 = vshrl.u32 %v1379, 7
    %v1381 = vsub.s32 %v943, %v1380
    %v1382 = vrot.slane %v1352, %v1381
    %v1383 = vlaneseq
    %v1384 = vshrl.u32 %v1383, 7
    %v1385 = vsub.s32 %v943, %v1384
    %v1386 = vrot.slane %v1355, %v1385
    %v1387 = vlaneseq
    %v1388 = vshrl.u32 %v1387, 7
    %v1389 = vsub.s32 %v943, %v1388
    %v1390 = vrot.slane %v1358, %v1389
    %v1391 = vsel %vm976, %v1366, %v1362
    %v1392 = vsel %vm978, %v1370, %v1391
    %v1393 = vsel %vm980, %v1374, %v1392
    %v1394 = vsel %vm982, %v1378, %v1393
    %v1395 = vsel %vm984, %v1382, %v1394
    %v1396 = vsel %vm986, %v1386, %v1395
    %v1397 = vsel %vm988, %v1390, %v1396
    %v1399 = vadd.f32 %v1278, %v1397
    %v1405 = vcombine.low %v1273, %v1274
    %v1406 = vcombine.high %v1273, %v1274
    %v1407 = vcombine.low %v1275, %v1276
    %v1408 = vcombine.high %v1275, %v1276
    %v1409 = vcombine.high %v1277, %v1277
    %v1411 = vunpack.c.l.s4 1966171168
    %v1412 = vunpack.c.0.s8 %v1411
    %v1413 = vlaneseq
    %v1414 = vshrl.u32 %v1413, 7
    %v1415 = vsub.s32 %v1412, %v1414
    %v1416 = vrot.slane %v1405, %v1415
    %v1418 = vunpack.c.l.s4 1966171168
    %v1419 = vunpack.c.0.s8 %v1418
    %v1420 = vlaneseq
    %v1421 = vshrl.u32 %v1420, 7
    %v1422 = vsub.s32 %v1419, %v1421
    %v1423 = vrot.slane %v1406, %v1422
    %v1425 = vunpack.c.l.s4 1966171168
    %v1426 = vunpack.c.0.s8 %v1425
    %v1427 = vlaneseq
    %v1428 = vshrl.u32 %v1427, 7
    %v1429 = vsub.s32 %v1426, %v1428
    %v1430 = vrot.slane %v1407, %v1429
    %v1432 = vunpack.c.l.s4 1966171168
    %v1433 = vunpack.c.0.s8 %v1432
    %v1434 = vlaneseq
    %v1435 = vshrl.u32 %v1434, 7
    %v1436 = vsub.s32 %v1433, %v1435
    %v1437 = vrot.slane %v1408, %v1436
    %v1439 = vunpack.c.l.s4 1966171168
    %v1440 = vunpack.c.0.s8 %v1439
    %v1441 = vlaneseq
    %v1442 = vshrl.u32 %v1441, 7
    %v1443 = vsub.s32 %v1440, %v1442
    %v1444 = vrot.slane %v1277, %v1443
    %v1446 = vunpack.c.l.s4 1966171168
    %v1447 = vunpack.c.0.s8 %v1446
    %v1448 = vlaneseq
    %v1449 = vshrl.u32 %v1448, 7
    %v1450 = vsub.s32 %v1447, %v1449
    %v1451 = vrot.slane %v1409, %v1450
    %v1452 = vcombine.low %v1416, %v1430
    %v1453 = vcombine.high %v1416, %v1430
    %v1454 = vcombine.low %v1423, %v1437
    %v1455 = vcombine.high %v1423, %v1437
    %v1456 = vcombine.high %v1444, %v1444
    %v1457 = vcombine.high %v1451, %v1451
    %v1459 = vunpack.c.l.s4 1966171168
    %v1460 = vunpack.c.0.s8 %v1459
    %v1461 = vlaneseq
    %v1462 = vshrl.u32 %v1461, 7
    %v1463 = vsub.s32 %v1460, %v1462
    %v1464 = vrot.slane %v1452, %v1463
    %v1466 = vunpack.c.l.s4 1966171168
    %v1467 = vunpack.c.0.s8 %v1466
    %v1468 = vlaneseq
    %v1469 = vshrl.u32 %v1468, 7
    %v1470 = vsub.s32 %v1467, %v1469
    %v1471 = vrot.slane %v1454, %v1470
    %v1473 = vunpack.c.l.s4 1966171168
    %v1474 = vunpack.c.0.s8 %v1473
    %v1475 = vlaneseq
    %v1476 = vshrl.u32 %v1475, 7
    %v1477 = vsub.s32 %v1474, %v1476
    %v1478 = vrot.slane %v1453, %v1477
    %v1480 = vunpack.c.l.s4 1966171168
    %v1481 = vunpack.c.0.s8 %v1480
    %v1482 = vlaneseq
    %v1483 = vshrl.u32 %v1482, 7
    %v1484 = vsub.s32 %v1481, %v1483
    %v1485 = vrot.slane %v1455, %v1484
    %v1487 = vunpack.c.l.s4 1966171168
    %v1488 = vunpack.c.0.s8 %v1487
    %v1489 = vlaneseq
    %v1490 = vshrl.u32 %v1489, 7
    %v1491 = vsub.s32 %v1488, %v1490
    %v1492 = vrot.slane %v1444, %v1491
    %v1494 = vunpack.c.l.s4 1966171168
    %v1495 = vunpack.c.0.s8 %v1494
    %v1496 = vlaneseq
    %v1497 = vshrl.u32 %v1496, 7
    %v1498 = vsub.s32 %v1495, %v1497
    %v1499 = vrot.slane %v1451, %v1498
    %v1501 = vunpack.c.l.s4 1966171168
    %v1502 = vunpack.c.0.s8 %v1501
    %v1503 = vlaneseq
    %v1504 = vshrl.u32 %v1503, 7
    %v1505 = vsub.s32 %v1502, %v1504
    %v1506 = vrot.slane %v1456, %v1505
    %v1508 = vunpack.c.l.s4 1966171168
    %v1509 = vunpack.c.0.s8 %v1508
    %v1510 = vlaneseq
    %v1511 = vshrl.u32 %v1510, 7
    %v1512 = vsub.s32 %v1509, %v1511
    %v1513 = vrot.slane %v1457, %v1512
    %v1514 = vcombine.low %v1464, %v1492
    %v1515 = vcombine.high %v1464, %v1492
    %v1516 = vcombine.low %v1471, %v1499
    %v1517 = vcombine.high %v1471, %v1499
    %v1518 = vcombine.low %v1478, %v1506
    %v1519 = vcombine.high %v1478, %v1506
    %v1520 = vcombine.low %v1485, %v1513
    %v1521 = vcombine.high %v1485, %v1513
    %v1522 = vlaneseq
    %v1523 = vshrl.u32 %v1522, 7
    %v1524 = vsub.s32 0, %v1523
    %v1525 = vrot.slane %v1514, %v1524
    %v1526 = vlaneseq
    %v1527 = vshrl.u32 %v1526, 7
    %v1528 = vsub.s32 1, %v1527
    %v1529 = vrot.slane %v1514, %v1528
    %v1530 = vlaneseq
    %v1531 = vshrl.u32 %v1530, 7
    %v1532 = vsub.s32 2, %v1531
    %v1533 = vrot.slane %v1514, %v1532
    %v1534 = vlaneseq
    %v1535 = vshrl.u32 %v1534, 7
    %v1536 = vsub.s32 3, %v1535
    %v1537 = vrot.slane %v1514, %v1536
    %v1538 = vlaneseq
    %v1539 = vshrl.u32 %v1538, 7
    %v1540 = vsub.s32 4, %v1539
    %v1541 = vrot.slane %v1514, %v1540
    %v1542 = vlaneseq
    %v1543 = vshrl.u32 %v1542, 7
    %v1544 = vsub.s32 0, %v1543
    %v1545 = vrot.slane %v1518, %v1544
    %v1546 = vlaneseq
    %v1547 = vshrl.u32 %v1546, 7
    %v1548 = vsub.s32 1, %v1547
    %v1549 = vrot.slane %v1518, %v1548
    %v1550 = vlaneseq
    %v1551 = vshrl.u32 %v1550, 7
    %v1552 = vsub.s32 2, %v1551
    %v1553 = vrot.slane %v1518, %v1552
    %v1554 = vlaneseq
    %v1555 = vshrl.u32 %v1554, 7
    %v1556 = vsub.s32 3, %v1555
    %v1557 = vrot.slane %v1518, %v1556
    %v1558 = vlaneseq
    %v1559 = vshrl.u32 %v1558, 7
    %v1560 = vsub.s32 4, %v1559
    %v1561 = vrot.slane %v1518, %v1560
    %v1562 = vlaneseq
    %v1563 = vshrl.u32 %v1562, 7
    %v1564 = vsub.s32 0, %v1563
    %v1565 = vrot.slane %v1515, %v1564
    %v1566 = vlaneseq
    %v1567 = vshrl.u32 %v1566, 7
    %v1568 = vsub.s32 1, %v1567
    %v1569 = vrot.slane %v1515, %v1568
    %v1570 = vlaneseq
    %v1571 = vshrl.u32 %v1570, 7
    %v1572 = vsub.s32 2, %v1571
    %v1573 = vrot.slane %v1515, %v1572
    %v1574 = vlaneseq
    %v1575 = vshrl.u32 %v1574, 7
    %v1576 = vsub.s32 3, %v1575
    %v1577 = vrot.slane %v1515, %v1576
    %v1578 = vlaneseq
    %v1579 = vshrl.u32 %v1578, 7
    %v1580 = vsub.s32 4, %v1579
    %v1581 = vrot.slane %v1515, %v1580
    %v1582 = vlaneseq
    %v1583 = vshrl.u32 %v1582, 7
    %v1584 = vsub.s32 0, %v1583
    %v1585 = vrot.slane %v1519, %v1584
    %v1586 = vlaneseq
    %v1587 = vshrl.u32 %v1586, 7
    %v1588 = vsub.s32 1, %v1587
    %v1589 = vrot.slane %v1519, %v1588
    %v1590 = vlaneseq
    %v1591 = vshrl.u32 %v1590, 7
    %v1592 = vsub.s32 2, %v1591
    %v1593 = vrot.slane %v1519, %v1592
    %v1594 = vlaneseq
    %v1595 = vshrl.u32 %v1594, 7
    %v1596 = vsub.s32 3, %v1595
    %v1597 = vrot.slane %v1519, %v1596
    %v1598 = vlaneseq
    %v1599 = vshrl.u32 %v1598, 7
    %v1600 = vsub.s32 4, %v1599
    %v1601 = vrot.slane %v1519, %v1600
    %v1602 = vlaneseq
    %v1603 = vshrl.u32 %v1602, 7
    %v1604 = vsub.s32 0, %v1603
    %v1605 = vrot.slane %v1516, %v1604
    %v1606 = vlaneseq
    %v1607 = vshrl.u32 %v1606, 7
    %v1608 = vsub.s32 1, %v1607
    %v1609 = vrot.slane %v1516, %v1608
    %v1610 = vlaneseq
    %v1611 = vshrl.u32 %v1610, 7
    %v1612 = vsub.s32 2, %v1611
    %v1613 = vrot.slane %v1516, %v1612
    %v1614 = vlaneseq
    %v1615 = vshrl.u32 %v1614, 7
    %v1616 = vsub.s32 3, %v1615
    %v1617 = vrot.slane %v1516, %v1616
    %v1618 = vlaneseq
    %v1619 = vshrl.u32 %v1618, 7
    %v1620 = vsub.s32 4, %v1619
    %v1621 = vrot.slane %v1516, %v1620
    %v1622 = vlaneseq
    %v1623 = vshrl.u32 %v1622, 7
    %v1624 = vsub.s32 0, %v1623
    %v1625 = vrot.slane %v1520, %v1624
    %v1626 = vlaneseq
    %v1627 = vshrl.u32 %v1626, 7
    %v1628 = vsub.s32 1, %v1627
    %v1629 = vrot.slane %v1520, %v1628
    %v1630 = vlaneseq
    %v1631 = vshrl.u32 %v1630, 7
    %v1632 = vsub.s32 2, %v1631
    %v1633 = vrot.slane %v1520, %v1632
    %v1634 = vlaneseq
    %v1635 = vshrl.u32 %v1634, 7
    %v1636 = vsub.s32 3, %v1635
    %v1637 = vrot.slane %v1520, %v1636
    %v1638 = vlaneseq
    %v1639 = vshrl.u32 %v1638, 7
    %v1640 = vsub.s32 4, %v1639
    %v1641 = vrot.slane %v1520, %v1640
    %v1642 = vlaneseq
    %v1643 = vshrl.u32 %v1642, 7
    %v1644 = vsub.s32 0, %v1643
    %v1645 = vrot.slane %v1517, %v1644
    %v1646 = vlaneseq
    %v1647 = vshrl.u32 %v1646, 7
    %v1648 = vsub.s32 1, %v1647
    %v1649 = vrot.slane %v1517, %v1648
    %v1650 = vlaneseq
    %v1651 = vshrl.u32 %v1650, 7
    %v1652 = vsub.s32 2, %v1651
    %v1653 = vrot.slane %v1517, %v1652
    %v1654 = vlaneseq
    %v1655 = vshrl.u32 %v1654, 7
    %v1656 = vsub.s32 3, %v1655
    %v1657 = vrot.slane %v1517, %v1656
    %v1658 = vlaneseq
    %v1659 = vshrl.u32 %v1658, 7
    %v1660 = vsub.s32 4, %v1659
    %v1661 = vrot.slane %v1517, %v1660
    %v1662 = vlaneseq
    %v1663 = vshrl.u32 %v1662, 7
    %v1664 = vsub.s32 0, %v1663
    %v1665 = vrot.slane %v1521, %v1664
    %v1666 = vlaneseq
    %v1667 = vshrl.u32 %v1666, 7
    %v1668 = vsub.s32 1, %v1667
    %v1669 = vrot.slane %v1521, %v1668
    %v1670 = vlaneseq
    %v1671 = vshrl.u32 %v1670, 7
    %v1672 = vsub.s32 2, %v1671
    %v1673 = vrot.slane %v1521, %v1672
    %v1674 = vlaneseq
    %v1675 = vshrl.u32 %v1674, 7
    %v1676 = vsub.s32 3, %v1675
    %v1677 = vrot.slane %v1521, %v1676
    %v1678 = vlaneseq
    %v1679 = vshrl.u32 %v1678, 7
    %v1680 = vsub.s32 4, %v1679
    %v1681 = vrot.slane %v1521, %v1680
    %v1722 = vmul.f32 %v1525, %v217
    %v1723 = vmul.f32 %v1529, %v586
    %v1724 = vmul.f32 %v1533, %v218
    %v1725 = vmul.f32 %v1537, %v587
    %v1726 = vmul.f32 %v1541, %v219
    %v1727 = vmul.f32 %v1545, %v220
    %v1728 = vmul.f32 %v1549, %v588
    %v1729 = vmul.f32 %v1553, %v221
    %v1730 = vmul.f32 %v1557, %v589
    %v1731 = vmul.f32 %v1561, %v222
    %v1732 = vmul.f32 %v1565, %v223
    %v1733 = vmul.f32 %v1569, %v590
    %v1734 = vmul.f32 %v1573, %v224
    %v1735 = vmul.f32 %v1577, %v591
    %v1736 = vmul.f32 %v1581, %v225
    %v1737 = vmul.f32 %v1585, %v226
    %v1738 = vmul.f32 %v1589, %v592
    %v1739 = vmul.f32 %v1593, %v227
    %v1740 = vmul.f32 %v1597, %v593
    %v1741 = vmul.f32 %v1601, %v228
    %v1742 = vmul.f32 %v1605, %v229
    %v1743 = vmul.f32 %v1609, %v594
    %v1744 = vmul.f32 %v1613, %v230
    %v1745 = vmul.f32 %v1617, %v595
    %v1746 = vmul.f32 %v1621, %v231
    %v1747 = vmul.f32 %v1625, %v232
    %v1748 = vmul.f32 %v1629, %v596
    %v1749 = vmul.f32 %v1633, %v233
    %v1750 = vmul.f32 %v1637, %v597
    %v1751 = vmul.f32 %v1641, %v234
    %v1752 = vmul.f32 %v1645, %v235
    %v1753 = vmul.f32 %v1649, %v598
    %v1754 = vmul.f32 %v1653, %v236
    %v1755 = vmul.f32 %v1657, %v599
    %v1756 = vmul.f32 %v1661, %v237
    %v1757 = vmul.f32 %v1665, %v238
    %v1758 = vmul.f32 %v1669, %v600
    %v1759 = vmul.f32 %v1673, %v239
    %v1760 = vmul.f32 %v1677, %v601
    %v1761 = vmul.f32 %v1681, %v240
    %v1762 = vsel %vm658, %v1722, 0.0
    %v1763 = vsel %vm658, %v1723, 0.0
    %v1764 = vadd.f32 %v1762, %v1763
    %v1765 = vsel %vm658, %v1724, 0.0
    %v1766 = vadd.f32 %v1764, %v1765
    %v1767 = vsel %vm658, %v1725, 0.0
    %v1768 = vadd.f32 %v1766, %v1767
    %v1769 = vsel %vm658, %v1726, 0.0
    %v1770 = vadd.f32 %v1768, %v1769
    %1771 = vadd.xlane.f32.xlu0 %v1770
    %v1772 = vpop.xlane.xlu0 %1771
    %v1773 = vsel %vm658, %v1727, 0.0
    %v1774 = vsel %vm658, %v1728, 0.0
    %v1775 = vadd.f32 %v1773, %v1774
    %v1776 = vsel %vm658, %v1729, 0.0
    %v1777 = vadd.f32 %v1775, %v1776
    %v1778 = vsel %vm658, %v1730, 0.0
    %v1779 = vadd.f32 %v1777, %v1778
    %v1780 = vsel %vm658, %v1731, 0.0
    %v1781 = vadd.f32 %v1779, %v1780
    %1782 = vadd.xlane.f32.xlu0 %v1781
    %v1783 = vpop.xlane.xlu0 %1782
    %v1784 = vsel %vm658, %v1732, 0.0
    %v1785 = vsel %vm658, %v1733, 0.0
    %v1786 = vadd.f32 %v1784, %v1785
    %v1787 = vsel %vm658, %v1734, 0.0
    %v1788 = vadd.f32 %v1786, %v1787
    %v1789 = vsel %vm658, %v1735, 0.0
    %v1790 = vadd.f32 %v1788, %v1789
    %v1791 = vsel %vm658, %v1736, 0.0
    %v1792 = vadd.f32 %v1790, %v1791
    %1793 = vadd.xlane.f32.xlu0 %v1792
    %v1794 = vpop.xlane.xlu0 %1793
    %v1795 = vsel %vm658, %v1737, 0.0
    %v1796 = vsel %vm658, %v1738, 0.0
    %v1797 = vadd.f32 %v1795, %v1796
    %v1798 = vsel %vm658, %v1739, 0.0
    %v1799 = vadd.f32 %v1797, %v1798
    %v1800 = vsel %vm658, %v1740, 0.0
    %v1801 = vadd.f32 %v1799, %v1800
    %v1802 = vsel %vm658, %v1741, 0.0
    %v1803 = vadd.f32 %v1801, %v1802
    %1804 = vadd.xlane.f32.xlu0 %v1803
    %v1805 = vpop.xlane.xlu0 %1804
    %v1806 = vsel %vm658, %v1742, 0.0
    %v1807 = vsel %vm658, %v1743, 0.0
    %v1808 = vadd.f32 %v1806, %v1807
    %v1809 = vsel %vm658, %v1744, 0.0
    %v1810 = vadd.f32 %v1808, %v1809
    %v1811 = vsel %vm658, %v1745, 0.0
    %v1812 = vadd.f32 %v1810, %v1811
    %v1813 = vsel %vm658, %v1746, 0.0
    %v1814 = vadd.f32 %v1812, %v1813
    %1815 = vadd.xlane.f32.xlu0 %v1814
    %v1816 = vpop.xlane.xlu0 %1815
    %v1817 = vsel %vm658, %v1747, 0.0
    %v1818 = vsel %vm658, %v1748, 0.0
    %v1819 = vadd.f32 %v1817, %v1818
    %v1820 = vsel %vm658, %v1749, 0.0
    %v1821 = vadd.f32 %v1819, %v1820
    %v1822 = vsel %vm658, %v1750, 0.0
    %v1823 = vadd.f32 %v1821, %v1822
    %v1824 = vsel %vm658, %v1751, 0.0
    %v1825 = vadd.f32 %v1823, %v1824
    %1826 = vadd.xlane.f32.xlu0 %v1825
    %v1827 = vpop.xlane.xlu0 %1826
    %v1828 = vsel %vm658, %v1752, 0.0
    %v1829 = vsel %vm658, %v1753, 0.0
    %v1830 = vadd.f32 %v1828, %v1829
    %v1831 = vsel %vm658, %v1754, 0.0
    %v1832 = vadd.f32 %v1830, %v1831
    %v1833 = vsel %vm658, %v1755, 0.0
    %v1834 = vadd.f32 %v1832, %v1833
    %v1835 = vsel %vm658, %v1756, 0.0
    %v1836 = vadd.f32 %v1834, %v1835
    %1837 = vadd.xlane.f32.xlu0 %v1836
    %v1838 = vpop.xlane.xlu0 %1837
    %v1839 = vsel %vm658, %v1757, 0.0
    %v1840 = vsel %vm658, %v1758, 0.0
    %v1841 = vadd.f32 %v1839, %v1840
    %v1842 = vsel %vm658, %v1759, 0.0
    %v1843 = vadd.f32 %v1841, %v1842
    %v1844 = vsel %vm658, %v1760, 0.0
    %v1845 = vadd.f32 %v1843, %v1844
    %v1846 = vsel %vm658, %v1761, 0.0
    %v1847 = vadd.f32 %v1845, %v1846
    %1848 = vadd.xlane.f32.xlu0 %v1847
    %v1849 = vpop.xlane.xlu0 %1848
    %v1850 = vadd.f32 %v1772, %v754
    %v1851 = vadd.f32 %v1783, %v761
    %v1852 = vadd.f32 %v1794, %v768
    %v1853 = vadd.f32 %v1805, %v775
    %v1854 = vadd.f32 %v1816, %v782
    %v1855 = vadd.f32 %v1827, %v789
    %v1856 = vadd.f32 %v1838, %v796
    %v1857 = vadd.f32 %v1849, %v803
    %v1858 = vmul.f32 %v1850, %v827
    %v1859 = vmul.f32 %v1851, %v827
    %v1860 = vmul.f32 %v1852, %v827
    %v1861 = vmul.f32 %v1853, %v827
    %v1862 = vmul.f32 %v1854, %v827
    %v1863 = vmul.f32 %v1855, %v827
    %v1864 = vmul.f32 %v1856, %v827
    %v1865 = vmul.f32 %v1857, %v827
    %v1867 = vlaneseq
    %v1868 = vshrl.u32 %v1867, 7
    %v1869 = vsub.s32 0, %v1868
    %v1870 = vrot.slane %v1399, %v1869
    %1872 = vbcast.lane.b32.xlu0 %v1870, 256
    %v1873 = vpop.permute.xlu0 %1872
    %v1874 = vlaneseq
    %v1875 = vshrl.u32 %v1874, 7
    %v1876 = vsub.s32 1, %v1875
    %v1877 = vrot.slane %v1399, %v1876
    %1879 = vbcast.lane.b32.xlu0 %v1877, 256
    %v1880 = vpop.permute.xlu0 %1879
    %v1881 = vlaneseq
    %v1882 = vshrl.u32 %v1881, 7
    %v1883 = vsub.s32 2, %v1882
    %v1884 = vrot.slane %v1399, %v1883
    %1886 = vbcast.lane.b32.xlu0 %v1884, 256
    %v1887 = vpop.permute.xlu0 %1886
    %v1888 = vlaneseq
    %v1889 = vshrl.u32 %v1888, 7
    %v1890 = vsub.s32 3, %v1889
    %v1891 = vrot.slane %v1399, %v1890
    %1893 = vbcast.lane.b32.xlu0 %v1891, 256
    %v1894 = vpop.permute.xlu0 %1893
    %v1895 = vlaneseq
    %v1896 = vshrl.u32 %v1895, 7
    %v1897 = vsub.s32 4, %v1896
    %v1898 = vrot.slane %v1399, %v1897
    %1900 = vbcast.lane.b32.xlu0 %v1898, 256
    %v1901 = vpop.permute.xlu0 %1900
    %v1902 = vlaneseq
    %v1903 = vshrl.u32 %v1902, 7
    %v1904 = vsub.s32 5, %v1903
    %v1905 = vrot.slane %v1399, %v1904
    %1907 = vbcast.lane.b32.xlu0 %v1905, 256
    %v1908 = vpop.permute.xlu0 %1907
    %v1909 = vlaneseq
    %v1910 = vshrl.u32 %v1909, 7
    %v1911 = vsub.s32 6, %v1910
    %v1912 = vrot.slane %v1399, %v1911
    %1914 = vbcast.lane.b32.xlu0 %v1912, 256
    %v1915 = vpop.permute.xlu0 %1914
    %v1916 = vlaneseq
    %v1917 = vshrl.u32 %v1916, 7
    %v1918 = vsub.s32 7, %v1917
    %v1919 = vrot.slane %v1399, %v1918
    %1921 = vbcast.lane.b32.xlu0 %v1919, 256
    %v1922 = vpop.permute.xlu0 %1921
    %v1931 = vadd.f32 %v1858, %v1873
    %v1932 = vadd.f32 %v1859, %v1880
    %v1933 = vadd.f32 %v1860, %v1887
    %v1934 = vadd.f32 %v1861, %v1894
    %v1935 = vadd.f32 %v1862, %v1901
    %v1936 = vadd.f32 %v1863, %v1908
    %v1937 = vadd.f32 %v1864, %v1915
    %v1938 = vadd.f32 %v1865, %v1922
    %1947 = vset.pattern.permute.xlu0 0
    %1948 = vperm.xlu0 %1947, %v1931
    %v1949 = vpop.permute.xlu0 %1948
    %1950 = vset.pattern.permute.xlu0 0
    %1951 = vperm.xlu0 %1950, %v1932
    %v1952 = vpop.permute.xlu0 %1951
    %1953 = vset.pattern.permute.xlu0 0
    %1954 = vperm.xlu0 %1953, %v1933
    %v1955 = vpop.permute.xlu0 %1954
    %1956 = vset.pattern.permute.xlu0 0
    %1957 = vperm.xlu0 %1956, %v1934
    %v1958 = vpop.permute.xlu0 %1957
    %1959 = vset.pattern.permute.xlu0 0
    %1960 = vperm.xlu0 %1959, %v1935
    %v1961 = vpop.permute.xlu0 %1960
    %1962 = vset.pattern.permute.xlu0 0
    %1963 = vperm.xlu0 %1962, %v1936
    %v1964 = vpop.permute.xlu0 %1963
    %1965 = vset.pattern.permute.xlu0 0
    %1966 = vperm.xlu0 %1965, %v1937
    %v1967 = vpop.permute.xlu0 %1966
    %1968 = vset.pattern.permute.xlu0 0
    %1969 = vperm.xlu0 %1968, %v1938
    %v1970 = vpop.permute.xlu0 %1969
    %v1971 = vlaneseq
    %v1972 = vshrl.u32 %v1971, 7
    %v1973 = vsub.s32 %v943, %v1972
    %v1974 = vrot.slane %v1949, %v1973
    %v1975 = vlaneseq
    %v1976 = vshrl.u32 %v1975, 7
    %v1977 = vsub.s32 %v943, %v1976
    %v1978 = vrot.slane %v1952, %v1977
    %v1979 = vlaneseq
    %v1980 = vshrl.u32 %v1979, 7
    %v1981 = vsub.s32 %v943, %v1980
    %v1982 = vrot.slane %v1955, %v1981
    %v1983 = vlaneseq
    %v1984 = vshrl.u32 %v1983, 7
    %v1985 = vsub.s32 %v943, %v1984
    %v1986 = vrot.slane %v1958, %v1985
    %v1987 = vlaneseq
    %v1988 = vshrl.u32 %v1987, 7
    %v1989 = vsub.s32 %v943, %v1988
    %v1990 = vrot.slane %v1961, %v1989
    %v1991 = vlaneseq
    %v1992 = vshrl.u32 %v1991, 7
    %v1993 = vsub.s32 %v943, %v1992
    %v1994 = vrot.slane %v1964, %v1993
    %v1995 = vlaneseq
    %v1996 = vshrl.u32 %v1995, 7
    %v1997 = vsub.s32 %v943, %v1996
    %v1998 = vrot.slane %v1967, %v1997
    %v1999 = vlaneseq
    %v2000 = vshrl.u32 %v1999, 7
    %v2001 = vsub.s32 %v943, %v2000
    %v2002 = vrot.slane %v1970, %v2001
    %v2003 = vsel %vm976, %v1978, %v1974
    %v2004 = vsel %vm978, %v1982, %v2003
    %v2005 = vsel %vm980, %v1986, %v2004
    %v2006 = vsel %vm982, %v1990, %v2005
    %v2007 = vsel %vm984, %v1994, %v2006
    %v2008 = vsel %vm986, %v1998, %v2007
    %v2009 = vsel %vm988, %v2002, %v2008
    %s2011 = scalar_lea.vmem %s9, 8
    %2012 = vst.msk [vmem:[%s2011] sm:$0xff] %vm991, %v2009
    %s2013 = scalar_lea.vmem %s1, 80
    %v2014 = vld [vmem:[%s2013] sm:$0xff]
    %v2015 = vld [vmem:[%s2013 + $0x8] sm:$0xff]
    %v2016 = vld [vmem:[%s2013 + $0x10] sm:$0xff]
    %v2017 = vld [vmem:[%s2013 + $0x18] sm:$0xff]
    %v2018 = vld [vmem:[%s2013 + $0x20] sm:$0xff]
    %2019 = vmatprep.subr.mxu0 %v48
    %2020 = vmatpush1.msra.mxu0 %v47
    %2021 = vmatprep.subr.mxu0 %v50
    %2022 = vmatpush1.msra.mxu0 %v49
    %2023 = vmatprep.subr.mxu0 %v52
    %2024 = vmatpush1.msra.mxu0 %v51
    %2025 = vmatprep.subr.mxu0 %v54
    %2026 = vmatpush1.msra.mxu0 %v53
    %2027 = vmatprep.subr.mxu0 %v56
    %2028 = vmatpush1.msra.mxu0 %v55
    %2029 = vmatprep.subr.mxu0 %v58
    %2030 = vmatpush1.msra.mxu0 %v57
    %2031 = vmatprep.subr.mxu0 %v60
    %2032 = vmatpush1.msra.mxu0 %v59
    %2033 = vmatprep.subr.mxu0 %v62
    %2034 = vmatpush1.msra.mxu0 %v61
    %2035 = vmatprep.subr.mxu0 %v64
    %2036 = vmatpush1.msra.mxu0 %v63
    %2037 = vmatprep.subr.mxu0 %v66
    %2038 = vmatpush1.msra.mxu0 %v65
    %2039 = vmatprep.subr.mxu0 %v68
    %2040 = vmatpush1.msra.mxu0 %v67
    %2041 = vmatprep.subr.mxu0 %v70
    %2042 = vmatpush1.msra.mxu0 %v69
    %2043 = vmatprep.subr.mxu0 %v72
    %2044 = vmatpush1.msra.mxu0 %v71
    %2045 = vmatprep.subr.mxu0 %v74
    %2046 = vmatpush1.msra.mxu0 %v73
    %2047 = vmatprep.subr.mxu0 %v76
    %2048 = vmatpush1.msra.mxu0 %v75
    %2049 = vmatprep.subr.mxu0 %v78
    %2050 = vmatpush1.msra.mxu0 %v77
    %2051 = vmatprep.subr.mxu0 %v80
    %2052 = vmatpush1.msra.mxu0 %v79
    %2053 = vmatprep.subr.mxu0 %v82
    %2054 = vmatpush1.msra.mxu0 %v81
    %2055 = vmatprep.subr.mxu0 %v84
    %2056 = vmatpush1.msra.mxu0 %v83
    %2057 = vmatprep.subr.mxu0 %v86
    %2058 = vmatpush1.msra.mxu0 %v85
    %2059 = vmatprep.subr.mxu0 %v88
    %2060 = vmatpush1.msra.mxu0 %v87
    %2061 = vmatprep.subr.mxu0 %v90
    %2062 = vmatpush1.msra.mxu0 %v89
    %2063 = vmatprep.subr.mxu0 %v92
    %2064 = vmatpush1.msra.mxu0 %v91
    %2065 = vmatprep.subr.mxu0 %v94
    %2066 = vmatpush1.msra.mxu0 %v93
    %2067 = vmatprep.subr.mxu0 %v96
    %2068 = vmatpush1.msra.mxu0 %v95
    %2069 = vmatprep.subr.mxu0 %v98
    %2070 = vmatpush1.msra.mxu0 %v97
    %2071 = vmatprep.subr.mxu0 %v100
    %2072 = vmatpush1.msra.mxu0 %v99
    %2073 = vmatprep.subr.mxu0 %v102
    %2074 = vmatpush1.msra.mxu0 %v101
    %2075 = vmatprep.subr.mxu0 %v104
    %2076 = vmatpush1.msra.mxu0 %v103
    %2077 = vmatprep.subr.mxu0 %v106
    %2078 = vmatpush1.msra.mxu0 %v105
    %2079 = vmatprep.subr.mxu0 %v108
    %2080 = vmatpush1.msra.mxu0 %v107
    %2081 = vmatprep.subr.mxu0 %v110
    %2082 = vmatpush1.msra.mxu0 %v109
    %2083 = vmatprep.mubr.f32.mxu0 %v1274
    %2084 = vmatmul.mubr.f32.gmra.mrb[0].mxu0 %v1273
    %v2085 = vpop.f32.mrb[0].mxu0
    %v2086 = vadd.f32 %v207, %v2085
    %v2087 = vpop.f32.mrb[0].mxu0
    %v2088 = vadd.f32 %v208, %v2087
    %2089 = vmatprep.mubr.f32.mxu0 %v2015
    %2090 = vmatmul.mubr.f32.gmra.mrb[0].mxu0 %v2014
    %v2091 = vpop.f32.mrb[0].mxu0
    %v2092 = vadd.f32 %v209, %v2091
    %v2093 = vpop.f32.mrb[0].mxu0
    %v2094 = vadd.f32 %v210, %v2093
    %2095 = vdwg.mxu0
    %2096 = vmatprep.subr.mxu0 %v112
    %2097 = vmatpush1.msra.mxu0 %v111
    %2098 = vmatprep.subr.mxu0 %v114
    %2099 = vmatpush1.msra.mxu0 %v113
    %2100 = vmatprep.subr.mxu0 %v116
    %2101 = vmatpush1.msra.mxu0 %v115
    %2102 = vmatprep.subr.mxu0 %v118
    %2103 = vmatpush1.msra.mxu0 %v117
    %2104 = vmatprep.subr.mxu0 %v120
    %2105 = vmatpush1.msra.mxu0 %v119
    %2106 = vmatprep.subr.mxu0 %v122
    %2107 = vmatpush1.msra.mxu0 %v121
    %2108 = vmatprep.subr.mxu0 %v124
    %2109 = vmatpush1.msra.mxu0 %v123
    %2110 = vmatprep.subr.mxu0 %v126
    %2111 = vmatpush1.msra.mxu0 %v125
    %2112 = vmatprep.subr.mxu0 %v128
    %2113 = vmatpush1.msra.mxu0 %v127
    %2114 = vmatprep.subr.mxu0 %v130
    %2115 = vmatpush1.msra.mxu0 %v129
    %2116 = vmatprep.subr.mxu0 %v132
    %2117 = vmatpush1.msra.mxu0 %v131
    %2118 = vmatprep.subr.mxu0 %v134
    %2119 = vmatpush1.msra.mxu0 %v133
    %2120 = vmatprep.subr.mxu0 %v136
    %2121 = vmatpush1.msra.mxu0 %v135
    %2122 = vmatprep.subr.mxu0 %v138
    %2123 = vmatpush1.msra.mxu0 %v137
    %2124 = vmatprep.subr.mxu0 %v140
    %2125 = vmatpush1.msra.mxu0 %v139
    %2126 = vmatprep.subr.mxu0 %v142
    %2127 = vmatpush1.msra.mxu0 %v141
    %2128 = vmatprep.subr.mxu0 %v144
    %2129 = vmatpush1.msra.mxu0 %v143
    %2130 = vmatprep.subr.mxu0 %v146
    %2131 = vmatpush1.msra.mxu0 %v145
    %2132 = vmatprep.subr.mxu0 %v148
    %2133 = vmatpush1.msra.mxu0 %v147
    %2134 = vmatprep.subr.mxu0 %v150
    %2135 = vmatpush1.msra.mxu0 %v149
    %2136 = vmatprep.subr.mxu0 %v152
    %2137 = vmatpush1.msra.mxu0 %v151
    %2138 = vmatprep.subr.mxu0 %v154
    %2139 = vmatpush1.msra.mxu0 %v153
    %2140 = vmatprep.subr.mxu0 %v156
    %2141 = vmatpush1.msra.mxu0 %v155
    %2142 = vmatprep.subr.mxu0 %v158
    %2143 = vmatpush1.msra.mxu0 %v157
    %2144 = vmatprep.subr.mxu0 %v160
    %2145 = vmatpush1.msra.mxu0 %v159
    %2146 = vmatprep.subr.mxu0 %v162
    %2147 = vmatpush1.msra.mxu0 %v161
    %2148 = vmatprep.subr.mxu0 %v164
    %2149 = vmatpush1.msra.mxu0 %v163
    %2150 = vmatprep.subr.mxu0 %v166
    %2151 = vmatpush1.msra.mxu0 %v165
    %2152 = vmatprep.subr.mxu0 %v168
    %2153 = vmatpush1.msra.mxu0 %v167
    %2154 = vmatprep.subr.mxu0 %v170
    %2155 = vmatpush1.msra.mxu0 %v169
    %2156 = vmatprep.subr.mxu0 %v172
    %2157 = vmatpush1.msra.mxu0 %v171
    %2158 = vmatprep.subr.mxu0 %v174
    %2159 = vmatpush1.msra.mxu0 %v173
    %2160 = vmatprep.mubr.f32.mxu0 %v1276
    %2161 = vmatmul.mubr.f32.gmra.mrb[0].mxu0 %v1275
    %v2162 = vpop.f32.mrb[0].mxu0
    %v2163 = vadd.f32 %v2086, %v2162
    %v2164 = vpop.f32.mrb[0].mxu0
    %v2165 = vadd.f32 %v2088, %v2164
    %2166 = vmatprep.mubr.f32.mxu0 %v2017
    %2167 = vmatmul.mubr.f32.gmra.mrb[0].mxu0 %v2016
    %v2168 = vpop.f32.mrb[0].mxu0
    %v2169 = vadd.f32 %v2092, %v2168
    %v2170 = vpop.f32.mrb[0].mxu0
    %v2171 = vadd.f32 %v2094, %v2170
    %2172 = vdwg.mxu0
    %2173 = vmatprep.subr.mxu0 %v176
    %2174 = vmatpush1.msra.mxu0 %v175
    %2175 = vmatprep.subr.mxu0 %v178
    %2176 = vmatpush1.msra.mxu0 %v177
    %2177 = vmatprep.subr.mxu0 %v180
    %2178 = vmatpush1.msra.mxu0 %v179
    %2179 = vmatprep.subr.mxu0 %v182
    %2180 = vmatpush1.msra.mxu0 %v181
    %2181 = vmatprep.subr.mxu0 %v184
    %2182 = vmatpush1.msra.mxu0 %v183
    %2183 = vmatprep.subr.mxu0 %v186
    %2184 = vmatpush1.msra.mxu0 %v185
    %2185 = vmatprep.subr.mxu0 %v188
    %2186 = vmatpush1.msra.mxu0 %v187
    %2187 = vmatprep.subr.mxu0 %v190
    %2188 = vmatpush1.msra.mxu0 %v189
    %2189 = vmatprep.subr.mxu0 %v192
    %2190 = vmatpush1.msra.mxu0 %v191
    %2191 = vmatprep.subr.mxu0 %v194
    %2192 = vmatpush1.msra.mxu0 %v193
    %2193 = vmatprep.subr.mxu0 %v196
    %2194 = vmatpush1.msra.mxu0 %v195
    %2195 = vmatprep.subr.mxu0 %v198
    %2196 = vmatpush1.msra.mxu0 %v197
    %2197 = vmatprep.subr.mxu0 %v200
    %2198 = vmatpush1.msra.mxu0 %v199
    %2199 = vmatprep.subr.mxu0 %v202
    %2200 = vmatpush1.msra.mxu0 %v201
    %2201 = vmatprep.subr.mxu0 %v204
    %2202 = vmatpush1.msra.mxu0 %v203
    %2203 = vmatprep.subr.mxu0 %v206
    %2204 = vmatpush1.msra.mxu0 %v205
    %2205 = vmatprep.subr.mxu0 0.0
    %2206 = vmatpush1.msra.mxu0 0.0
    %2207 = vmatprep.subr.mxu0 0.0
    %2208 = vmatpush1.msra.mxu0 0.0
    %2209 = vmatprep.subr.mxu0 0.0
    %2210 = vmatpush1.msra.mxu0 0.0
    %2211 = vmatprep.subr.mxu0 0.0
    %2212 = vmatpush1.msra.mxu0 0.0
    %2213 = vmatprep.subr.mxu0 0.0
    %2214 = vmatpush1.msra.mxu0 0.0
    %2215 = vmatprep.subr.mxu0 0.0
    %2216 = vmatpush1.msra.mxu0 0.0
    %2217 = vmatprep.subr.mxu0 0.0
    %2218 = vmatpush1.msra.mxu0 0.0
    %2219 = vmatprep.subr.mxu0 0.0
    %2220 = vmatpush1.msra.mxu0 0.0
    %2221 = vmatprep.subr.mxu0 0.0
    %2222 = vmatpush1.msra.mxu0 0.0
    %2223 = vmatprep.subr.mxu0 0.0
    %2224 = vmatpush1.msra.mxu0 0.0
    %2225 = vmatprep.subr.mxu0 0.0
    %2226 = vmatpush1.msra.mxu0 0.0
    %2227 = vmatprep.subr.mxu0 0.0
    %2228 = vmatpush1.msra.mxu0 0.0
    %2229 = vmatprep.subr.mxu0 0.0
    %2230 = vmatpush1.msra.mxu0 0.0
    %2231 = vmatprep.subr.mxu0 0.0
    %2232 = vmatpush1.msra.mxu0 0.0
    %2233 = vmatprep.subr.mxu0 0.0
    %2234 = vmatpush1.msra.mxu0 0.0
    %2235 = vmatprep.subr.mxu0 0.0
    %2236 = vmatpush1.msra.mxu0 0.0
    %2237 = vmatprep.mubr.f32.mxu0 0.0
    %2238 = vmatmul.mubr.f32.gmra.mrb[0].mxu0 %v1277
    %v2239 = vpop.f32.mrb[0].mxu0
    %v2240 = vadd.f32 %v2163, %v2239
    %v2241 = vpop.f32.mrb[0].mxu0
    %v2242 = vadd.f32 %v2165, %v2241
    %2243 = vmatprep.mubr.f32.mxu0 0.0
    %2244 = vmatmul.mubr.f32.gmra.mrb[0].mxu0 %v2018
    %v2245 = vpop.f32.mrb[0].mxu0
    %v2246 = vadd.f32 %v2169, %v2245
    %v2247 = vpop.f32.mrb[0].mxu0
    %v2248 = vadd.f32 %v2171, %v2247
    %2249 = vdwg.mxu0
    %v2250 = vtanh.pop %v2240
    %v2251 = vtanh.pop %v2242
    %v2252 = vtanh.pop %v2246
    %v2253 = vtanh.pop %v2248
    %v2254 = vmul.f32 %v2250, %v211
    %v2255 = vmul.f32 %v2251, %v212
    %v2256 = vmul.f32 %v2252, %v213
    %v2257 = vmul.f32 %v2253, %v214
    %v2258 = vadd.f32 %v2254, %v2255
    %2259 = vadd.xlane.f32.xlu0 %v2258
    %v2260 = vpop.xlane.xlu0 %2259
    %v2261 = vadd.f32 %v2256, %v2257
    %2262 = vadd.xlane.f32.xlu0 %v2261
    %v2263 = vpop.xlane.xlu0 %2262
    %v2264 = vadd.f32 %v2260, %v215
    %v2265 = vadd.f32 %v2263, %v216
    %v2266 = vsub.f32 %v2265, %v2264
    %v2267 = vmul.f32 %v2266, 1.442695
    %v2268 = vpow.pop %v2267
    %v2269 = vadd.f32 %v2268, 1.0
    %v2270 = vrcp.pop %v2269
    %v2271 = vmul.f32 1.0, %v2270
    %v2272 = vsub.f32 1.0, %v2271
    %2274 = vset.pattern.permute.xlu0 0
    %2275 = vperm.xlu0 %2274, %v2271
    %v2276 = vpop.permute.xlu0 %2275
    %v2278 = vmul.f32 %v1273, %v2276
    %v2279 = vmul.f32 %v1274, %v2276
    %v2280 = vmul.f32 %v1275, %v2276
    %v2281 = vmul.f32 %v1276, %v2276
    %v2282 = vmul.f32 %v1277, %v2276
    %2284 = vset.pattern.permute.xlu0 0
    %2285 = vperm.xlu0 %2284, %v2272
    %v2286 = vpop.permute.xlu0 %2285
    %v2288 = vmul.f32 %v2014, %v2286
    %v2289 = vmul.f32 %v2015, %v2286
    %v2290 = vmul.f32 %v2016, %v2286
    %v2291 = vmul.f32 %v2017, %v2286
    %v2292 = vmul.f32 %v2018, %v2286
    %v2293 = vadd.f32 %v2278, %v2288
    %v2294 = vadd.f32 %v2279, %v2289
    %v2295 = vadd.f32 %v2280, %v2290
    %v2296 = vadd.f32 %v2281, %v2291
    %v2297 = vadd.f32 %v2282, %v2292
    %v2298 = vmul.f32 %v1399, %v2276
    %v2299 = vlaneseq
    %v2300 = vshrl.u32 %v2299, 7
    %v2301 = vsub.s32 0, %v2300
    %v2302 = vrot.slane %v2286, %v2301
    %v2303 = vlaneseq
    %v2304 = vshrl.u32 %v2303, 7
    %v2305 = vsub.s32 1, %v2304
    %v2306 = vrot.slane %v2286, %v2305
    %v2307 = vlaneseq
    %v2308 = vshrl.u32 %v2307, 7
    %v2309 = vsub.s32 2, %v2308
    %v2310 = vrot.slane %v2286, %v2309
    %v2311 = vlaneseq
    %v2312 = vshrl.u32 %v2311, 7
    %v2313 = vsub.s32 3, %v2312
    %v2314 = vrot.slane %v2286, %v2313
    %v2315 = vlaneseq
    %v2316 = vshrl.u32 %v2315, 7
    %v2317 = vsub.s32 4, %v2316
    %v2318 = vrot.slane %v2286, %v2317
    %v2319 = vlaneseq
    %v2320 = vshrl.u32 %v2319, 7
    %v2321 = vsub.s32 5, %v2320
    %v2322 = vrot.slane %v2286, %v2321
    %v2323 = vlaneseq
    %v2324 = vshrl.u32 %v2323, 7
    %v2325 = vsub.s32 6, %v2324
    %v2326 = vrot.slane %v2286, %v2325
    %v2327 = vlaneseq
    %v2328 = vshrl.u32 %v2327, 7
    %v2329 = vsub.s32 7, %v2328
    %v2330 = vrot.slane %v2286, %v2329
    %v2339 = vmul.f32 %v1931, %v2302
    %v2340 = vmul.f32 %v1932, %v2306
    %v2341 = vmul.f32 %v1933, %v2310
    %v2342 = vmul.f32 %v1934, %v2314
    %v2343 = vmul.f32 %v1935, %v2318
    %v2344 = vmul.f32 %v1936, %v2322
    %v2345 = vmul.f32 %v1937, %v2326
    %v2346 = vmul.f32 %v1938, %v2330
    %2355 = vset.pattern.permute.xlu0 0
    %2356 = vperm.xlu0 %2355, %v2339
    %v2357 = vpop.permute.xlu0 %2356
    %2358 = vset.pattern.permute.xlu0 0
    %2359 = vperm.xlu0 %2358, %v2340
    %v2360 = vpop.permute.xlu0 %2359
    %2361 = vset.pattern.permute.xlu0 0
    %2362 = vperm.xlu0 %2361, %v2341
    %v2363 = vpop.permute.xlu0 %2362
    %2364 = vset.pattern.permute.xlu0 0
    %2365 = vperm.xlu0 %2364, %v2342
    %v2366 = vpop.permute.xlu0 %2365
    %2367 = vset.pattern.permute.xlu0 0
    %2368 = vperm.xlu0 %2367, %v2343
    %v2369 = vpop.permute.xlu0 %2368
    %2370 = vset.pattern.permute.xlu0 0
    %2371 = vperm.xlu0 %2370, %v2344
    %v2372 = vpop.permute.xlu0 %2371
    %2373 = vset.pattern.permute.xlu0 0
    %2374 = vperm.xlu0 %2373, %v2345
    %v2375 = vpop.permute.xlu0 %2374
    %2376 = vset.pattern.permute.xlu0 0
    %2377 = vperm.xlu0 %2376, %v2346
    %v2378 = vpop.permute.xlu0 %2377
    %v2379 = vlaneseq
    %v2380 = vshrl.u32 %v2379, 7
    %v2381 = vsub.s32 %v943, %v2380
    %v2382 = vrot.slane %v2357, %v2381
    %v2383 = vlaneseq
    %v2384 = vshrl.u32 %v2383, 7
    %v2385 = vsub.s32 %v943, %v2384
    %v2386 = vrot.slane %v2360, %v2385
    %v2387 = vlaneseq
    %v2388 = vshrl.u32 %v2387, 7
    %v2389 = vsub.s32 %v943, %v2388
    %v2390 = vrot.slane %v2363, %v2389
    %v2391 = vlaneseq
    %v2392 = vshrl.u32 %v2391, 7
    %v2393 = vsub.s32 %v943, %v2392
    %v2394 = vrot.slane %v2366, %v2393
    %v2395 = vlaneseq
    %v2396 = vshrl.u32 %v2395, 7
    %v2397 = vsub.s32 %v943, %v2396
    %v2398 = vrot.slane %v2369, %v2397
    %v2399 = vlaneseq
    %v2400 = vshrl.u32 %v2399, 7
    %v2401 = vsub.s32 %v943, %v2400
    %v2402 = vrot.slane %v2372, %v2401
    %v2403 = vlaneseq
    %v2404 = vshrl.u32 %v2403, 7
    %v2405 = vsub.s32 %v943, %v2404
    %v2406 = vrot.slane %v2375, %v2405
    %v2407 = vlaneseq
    %v2408 = vshrl.u32 %v2407, 7
    %v2409 = vsub.s32 %v943, %v2408
    %v2410 = vrot.slane %v2378, %v2409
    %v2411 = vsel %vm976, %v2386, %v2382
    %v2412 = vsel %vm978, %v2390, %v2411
    %v2413 = vsel %vm980, %v2394, %v2412
    %v2414 = vsel %vm982, %v2398, %v2413
    %v2415 = vsel %vm984, %v2402, %v2414
    %v2416 = vsel %vm986, %v2406, %v2415
    %v2417 = vsel %vm988, %v2410, %v2416
    %v2419 = vadd.f32 %v2298, %v2417
    %v2425 = vcombine.low %v2293, %v2294
    %v2426 = vcombine.high %v2293, %v2294
    %v2427 = vcombine.low %v2295, %v2296
    %v2428 = vcombine.high %v2295, %v2296
    %v2429 = vcombine.high %v2297, %v2297
    %v2431 = vunpack.c.l.s4 1966171168
    %v2432 = vunpack.c.0.s8 %v2431
    %v2433 = vlaneseq
    %v2434 = vshrl.u32 %v2433, 7
    %v2435 = vsub.s32 %v2432, %v2434
    %v2436 = vrot.slane %v2425, %v2435
    %v2438 = vunpack.c.l.s4 1966171168
    %v2439 = vunpack.c.0.s8 %v2438
    %v2440 = vlaneseq
    %v2441 = vshrl.u32 %v2440, 7
    %v2442 = vsub.s32 %v2439, %v2441
    %v2443 = vrot.slane %v2426, %v2442
    %v2445 = vunpack.c.l.s4 1966171168
    %v2446 = vunpack.c.0.s8 %v2445
    %v2447 = vlaneseq
    %v2448 = vshrl.u32 %v2447, 7
    %v2449 = vsub.s32 %v2446, %v2448
    %v2450 = vrot.slane %v2427, %v2449
    %v2452 = vunpack.c.l.s4 1966171168
    %v2453 = vunpack.c.0.s8 %v2452
    %v2454 = vlaneseq
    %v2455 = vshrl.u32 %v2454, 7
    %v2456 = vsub.s32 %v2453, %v2455
    %v2457 = vrot.slane %v2428, %v2456
    %v2459 = vunpack.c.l.s4 1966171168
    %v2460 = vunpack.c.0.s8 %v2459
    %v2461 = vlaneseq
    %v2462 = vshrl.u32 %v2461, 7
    %v2463 = vsub.s32 %v2460, %v2462
    %v2464 = vrot.slane %v2297, %v2463
    %v2466 = vunpack.c.l.s4 1966171168
    %v2467 = vunpack.c.0.s8 %v2466
    %v2468 = vlaneseq
    %v2469 = vshrl.u32 %v2468, 7
    %v2470 = vsub.s32 %v2467, %v2469
    %v2471 = vrot.slane %v2429, %v2470
    %v2472 = vcombine.low %v2436, %v2450
    %v2473 = vcombine.high %v2436, %v2450
    %v2474 = vcombine.low %v2443, %v2457
    %v2475 = vcombine.high %v2443, %v2457
    %v2476 = vcombine.high %v2464, %v2464
    %v2477 = vcombine.high %v2471, %v2471
    %v2479 = vunpack.c.l.s4 1966171168
    %v2480 = vunpack.c.0.s8 %v2479
    %v2481 = vlaneseq
    %v2482 = vshrl.u32 %v2481, 7
    %v2483 = vsub.s32 %v2480, %v2482
    %v2484 = vrot.slane %v2472, %v2483
    %v2486 = vunpack.c.l.s4 1966171168
    %v2487 = vunpack.c.0.s8 %v2486
    %v2488 = vlaneseq
    %v2489 = vshrl.u32 %v2488, 7
    %v2490 = vsub.s32 %v2487, %v2489
    %v2491 = vrot.slane %v2474, %v2490
    %v2493 = vunpack.c.l.s4 1966171168
    %v2494 = vunpack.c.0.s8 %v2493
    %v2495 = vlaneseq
    %v2496 = vshrl.u32 %v2495, 7
    %v2497 = vsub.s32 %v2494, %v2496
    %v2498 = vrot.slane %v2473, %v2497
    %v2500 = vunpack.c.l.s4 1966171168
    %v2501 = vunpack.c.0.s8 %v2500
    %v2502 = vlaneseq
    %v2503 = vshrl.u32 %v2502, 7
    %v2504 = vsub.s32 %v2501, %v2503
    %v2505 = vrot.slane %v2475, %v2504
    %v2507 = vunpack.c.l.s4 1966171168
    %v2508 = vunpack.c.0.s8 %v2507
    %v2509 = vlaneseq
    %v2510 = vshrl.u32 %v2509, 7
    %v2511 = vsub.s32 %v2508, %v2510
    %v2512 = vrot.slane %v2464, %v2511
    %v2514 = vunpack.c.l.s4 1966171168
    %v2515 = vunpack.c.0.s8 %v2514
    %v2516 = vlaneseq
    %v2517 = vshrl.u32 %v2516, 7
    %v2518 = vsub.s32 %v2515, %v2517
    %v2519 = vrot.slane %v2471, %v2518
    %v2521 = vunpack.c.l.s4 1966171168
    %v2522 = vunpack.c.0.s8 %v2521
    %v2523 = vlaneseq
    %v2524 = vshrl.u32 %v2523, 7
    %v2525 = vsub.s32 %v2522, %v2524
    %v2526 = vrot.slane %v2476, %v2525
    %v2528 = vunpack.c.l.s4 1966171168
    %v2529 = vunpack.c.0.s8 %v2528
    %v2530 = vlaneseq
    %v2531 = vshrl.u32 %v2530, 7
    %v2532 = vsub.s32 %v2529, %v2531
    %v2533 = vrot.slane %v2477, %v2532
    %v2534 = vcombine.low %v2484, %v2512
    %v2535 = vcombine.high %v2484, %v2512
    %v2536 = vcombine.low %v2491, %v2519
    %v2537 = vcombine.high %v2491, %v2519
    %v2538 = vcombine.low %v2498, %v2526
    %v2539 = vcombine.high %v2498, %v2526
    %v2540 = vcombine.low %v2505, %v2533
    %v2541 = vcombine.high %v2505, %v2533
    %v2542 = vlaneseq
    %v2543 = vshrl.u32 %v2542, 7
    %v2544 = vsub.s32 0, %v2543
    %v2545 = vrot.slane %v2534, %v2544
    %v2546 = vlaneseq
    %v2547 = vshrl.u32 %v2546, 7
    %v2548 = vsub.s32 1, %v2547
    %v2549 = vrot.slane %v2534, %v2548
    %v2550 = vlaneseq
    %v2551 = vshrl.u32 %v2550, 7
    %v2552 = vsub.s32 2, %v2551
    %v2553 = vrot.slane %v2534, %v2552
    %v2554 = vlaneseq
    %v2555 = vshrl.u32 %v2554, 7
    %v2556 = vsub.s32 3, %v2555
    %v2557 = vrot.slane %v2534, %v2556
    %v2558 = vlaneseq
    %v2559 = vshrl.u32 %v2558, 7
    %v2560 = vsub.s32 4, %v2559
    %v2561 = vrot.slane %v2534, %v2560
    %v2562 = vlaneseq
    %v2563 = vshrl.u32 %v2562, 7
    %v2564 = vsub.s32 0, %v2563
    %v2565 = vrot.slane %v2538, %v2564
    %v2566 = vlaneseq
    %v2567 = vshrl.u32 %v2566, 7
    %v2568 = vsub.s32 1, %v2567
    %v2569 = vrot.slane %v2538, %v2568
    %v2570 = vlaneseq
    %v2571 = vshrl.u32 %v2570, 7
    %v2572 = vsub.s32 2, %v2571
    %v2573 = vrot.slane %v2538, %v2572
    %v2574 = vlaneseq
    %v2575 = vshrl.u32 %v2574, 7
    %v2576 = vsub.s32 3, %v2575
    %v2577 = vrot.slane %v2538, %v2576
    %v2578 = vlaneseq
    %v2579 = vshrl.u32 %v2578, 7
    %v2580 = vsub.s32 4, %v2579
    %v2581 = vrot.slane %v2538, %v2580
    %v2582 = vlaneseq
    %v2583 = vshrl.u32 %v2582, 7
    %v2584 = vsub.s32 0, %v2583
    %v2585 = vrot.slane %v2535, %v2584
    %v2586 = vlaneseq
    %v2587 = vshrl.u32 %v2586, 7
    %v2588 = vsub.s32 1, %v2587
    %v2589 = vrot.slane %v2535, %v2588
    %v2590 = vlaneseq
    %v2591 = vshrl.u32 %v2590, 7
    %v2592 = vsub.s32 2, %v2591
    %v2593 = vrot.slane %v2535, %v2592
    %v2594 = vlaneseq
    %v2595 = vshrl.u32 %v2594, 7
    %v2596 = vsub.s32 3, %v2595
    %v2597 = vrot.slane %v2535, %v2596
    %v2598 = vlaneseq
    %v2599 = vshrl.u32 %v2598, 7
    %v2600 = vsub.s32 4, %v2599
    %v2601 = vrot.slane %v2535, %v2600
    %v2602 = vlaneseq
    %v2603 = vshrl.u32 %v2602, 7
    %v2604 = vsub.s32 0, %v2603
    %v2605 = vrot.slane %v2539, %v2604
    %v2606 = vlaneseq
    %v2607 = vshrl.u32 %v2606, 7
    %v2608 = vsub.s32 1, %v2607
    %v2609 = vrot.slane %v2539, %v2608
    %v2610 = vlaneseq
    %v2611 = vshrl.u32 %v2610, 7
    %v2612 = vsub.s32 2, %v2611
    %v2613 = vrot.slane %v2539, %v2612
    %v2614 = vlaneseq
    %v2615 = vshrl.u32 %v2614, 7
    %v2616 = vsub.s32 3, %v2615
    %v2617 = vrot.slane %v2539, %v2616
    %v2618 = vlaneseq
    %v2619 = vshrl.u32 %v2618, 7
    %v2620 = vsub.s32 4, %v2619
    %v2621 = vrot.slane %v2539, %v2620
    %v2622 = vlaneseq
    %v2623 = vshrl.u32 %v2622, 7
    %v2624 = vsub.s32 0, %v2623
    %v2625 = vrot.slane %v2536, %v2624
    %v2626 = vlaneseq
    %v2627 = vshrl.u32 %v2626, 7
    %v2628 = vsub.s32 1, %v2627
    %v2629 = vrot.slane %v2536, %v2628
    %v2630 = vlaneseq
    %v2631 = vshrl.u32 %v2630, 7
    %v2632 = vsub.s32 2, %v2631
    %v2633 = vrot.slane %v2536, %v2632
    %v2634 = vlaneseq
    %v2635 = vshrl.u32 %v2634, 7
    %v2636 = vsub.s32 3, %v2635
    %v2637 = vrot.slane %v2536, %v2636
    %v2638 = vlaneseq
    %v2639 = vshrl.u32 %v2638, 7
    %v2640 = vsub.s32 4, %v2639
    %v2641 = vrot.slane %v2536, %v2640
    %v2642 = vlaneseq
    %v2643 = vshrl.u32 %v2642, 7
    %v2644 = vsub.s32 0, %v2643
    %v2645 = vrot.slane %v2540, %v2644
    %v2646 = vlaneseq
    %v2647 = vshrl.u32 %v2646, 7
    %v2648 = vsub.s32 1, %v2647
    %v2649 = vrot.slane %v2540, %v2648
    %v2650 = vlaneseq
    %v2651 = vshrl.u32 %v2650, 7
    %v2652 = vsub.s32 2, %v2651
    %v2653 = vrot.slane %v2540, %v2652
    %v2654 = vlaneseq
    %v2655 = vshrl.u32 %v2654, 7
    %v2656 = vsub.s32 3, %v2655
    %v2657 = vrot.slane %v2540, %v2656
    %v2658 = vlaneseq
    %v2659 = vshrl.u32 %v2658, 7
    %v2660 = vsub.s32 4, %v2659
    %v2661 = vrot.slane %v2540, %v2660
    %v2662 = vlaneseq
    %v2663 = vshrl.u32 %v2662, 7
    %v2664 = vsub.s32 0, %v2663
    %v2665 = vrot.slane %v2537, %v2664
    %v2666 = vlaneseq
    %v2667 = vshrl.u32 %v2666, 7
    %v2668 = vsub.s32 1, %v2667
    %v2669 = vrot.slane %v2537, %v2668
    %v2670 = vlaneseq
    %v2671 = vshrl.u32 %v2670, 7
    %v2672 = vsub.s32 2, %v2671
    %v2673 = vrot.slane %v2537, %v2672
    %v2674 = vlaneseq
    %v2675 = vshrl.u32 %v2674, 7
    %v2676 = vsub.s32 3, %v2675
    %v2677 = vrot.slane %v2537, %v2676
    %v2678 = vlaneseq
    %v2679 = vshrl.u32 %v2678, 7
    %v2680 = vsub.s32 4, %v2679
    %v2681 = vrot.slane %v2537, %v2680
    %v2682 = vlaneseq
    %v2683 = vshrl.u32 %v2682, 7
    %v2684 = vsub.s32 0, %v2683
    %v2685 = vrot.slane %v2541, %v2684
    %v2686 = vlaneseq
    %v2687 = vshrl.u32 %v2686, 7
    %v2688 = vsub.s32 1, %v2687
    %v2689 = vrot.slane %v2541, %v2688
    %v2690 = vlaneseq
    %v2691 = vshrl.u32 %v2690, 7
    %v2692 = vsub.s32 2, %v2691
    %v2693 = vrot.slane %v2541, %v2692
    %v2694 = vlaneseq
    %v2695 = vshrl.u32 %v2694, 7
    %v2696 = vsub.s32 3, %v2695
    %v2697 = vrot.slane %v2541, %v2696
    %v2698 = vlaneseq
    %v2699 = vshrl.u32 %v2698, 7
    %v2700 = vsub.s32 4, %v2699
    %v2701 = vrot.slane %v2541, %v2700
    %v2742 = vmul.f32 %v2545, %v217
    %v2743 = vmul.f32 %v2549, %v586
    %v2744 = vmul.f32 %v2553, %v218
    %v2745 = vmul.f32 %v2557, %v587
    %v2746 = vmul.f32 %v2561, %v219
    %v2747 = vmul.f32 %v2565, %v220
    %v2748 = vmul.f32 %v2569, %v588
    %v2749 = vmul.f32 %v2573, %v221
    %v2750 = vmul.f32 %v2577, %v589
    %v2751 = vmul.f32 %v2581, %v222
    %v2752 = vmul.f32 %v2585, %v223
    %v2753 = vmul.f32 %v2589, %v590
    %v2754 = vmul.f32 %v2593, %v224
    %v2755 = vmul.f32 %v2597, %v591
    %v2756 = vmul.f32 %v2601, %v225
    %v2757 = vmul.f32 %v2605, %v226
    %v2758 = vmul.f32 %v2609, %v592
    %v2759 = vmul.f32 %v2613, %v227
    %v2760 = vmul.f32 %v2617, %v593
    %v2761 = vmul.f32 %v2621, %v228
    %v2762 = vmul.f32 %v2625, %v229
    %v2763 = vmul.f32 %v2629, %v594
    %v2764 = vmul.f32 %v2633, %v230
    %v2765 = vmul.f32 %v2637, %v595
    %v2766 = vmul.f32 %v2641, %v231
    %v2767 = vmul.f32 %v2645, %v232
    %v2768 = vmul.f32 %v2649, %v596
    %v2769 = vmul.f32 %v2653, %v233
    %v2770 = vmul.f32 %v2657, %v597
    %v2771 = vmul.f32 %v2661, %v234
    %v2772 = vmul.f32 %v2665, %v235
    %v2773 = vmul.f32 %v2669, %v598
    %v2774 = vmul.f32 %v2673, %v236
    %v2775 = vmul.f32 %v2677, %v599
    %v2776 = vmul.f32 %v2681, %v237
    %v2777 = vmul.f32 %v2685, %v238
    %v2778 = vmul.f32 %v2689, %v600
    %v2779 = vmul.f32 %v2693, %v239
    %v2780 = vmul.f32 %v2697, %v601
    %v2781 = vmul.f32 %v2701, %v240
    %v2782 = vsel %vm658, %v2742, 0.0
    %v2783 = vsel %vm658, %v2743, 0.0
    %v2784 = vadd.f32 %v2782, %v2783
    %v2785 = vsel %vm658, %v2744, 0.0
    %v2786 = vadd.f32 %v2784, %v2785
    %v2787 = vsel %vm658, %v2745, 0.0
    %v2788 = vadd.f32 %v2786, %v2787
    %v2789 = vsel %vm658, %v2746, 0.0
    %v2790 = vadd.f32 %v2788, %v2789
    %2791 = vadd.xlane.f32.xlu0 %v2790
    %v2792 = vpop.xlane.xlu0 %2791
    %v2793 = vsel %vm658, %v2747, 0.0
    %v2794 = vsel %vm658, %v2748, 0.0
    %v2795 = vadd.f32 %v2793, %v2794
    %v2796 = vsel %vm658, %v2749, 0.0
    %v2797 = vadd.f32 %v2795, %v2796
    %v2798 = vsel %vm658, %v2750, 0.0
    %v2799 = vadd.f32 %v2797, %v2798
    %v2800 = vsel %vm658, %v2751, 0.0
    %v2801 = vadd.f32 %v2799, %v2800
    %2802 = vadd.xlane.f32.xlu0 %v2801
    %v2803 = vpop.xlane.xlu0 %2802
    %v2804 = vsel %vm658, %v2752, 0.0
    %v2805 = vsel %vm658, %v2753, 0.0
    %v2806 = vadd.f32 %v2804, %v2805
    %v2807 = vsel %vm658, %v2754, 0.0
    %v2808 = vadd.f32 %v2806, %v2807
    %v2809 = vsel %vm658, %v2755, 0.0
    %v2810 = vadd.f32 %v2808, %v2809
    %v2811 = vsel %vm658, %v2756, 0.0
    %v2812 = vadd.f32 %v2810, %v2811
    %2813 = vadd.xlane.f32.xlu0 %v2812
    %v2814 = vpop.xlane.xlu0 %2813
    %v2815 = vsel %vm658, %v2757, 0.0
    %v2816 = vsel %vm658, %v2758, 0.0
    %v2817 = vadd.f32 %v2815, %v2816
    %v2818 = vsel %vm658, %v2759, 0.0
    %v2819 = vadd.f32 %v2817, %v2818
    %v2820 = vsel %vm658, %v2760, 0.0
    %v2821 = vadd.f32 %v2819, %v2820
    %v2822 = vsel %vm658, %v2761, 0.0
    %v2823 = vadd.f32 %v2821, %v2822
    %2824 = vadd.xlane.f32.xlu0 %v2823
    %v2825 = vpop.xlane.xlu0 %2824
    %v2826 = vsel %vm658, %v2762, 0.0
    %v2827 = vsel %vm658, %v2763, 0.0
    %v2828 = vadd.f32 %v2826, %v2827
    %v2829 = vsel %vm658, %v2764, 0.0
    %v2830 = vadd.f32 %v2828, %v2829
    %v2831 = vsel %vm658, %v2765, 0.0
    %v2832 = vadd.f32 %v2830, %v2831
    %v2833 = vsel %vm658, %v2766, 0.0
    %v2834 = vadd.f32 %v2832, %v2833
    %2835 = vadd.xlane.f32.xlu0 %v2834
    %v2836 = vpop.xlane.xlu0 %2835
    %v2837 = vsel %vm658, %v2767, 0.0
    %v2838 = vsel %vm658, %v2768, 0.0
    %v2839 = vadd.f32 %v2837, %v2838
    %v2840 = vsel %vm658, %v2769, 0.0
    %v2841 = vadd.f32 %v2839, %v2840
    %v2842 = vsel %vm658, %v2770, 0.0
    %v2843 = vadd.f32 %v2841, %v2842
    %v2844 = vsel %vm658, %v2771, 0.0
    %v2845 = vadd.f32 %v2843, %v2844
    %2846 = vadd.xlane.f32.xlu0 %v2845
    %v2847 = vpop.xlane.xlu0 %2846
    %v2848 = vsel %vm658, %v2772, 0.0
    %v2849 = vsel %vm658, %v2773, 0.0
    %v2850 = vadd.f32 %v2848, %v2849
    %v2851 = vsel %vm658, %v2774, 0.0
    %v2852 = vadd.f32 %v2850, %v2851
    %v2853 = vsel %vm658, %v2775, 0.0
    %v2854 = vadd.f32 %v2852, %v2853
    %v2855 = vsel %vm658, %v2776, 0.0
    %v2856 = vadd.f32 %v2854, %v2855
    %2857 = vadd.xlane.f32.xlu0 %v2856
    %v2858 = vpop.xlane.xlu0 %2857
    %v2859 = vsel %vm658, %v2777, 0.0
    %v2860 = vsel %vm658, %v2778, 0.0
    %v2861 = vadd.f32 %v2859, %v2860
    %v2862 = vsel %vm658, %v2779, 0.0
    %v2863 = vadd.f32 %v2861, %v2862
    %v2864 = vsel %vm658, %v2780, 0.0
    %v2865 = vadd.f32 %v2863, %v2864
    %v2866 = vsel %vm658, %v2781, 0.0
    %v2867 = vadd.f32 %v2865, %v2866
    %2868 = vadd.xlane.f32.xlu0 %v2867
    %v2869 = vpop.xlane.xlu0 %2868
    %v2870 = vadd.f32 %v2792, %v754
    %v2871 = vadd.f32 %v2803, %v761
    %v2872 = vadd.f32 %v2814, %v768
    %v2873 = vadd.f32 %v2825, %v775
    %v2874 = vadd.f32 %v2836, %v782
    %v2875 = vadd.f32 %v2847, %v789
    %v2876 = vadd.f32 %v2858, %v796
    %v2877 = vadd.f32 %v2869, %v803
    %v2878 = vmul.f32 %v2870, %v827
    %v2879 = vmul.f32 %v2871, %v827
    %v2880 = vmul.f32 %v2872, %v827
    %v2881 = vmul.f32 %v2873, %v827
    %v2882 = vmul.f32 %v2874, %v827
    %v2883 = vmul.f32 %v2875, %v827
    %v2884 = vmul.f32 %v2876, %v827
    %v2885 = vmul.f32 %v2877, %v827
    %v2887 = vlaneseq
    %v2888 = vshrl.u32 %v2887, 7
    %v2889 = vsub.s32 0, %v2888
    %v2890 = vrot.slane %v2419, %v2889
    %2892 = vbcast.lane.b32.xlu0 %v2890, 256
    %v2893 = vpop.permute.xlu0 %2892
    %v2894 = vlaneseq
    %v2895 = vshrl.u32 %v2894, 7
    %v2896 = vsub.s32 1, %v2895
    %v2897 = vrot.slane %v2419, %v2896
    %2899 = vbcast.lane.b32.xlu0 %v2897, 256
    %v2900 = vpop.permute.xlu0 %2899
    %v2901 = vlaneseq
    %v2902 = vshrl.u32 %v2901, 7
    %v2903 = vsub.s32 2, %v2902
    %v2904 = vrot.slane %v2419, %v2903
    %2906 = vbcast.lane.b32.xlu0 %v2904, 256
    %v2907 = vpop.permute.xlu0 %2906
    %v2908 = vlaneseq
    %v2909 = vshrl.u32 %v2908, 7
    %v2910 = vsub.s32 3, %v2909
    %v2911 = vrot.slane %v2419, %v2910
    %2913 = vbcast.lane.b32.xlu0 %v2911, 256
    %v2914 = vpop.permute.xlu0 %2913
    %v2915 = vlaneseq
    %v2916 = vshrl.u32 %v2915, 7
    %v2917 = vsub.s32 4, %v2916
    %v2918 = vrot.slane %v2419, %v2917
    %2920 = vbcast.lane.b32.xlu0 %v2918, 256
    %v2921 = vpop.permute.xlu0 %2920
    %v2922 = vlaneseq
    %v2923 = vshrl.u32 %v2922, 7
    %v2924 = vsub.s32 5, %v2923
    %v2925 = vrot.slane %v2419, %v2924
    %2927 = vbcast.lane.b32.xlu0 %v2925, 256
    %v2928 = vpop.permute.xlu0 %2927
    %v2929 = vlaneseq
    %v2930 = vshrl.u32 %v2929, 7
    %v2931 = vsub.s32 6, %v2930
    %v2932 = vrot.slane %v2419, %v2931
    %2934 = vbcast.lane.b32.xlu0 %v2932, 256
    %v2935 = vpop.permute.xlu0 %2934
    %v2936 = vlaneseq
    %v2937 = vshrl.u32 %v2936, 7
    %v2938 = vsub.s32 7, %v2937
    %v2939 = vrot.slane %v2419, %v2938
    %2941 = vbcast.lane.b32.xlu0 %v2939, 256
    %v2942 = vpop.permute.xlu0 %2941
    %v2951 = vadd.f32 %v2878, %v2893
    %v2952 = vadd.f32 %v2879, %v2900
    %v2953 = vadd.f32 %v2880, %v2907
    %v2954 = vadd.f32 %v2881, %v2914
    %v2955 = vadd.f32 %v2882, %v2921
    %v2956 = vadd.f32 %v2883, %v2928
    %v2957 = vadd.f32 %v2884, %v2935
    %v2958 = vadd.f32 %v2885, %v2942
    %2967 = vset.pattern.permute.xlu0 0
    %2968 = vperm.xlu0 %2967, %v2951
    %v2969 = vpop.permute.xlu0 %2968
    %2970 = vset.pattern.permute.xlu0 0
    %2971 = vperm.xlu0 %2970, %v2952
    %v2972 = vpop.permute.xlu0 %2971
    %2973 = vset.pattern.permute.xlu0 0
    %2974 = vperm.xlu0 %2973, %v2953
    %v2975 = vpop.permute.xlu0 %2974
    %2976 = vset.pattern.permute.xlu0 0
    %2977 = vperm.xlu0 %2976, %v2954
    %v2978 = vpop.permute.xlu0 %2977
    %2979 = vset.pattern.permute.xlu0 0
    %2980 = vperm.xlu0 %2979, %v2955
    %v2981 = vpop.permute.xlu0 %2980
    %2982 = vset.pattern.permute.xlu0 0
    %2983 = vperm.xlu0 %2982, %v2956
    %v2984 = vpop.permute.xlu0 %2983
    %2985 = vset.pattern.permute.xlu0 0
    %2986 = vperm.xlu0 %2985, %v2957
    %v2987 = vpop.permute.xlu0 %2986
    %2988 = vset.pattern.permute.xlu0 0
    %2989 = vperm.xlu0 %2988, %v2958
    %v2990 = vpop.permute.xlu0 %2989
    %v2991 = vlaneseq
    %v2992 = vshrl.u32 %v2991, 7
    %v2993 = vsub.s32 %v943, %v2992
    %v2994 = vrot.slane %v2969, %v2993
    %v2995 = vlaneseq
    %v2996 = vshrl.u32 %v2995, 7
    %v2997 = vsub.s32 %v943, %v2996
    %v2998 = vrot.slane %v2972, %v2997
    %v2999 = vlaneseq
    %v3000 = vshrl.u32 %v2999, 7
    %v3001 = vsub.s32 %v943, %v3000
    %v3002 = vrot.slane %v2975, %v3001
    %v3003 = vlaneseq
    %v3004 = vshrl.u32 %v3003, 7
    %v3005 = vsub.s32 %v943, %v3004
    %v3006 = vrot.slane %v2978, %v3005
    %v3007 = vlaneseq
    %v3008 = vshrl.u32 %v3007, 7
    %v3009 = vsub.s32 %v943, %v3008
    %v3010 = vrot.slane %v2981, %v3009
    %v3011 = vlaneseq
    %v3012 = vshrl.u32 %v3011, 7
    %v3013 = vsub.s32 %v943, %v3012
    %v3014 = vrot.slane %v2984, %v3013
    %v3015 = vlaneseq
    %v3016 = vshrl.u32 %v3015, 7
    %v3017 = vsub.s32 %v943, %v3016
    %v3018 = vrot.slane %v2987, %v3017
    %v3019 = vlaneseq
    %v3020 = vshrl.u32 %v3019, 7
    %v3021 = vsub.s32 %v943, %v3020
    %v3022 = vrot.slane %v2990, %v3021
    %v3023 = vsel %vm976, %v2998, %v2994
    %v3024 = vsel %vm978, %v3002, %v3023
    %v3025 = vsel %vm980, %v3006, %v3024
    %v3026 = vsel %vm982, %v3010, %v3025
    %v3027 = vsel %vm984, %v3014, %v3026
    %v3028 = vsel %vm986, %v3018, %v3027
    %v3029 = vsel %vm988, %v3022, %v3028
    %s3031 = scalar_lea.vmem %s9, 16
    %3032 = vst.msk [vmem:[%s3031] sm:$0xff] %vm991, %v3029
    %s3033 = scalar_lea.vmem %s1, 120
    %v3034 = vld [vmem:[%s3033] sm:$0xff]
    %v3035 = vld [vmem:[%s3033 + $0x8] sm:$0xff]
    %v3036 = vld [vmem:[%s3033 + $0x10] sm:$0xff]
    %v3037 = vld [vmem:[%s3033 + $0x18] sm:$0xff]
    %v3038 = vld [vmem:[%s3033 + $0x20] sm:$0xff]
    %3039 = vmatprep.subr.mxu0 %v48
    %3040 = vmatpush1.msra.mxu0 %v47
    %3041 = vmatprep.subr.mxu0 %v50
    %3042 = vmatpush1.msra.mxu0 %v49
    %3043 = vmatprep.subr.mxu0 %v52
    %3044 = vmatpush1.msra.mxu0 %v51
    %3045 = vmatprep.subr.mxu0 %v54
    %3046 = vmatpush1.msra.mxu0 %v53
    %3047 = vmatprep.subr.mxu0 %v56
    %3048 = vmatpush1.msra.mxu0 %v55
    %3049 = vmatprep.subr.mxu0 %v58
    %3050 = vmatpush1.msra.mxu0 %v57
    %3051 = vmatprep.subr.mxu0 %v60
    %3052 = vmatpush1.msra.mxu0 %v59
    %3053 = vmatprep.subr.mxu0 %v62
    %3054 = vmatpush1.msra.mxu0 %v61
    %3055 = vmatprep.subr.mxu0 %v64
    %3056 = vmatpush1.msra.mxu0 %v63
    %3057 = vmatprep.subr.mxu0 %v66
    %3058 = vmatpush1.msra.mxu0 %v65
    %3059 = vmatprep.subr.mxu0 %v68
    %3060 = vmatpush1.msra.mxu0 %v67
    %3061 = vmatprep.subr.mxu0 %v70
    %3062 = vmatpush1.msra.mxu0 %v69
    %3063 = vmatprep.subr.mxu0 %v72
    %3064 = vmatpush1.msra.mxu0 %v71
    %3065 = vmatprep.subr.mxu0 %v74
    %3066 = vmatpush1.msra.mxu0 %v73
    %3067 = vmatprep.subr.mxu0 %v76
    %3068 = vmatpush1.msra.mxu0 %v75
    %3069 = vmatprep.subr.mxu0 %v78
    %3070 = vmatpush1.msra.mxu0 %v77
    %3071 = vmatprep.subr.mxu0 %v80
    %3072 = vmatpush1.msra.mxu0 %v79
    %3073 = vmatprep.subr.mxu0 %v82
    %3074 = vmatpush1.msra.mxu0 %v81
    %3075 = vmatprep.subr.mxu0 %v84
    %3076 = vmatpush1.msra.mxu0 %v83
    %3077 = vmatprep.subr.mxu0 %v86
    %3078 = vmatpush1.msra.mxu0 %v85
    %3079 = vmatprep.subr.mxu0 %v88
    %3080 = vmatpush1.msra.mxu0 %v87
    %3081 = vmatprep.subr.mxu0 %v90
    %3082 = vmatpush1.msra.mxu0 %v89
    %3083 = vmatprep.subr.mxu0 %v92
    %3084 = vmatpush1.msra.mxu0 %v91
    %3085 = vmatprep.subr.mxu0 %v94
    %3086 = vmatpush1.msra.mxu0 %v93
    %3087 = vmatprep.subr.mxu0 %v96
    %3088 = vmatpush1.msra.mxu0 %v95
    %3089 = vmatprep.subr.mxu0 %v98
    %3090 = vmatpush1.msra.mxu0 %v97
    %3091 = vmatprep.subr.mxu0 %v100
    %3092 = vmatpush1.msra.mxu0 %v99
    %3093 = vmatprep.subr.mxu0 %v102
    %3094 = vmatpush1.msra.mxu0 %v101
    %3095 = vmatprep.subr.mxu0 %v104
    %3096 = vmatpush1.msra.mxu0 %v103
    %3097 = vmatprep.subr.mxu0 %v106
    %3098 = vmatpush1.msra.mxu0 %v105
    %3099 = vmatprep.subr.mxu0 %v108
    %3100 = vmatpush1.msra.mxu0 %v107
    %3101 = vmatprep.subr.mxu0 %v110
    %3102 = vmatpush1.msra.mxu0 %v109
    %3103 = vmatprep.mubr.f32.mxu0 %v2294
    %3104 = vmatmul.mubr.f32.gmra.mrb[0].mxu0 %v2293
    %v3105 = vpop.f32.mrb[0].mxu0
    %v3106 = vadd.f32 %v207, %v3105
    %v3107 = vpop.f32.mrb[0].mxu0
    %v3108 = vadd.f32 %v208, %v3107
    %3109 = vmatprep.mubr.f32.mxu0 %v3035
    %3110 = vmatmul.mubr.f32.gmra.mrb[0].mxu0 %v3034
    %v3111 = vpop.f32.mrb[0].mxu0
    %v3112 = vadd.f32 %v209, %v3111
    %v3113 = vpop.f32.mrb[0].mxu0
    %v3114 = vadd.f32 %v210, %v3113
    %3115 = vdwg.mxu0
    %3116 = vmatprep.subr.mxu0 %v112
    %3117 = vmatpush1.msra.mxu0 %v111
    %3118 = vmatprep.subr.mxu0 %v114
    %3119 = vmatpush1.msra.mxu0 %v113
    %3120 = vmatprep.subr.mxu0 %v116
    %3121 = vmatpush1.msra.mxu0 %v115
    %3122 = vmatprep.subr.mxu0 %v118
    %3123 = vmatpush1.msra.mxu0 %v117
    %3124 = vmatprep.subr.mxu0 %v120
    %3125 = vmatpush1.msra.mxu0 %v119
    %3126 = vmatprep.subr.mxu0 %v122
    %3127 = vmatpush1.msra.mxu0 %v121
    %3128 = vmatprep.subr.mxu0 %v124
    %3129 = vmatpush1.msra.mxu0 %v123
    %3130 = vmatprep.subr.mxu0 %v126
    %3131 = vmatpush1.msra.mxu0 %v125
    %3132 = vmatprep.subr.mxu0 %v128
    %3133 = vmatpush1.msra.mxu0 %v127
    %3134 = vmatprep.subr.mxu0 %v130
    %3135 = vmatpush1.msra.mxu0 %v129
    %3136 = vmatprep.subr.mxu0 %v132
    %3137 = vmatpush1.msra.mxu0 %v131
    %3138 = vmatprep.subr.mxu0 %v134
    %3139 = vmatpush1.msra.mxu0 %v133
    %3140 = vmatprep.subr.mxu0 %v136
    %3141 = vmatpush1.msra.mxu0 %v135
    %3142 = vmatprep.subr.mxu0 %v138
    %3143 = vmatpush1.msra.mxu0 %v137
    %3144 = vmatprep.subr.mxu0 %v140
    %3145 = vmatpush1.msra.mxu0 %v139
    %3146 = vmatprep.subr.mxu0 %v142
    %3147 = vmatpush1.msra.mxu0 %v141
    %3148 = vmatprep.subr.mxu0 %v144
    %3149 = vmatpush1.msra.mxu0 %v143
    %3150 = vmatprep.subr.mxu0 %v146
    %3151 = vmatpush1.msra.mxu0 %v145
    %3152 = vmatprep.subr.mxu0 %v148
    %3153 = vmatpush1.msra.mxu0 %v147
    %3154 = vmatprep.subr.mxu0 %v150
    %3155 = vmatpush1.msra.mxu0 %v149
    %3156 = vmatprep.subr.mxu0 %v152
    %3157 = vmatpush1.msra.mxu0 %v151
    %3158 = vmatprep.subr.mxu0 %v154
    %3159 = vmatpush1.msra.mxu0 %v153
    %3160 = vmatprep.subr.mxu0 %v156
    %3161 = vmatpush1.msra.mxu0 %v155
    %3162 = vmatprep.subr.mxu0 %v158
    %3163 = vmatpush1.msra.mxu0 %v157
    %3164 = vmatprep.subr.mxu0 %v160
    %3165 = vmatpush1.msra.mxu0 %v159
    %3166 = vmatprep.subr.mxu0 %v162
    %3167 = vmatpush1.msra.mxu0 %v161
    %3168 = vmatprep.subr.mxu0 %v164
    %3169 = vmatpush1.msra.mxu0 %v163
    %3170 = vmatprep.subr.mxu0 %v166
    %3171 = vmatpush1.msra.mxu0 %v165
    %3172 = vmatprep.subr.mxu0 %v168
    %3173 = vmatpush1.msra.mxu0 %v167
    %3174 = vmatprep.subr.mxu0 %v170
    %3175 = vmatpush1.msra.mxu0 %v169
    %3176 = vmatprep.subr.mxu0 %v172
    %3177 = vmatpush1.msra.mxu0 %v171
    %3178 = vmatprep.subr.mxu0 %v174
    %3179 = vmatpush1.msra.mxu0 %v173
    %3180 = vmatprep.mubr.f32.mxu0 %v2296
    %3181 = vmatmul.mubr.f32.gmra.mrb[0].mxu0 %v2295
    %v3182 = vpop.f32.mrb[0].mxu0
    %v3183 = vadd.f32 %v3106, %v3182
    %v3184 = vpop.f32.mrb[0].mxu0
    %v3185 = vadd.f32 %v3108, %v3184
    %3186 = vmatprep.mubr.f32.mxu0 %v3037
    %3187 = vmatmul.mubr.f32.gmra.mrb[0].mxu0 %v3036
    %v3188 = vpop.f32.mrb[0].mxu0
    %v3189 = vadd.f32 %v3112, %v3188
    %v3190 = vpop.f32.mrb[0].mxu0
    %v3191 = vadd.f32 %v3114, %v3190
    %3192 = vdwg.mxu0
    %3193 = vmatprep.subr.mxu0 %v176
    %3194 = vmatpush1.msra.mxu0 %v175
    %3195 = vmatprep.subr.mxu0 %v178
    %3196 = vmatpush1.msra.mxu0 %v177
    %3197 = vmatprep.subr.mxu0 %v180
    %3198 = vmatpush1.msra.mxu0 %v179
    %3199 = vmatprep.subr.mxu0 %v182
    %3200 = vmatpush1.msra.mxu0 %v181
    %3201 = vmatprep.subr.mxu0 %v184
    %3202 = vmatpush1.msra.mxu0 %v183
    %3203 = vmatprep.subr.mxu0 %v186
    %3204 = vmatpush1.msra.mxu0 %v185
    %3205 = vmatprep.subr.mxu0 %v188
    %3206 = vmatpush1.msra.mxu0 %v187
    %3207 = vmatprep.subr.mxu0 %v190
    %3208 = vmatpush1.msra.mxu0 %v189
    %3209 = vmatprep.subr.mxu0 %v192
    %3210 = vmatpush1.msra.mxu0 %v191
    %3211 = vmatprep.subr.mxu0 %v194
    %3212 = vmatpush1.msra.mxu0 %v193
    %3213 = vmatprep.subr.mxu0 %v196
    %3214 = vmatpush1.msra.mxu0 %v195
    %3215 = vmatprep.subr.mxu0 %v198
    %3216 = vmatpush1.msra.mxu0 %v197
    %3217 = vmatprep.subr.mxu0 %v200
    %3218 = vmatpush1.msra.mxu0 %v199
    %3219 = vmatprep.subr.mxu0 %v202
    %3220 = vmatpush1.msra.mxu0 %v201
    %3221 = vmatprep.subr.mxu0 %v204
    %3222 = vmatpush1.msra.mxu0 %v203
    %3223 = vmatprep.subr.mxu0 %v206
    %3224 = vmatpush1.msra.mxu0 %v205
    %3225 = vmatprep.subr.mxu0 0.0
    %3226 = vmatpush1.msra.mxu0 0.0
    %3227 = vmatprep.subr.mxu0 0.0
    %3228 = vmatpush1.msra.mxu0 0.0
    %3229 = vmatprep.subr.mxu0 0.0
    %3230 = vmatpush1.msra.mxu0 0.0
    %3231 = vmatprep.subr.mxu0 0.0
    %3232 = vmatpush1.msra.mxu0 0.0
    %3233 = vmatprep.subr.mxu0 0.0
    %3234 = vmatpush1.msra.mxu0 0.0
    %3235 = vmatprep.subr.mxu0 0.0
    %3236 = vmatpush1.msra.mxu0 0.0
    %3237 = vmatprep.subr.mxu0 0.0
    %3238 = vmatpush1.msra.mxu0 0.0
    %3239 = vmatprep.subr.mxu0 0.0
    %3240 = vmatpush1.msra.mxu0 0.0
    %3241 = vmatprep.subr.mxu0 0.0
    %3242 = vmatpush1.msra.mxu0 0.0
    %3243 = vmatprep.subr.mxu0 0.0
    %3244 = vmatpush1.msra.mxu0 0.0
    %3245 = vmatprep.subr.mxu0 0.0
    %3246 = vmatpush1.msra.mxu0 0.0
    %3247 = vmatprep.subr.mxu0 0.0
    %3248 = vmatpush1.msra.mxu0 0.0
    %3249 = vmatprep.subr.mxu0 0.0
    %3250 = vmatpush1.msra.mxu0 0.0
    %3251 = vmatprep.subr.mxu0 0.0
    %3252 = vmatpush1.msra.mxu0 0.0
    %3253 = vmatprep.subr.mxu0 0.0
    %3254 = vmatpush1.msra.mxu0 0.0
    %3255 = vmatprep.subr.mxu0 0.0
    %3256 = vmatpush1.msra.mxu0 0.0
    %3257 = vmatprep.mubr.f32.mxu0 0.0
    %3258 = vmatmul.mubr.f32.gmra.mrb[0].mxu0 %v2297
    %v3259 = vpop.f32.mrb[0].mxu0
    %v3260 = vadd.f32 %v3183, %v3259
    %v3261 = vpop.f32.mrb[0].mxu0
    %v3262 = vadd.f32 %v3185, %v3261
    %3263 = vmatprep.mubr.f32.mxu0 0.0
    %3264 = vmatmul.mubr.f32.gmra.mrb[0].mxu0 %v3038
    %v3265 = vpop.f32.mrb[0].mxu0
    %v3266 = vadd.f32 %v3189, %v3265
    %v3267 = vpop.f32.mrb[0].mxu0
    %v3268 = vadd.f32 %v3191, %v3267
    %3269 = vdwg.mxu0
    %v3270 = vtanh.pop %v3260
    %v3271 = vtanh.pop %v3262
    %v3272 = vtanh.pop %v3266
    %v3273 = vtanh.pop %v3268
    %v3274 = vmul.f32 %v3270, %v211
    %v3275 = vmul.f32 %v3271, %v212
    %v3276 = vmul.f32 %v3272, %v213
    %v3277 = vmul.f32 %v3273, %v214
    %v3278 = vadd.f32 %v3274, %v3275
    %3279 = vadd.xlane.f32.xlu0 %v3278
    %v3280 = vpop.xlane.xlu0 %3279
    %v3281 = vadd.f32 %v3276, %v3277
    %3282 = vadd.xlane.f32.xlu0 %v3281
    %v3283 = vpop.xlane.xlu0 %3282
    %v3284 = vadd.f32 %v3280, %v215
    %v3285 = vadd.f32 %v3283, %v216
    %v3286 = vsub.f32 %v3285, %v3284
    %v3287 = vmul.f32 %v3286, 1.442695
    %v3288 = vpow.pop %v3287
    %v3289 = vadd.f32 %v3288, 1.0
    %v3290 = vrcp.pop %v3289
    %v3291 = vmul.f32 1.0, %v3290
    %v3292 = vsub.f32 1.0, %v3291
    %3294 = vset.pattern.permute.xlu0 0
    %3295 = vperm.xlu0 %3294, %v3291
    %v3296 = vpop.permute.xlu0 %3295
    %v3298 = vmul.f32 %v2293, %v3296
    %v3299 = vmul.f32 %v2294, %v3296
    %v3300 = vmul.f32 %v2295, %v3296
    %v3301 = vmul.f32 %v2296, %v3296
    %v3302 = vmul.f32 %v2297, %v3296
    %3304 = vset.pattern.permute.xlu0 0
    %3305 = vperm.xlu0 %3304, %v3292
    %v3306 = vpop.permute.xlu0 %3305
    %v3308 = vmul.f32 %v3034, %v3306
    %v3309 = vmul.f32 %v3035, %v3306
    %v3310 = vmul.f32 %v3036, %v3306
    %v3311 = vmul.f32 %v3037, %v3306
    %v3312 = vmul.f32 %v3038, %v3306
    %v3313 = vadd.f32 %v3298, %v3308
    %v3314 = vadd.f32 %v3299, %v3309
    %v3315 = vadd.f32 %v3300, %v3310
    %v3316 = vadd.f32 %v3301, %v3311
    %v3317 = vadd.f32 %v3302, %v3312
    %v3318 = vmul.f32 %v2419, %v3296
    %v3319 = vlaneseq
    %v3320 = vshrl.u32 %v3319, 7
    %v3321 = vsub.s32 0, %v3320
    %v3322 = vrot.slane %v3306, %v3321
    %v3323 = vlaneseq
    %v3324 = vshrl.u32 %v3323, 7
    %v3325 = vsub.s32 1, %v3324
    %v3326 = vrot.slane %v3306, %v3325
    %v3327 = vlaneseq
    %v3328 = vshrl.u32 %v3327, 7
    %v3329 = vsub.s32 2, %v3328
    %v3330 = vrot.slane %v3306, %v3329
    %v3331 = vlaneseq
    %v3332 = vshrl.u32 %v3331, 7
    %v3333 = vsub.s32 3, %v3332
    %v3334 = vrot.slane %v3306, %v3333
    %v3335 = vlaneseq
    %v3336 = vshrl.u32 %v3335, 7
    %v3337 = vsub.s32 4, %v3336
    %v3338 = vrot.slane %v3306, %v3337
    %v3339 = vlaneseq
    %v3340 = vshrl.u32 %v3339, 7
    %v3341 = vsub.s32 5, %v3340
    %v3342 = vrot.slane %v3306, %v3341
    %v3343 = vlaneseq
    %v3344 = vshrl.u32 %v3343, 7
    %v3345 = vsub.s32 6, %v3344
    %v3346 = vrot.slane %v3306, %v3345
    %v3347 = vlaneseq
    %v3348 = vshrl.u32 %v3347, 7
    %v3349 = vsub.s32 7, %v3348
    %v3350 = vrot.slane %v3306, %v3349
    %v3359 = vmul.f32 %v2951, %v3322
    %v3360 = vmul.f32 %v2952, %v3326
    %v3361 = vmul.f32 %v2953, %v3330
    %v3362 = vmul.f32 %v2954, %v3334
    %v3363 = vmul.f32 %v2955, %v3338
    %v3364 = vmul.f32 %v2956, %v3342
    %v3365 = vmul.f32 %v2957, %v3346
    %v3366 = vmul.f32 %v2958, %v3350
    %3375 = vset.pattern.permute.xlu0 0
    %3376 = vperm.xlu0 %3375, %v3359
    %v3377 = vpop.permute.xlu0 %3376
    %3378 = vset.pattern.permute.xlu0 0
    %3379 = vperm.xlu0 %3378, %v3360
    %v3380 = vpop.permute.xlu0 %3379
    %3381 = vset.pattern.permute.xlu0 0
    %3382 = vperm.xlu0 %3381, %v3361
    %v3383 = vpop.permute.xlu0 %3382
    %3384 = vset.pattern.permute.xlu0 0
    %3385 = vperm.xlu0 %3384, %v3362
    %v3386 = vpop.permute.xlu0 %3385
    %3387 = vset.pattern.permute.xlu0 0
    %3388 = vperm.xlu0 %3387, %v3363
    %v3389 = vpop.permute.xlu0 %3388
    %3390 = vset.pattern.permute.xlu0 0
    %3391 = vperm.xlu0 %3390, %v3364
    %v3392 = vpop.permute.xlu0 %3391
    %3393 = vset.pattern.permute.xlu0 0
    %3394 = vperm.xlu0 %3393, %v3365
    %v3395 = vpop.permute.xlu0 %3394
    %3396 = vset.pattern.permute.xlu0 0
    %3397 = vperm.xlu0 %3396, %v3366
    %v3398 = vpop.permute.xlu0 %3397
    %v3399 = vlaneseq
    %v3400 = vshrl.u32 %v3399, 7
    %v3401 = vsub.s32 %v943, %v3400
    %v3402 = vrot.slane %v3377, %v3401
    %v3403 = vlaneseq
    %v3404 = vshrl.u32 %v3403, 7
    %v3405 = vsub.s32 %v943, %v3404
    %v3406 = vrot.slane %v3380, %v3405
    %v3407 = vlaneseq
    %v3408 = vshrl.u32 %v3407, 7
    %v3409 = vsub.s32 %v943, %v3408
    %v3410 = vrot.slane %v3383, %v3409
    %v3411 = vlaneseq
    %v3412 = vshrl.u32 %v3411, 7
    %v3413 = vsub.s32 %v943, %v3412
    %v3414 = vrot.slane %v3386, %v3413
    %v3415 = vlaneseq
    %v3416 = vshrl.u32 %v3415, 7
    %v3417 = vsub.s32 %v943, %v3416
    %v3418 = vrot.slane %v3389, %v3417
    %v3419 = vlaneseq
    %v3420 = vshrl.u32 %v3419, 7
    %v3421 = vsub.s32 %v943, %v3420
    %v3422 = vrot.slane %v3392, %v3421
    %v3423 = vlaneseq
    %v3424 = vshrl.u32 %v3423, 7
    %v3425 = vsub.s32 %v943, %v3424
    %v3426 = vrot.slane %v3395, %v3425
    %v3427 = vlaneseq
    %v3428 = vshrl.u32 %v3427, 7
    %v3429 = vsub.s32 %v943, %v3428
    %v3430 = vrot.slane %v3398, %v3429
    %v3431 = vsel %vm976, %v3406, %v3402
    %v3432 = vsel %vm978, %v3410, %v3431
    %v3433 = vsel %vm980, %v3414, %v3432
    %v3434 = vsel %vm982, %v3418, %v3433
    %v3435 = vsel %vm984, %v3422, %v3434
    %v3436 = vsel %vm986, %v3426, %v3435
    %v3437 = vsel %vm988, %v3430, %v3436
    %v3439 = vadd.f32 %v3318, %v3437
    %v3445 = vcombine.low %v3313, %v3314
    %v3446 = vcombine.high %v3313, %v3314
    %v3447 = vcombine.low %v3315, %v3316
    %v3448 = vcombine.high %v3315, %v3316
    %v3449 = vcombine.high %v3317, %v3317
    %v3451 = vunpack.c.l.s4 1966171168
    %v3452 = vunpack.c.0.s8 %v3451
    %v3453 = vlaneseq
    %v3454 = vshrl.u32 %v3453, 7
    %v3455 = vsub.s32 %v3452, %v3454
    %v3456 = vrot.slane %v3445, %v3455
    %v3458 = vunpack.c.l.s4 1966171168
    %v3459 = vunpack.c.0.s8 %v3458
    %v3460 = vlaneseq
    %v3461 = vshrl.u32 %v3460, 7
    %v3462 = vsub.s32 %v3459, %v3461
    %v3463 = vrot.slane %v3446, %v3462
    %v3465 = vunpack.c.l.s4 1966171168
    %v3466 = vunpack.c.0.s8 %v3465
    %v3467 = vlaneseq
    %v3468 = vshrl.u32 %v3467, 7
    %v3469 = vsub.s32 %v3466, %v3468
    %v3470 = vrot.slane %v3447, %v3469
    %v3472 = vunpack.c.l.s4 1966171168
    %v3473 = vunpack.c.0.s8 %v3472
    %v3474 = vlaneseq
    %v3475 = vshrl.u32 %v3474, 7
    %v3476 = vsub.s32 %v3473, %v3475
    %v3477 = vrot.slane %v3448, %v3476
    %v3479 = vunpack.c.l.s4 1966171168
    %v3480 = vunpack.c.0.s8 %v3479
    %v3481 = vlaneseq
    %v3482 = vshrl.u32 %v3481, 7
    %v3483 = vsub.s32 %v3480, %v3482
    %v3484 = vrot.slane %v3317, %v3483
    %v3486 = vunpack.c.l.s4 1966171168
    %v3487 = vunpack.c.0.s8 %v3486
    %v3488 = vlaneseq
    %v3489 = vshrl.u32 %v3488, 7
    %v3490 = vsub.s32 %v3487, %v3489
    %v3491 = vrot.slane %v3449, %v3490
    %v3492 = vcombine.low %v3456, %v3470
    %v3493 = vcombine.high %v3456, %v3470
    %v3494 = vcombine.low %v3463, %v3477
    %v3495 = vcombine.high %v3463, %v3477
    %v3496 = vcombine.high %v3484, %v3484
    %v3497 = vcombine.high %v3491, %v3491
    %v3499 = vunpack.c.l.s4 1966171168
    %v3500 = vunpack.c.0.s8 %v3499
    %v3501 = vlaneseq
    %v3502 = vshrl.u32 %v3501, 7
    %v3503 = vsub.s32 %v3500, %v3502
    %v3504 = vrot.slane %v3492, %v3503
    %v3506 = vunpack.c.l.s4 1966171168
    %v3507 = vunpack.c.0.s8 %v3506
    %v3508 = vlaneseq
    %v3509 = vshrl.u32 %v3508, 7
    %v3510 = vsub.s32 %v3507, %v3509
    %v3511 = vrot.slane %v3494, %v3510
    %v3513 = vunpack.c.l.s4 1966171168
    %v3514 = vunpack.c.0.s8 %v3513
    %v3515 = vlaneseq
    %v3516 = vshrl.u32 %v3515, 7
    %v3517 = vsub.s32 %v3514, %v3516
    %v3518 = vrot.slane %v3493, %v3517
    %v3520 = vunpack.c.l.s4 1966171168
    %v3521 = vunpack.c.0.s8 %v3520
    %v3522 = vlaneseq
    %v3523 = vshrl.u32 %v3522, 7
    %v3524 = vsub.s32 %v3521, %v3523
    %v3525 = vrot.slane %v3495, %v3524
    %v3527 = vunpack.c.l.s4 1966171168
    %v3528 = vunpack.c.0.s8 %v3527
    %v3529 = vlaneseq
    %v3530 = vshrl.u32 %v3529, 7
    %v3531 = vsub.s32 %v3528, %v3530
    %v3532 = vrot.slane %v3484, %v3531
    %v3534 = vunpack.c.l.s4 1966171168
    %v3535 = vunpack.c.0.s8 %v3534
    %v3536 = vlaneseq
    %v3537 = vshrl.u32 %v3536, 7
    %v3538 = vsub.s32 %v3535, %v3537
    %v3539 = vrot.slane %v3491, %v3538
    %v3541 = vunpack.c.l.s4 1966171168
    %v3542 = vunpack.c.0.s8 %v3541
    %v3543 = vlaneseq
    %v3544 = vshrl.u32 %v3543, 7
    %v3545 = vsub.s32 %v3542, %v3544
    %v3546 = vrot.slane %v3496, %v3545
    %v3548 = vunpack.c.l.s4 1966171168
    %v3549 = vunpack.c.0.s8 %v3548
    %v3550 = vlaneseq
    %v3551 = vshrl.u32 %v3550, 7
    %v3552 = vsub.s32 %v3549, %v3551
    %v3553 = vrot.slane %v3497, %v3552
    %v3554 = vcombine.low %v3504, %v3532
    %v3555 = vcombine.high %v3504, %v3532
    %v3556 = vcombine.low %v3511, %v3539
    %v3557 = vcombine.high %v3511, %v3539
    %v3558 = vcombine.low %v3518, %v3546
    %v3559 = vcombine.high %v3518, %v3546
    %v3560 = vcombine.low %v3525, %v3553
    %v3561 = vcombine.high %v3525, %v3553
    %v3562 = vlaneseq
    %v3563 = vshrl.u32 %v3562, 7
    %v3564 = vsub.s32 0, %v3563
    %v3565 = vrot.slane %v3554, %v3564
    %v3566 = vlaneseq
    %v3567 = vshrl.u32 %v3566, 7
    %v3568 = vsub.s32 1, %v3567
    %v3569 = vrot.slane %v3554, %v3568
    %v3570 = vlaneseq
    %v3571 = vshrl.u32 %v3570, 7
    %v3572 = vsub.s32 2, %v3571
    %v3573 = vrot.slane %v3554, %v3572
    %v3574 = vlaneseq
    %v3575 = vshrl.u32 %v3574, 7
    %v3576 = vsub.s32 3, %v3575
    %v3577 = vrot.slane %v3554, %v3576
    %v3578 = vlaneseq
    %v3579 = vshrl.u32 %v3578, 7
    %v3580 = vsub.s32 4, %v3579
    %v3581 = vrot.slane %v3554, %v3580
    %v3582 = vlaneseq
    %v3583 = vshrl.u32 %v3582, 7
    %v3584 = vsub.s32 0, %v3583
    %v3585 = vrot.slane %v3558, %v3584
    %v3586 = vlaneseq
    %v3587 = vshrl.u32 %v3586, 7
    %v3588 = vsub.s32 1, %v3587
    %v3589 = vrot.slane %v3558, %v3588
    %v3590 = vlaneseq
    %v3591 = vshrl.u32 %v3590, 7
    %v3592 = vsub.s32 2, %v3591
    %v3593 = vrot.slane %v3558, %v3592
    %v3594 = vlaneseq
    %v3595 = vshrl.u32 %v3594, 7
    %v3596 = vsub.s32 3, %v3595
    %v3597 = vrot.slane %v3558, %v3596
    %v3598 = vlaneseq
    %v3599 = vshrl.u32 %v3598, 7
    %v3600 = vsub.s32 4, %v3599
    %v3601 = vrot.slane %v3558, %v3600
    %v3602 = vlaneseq
    %v3603 = vshrl.u32 %v3602, 7
    %v3604 = vsub.s32 0, %v3603
    %v3605 = vrot.slane %v3555, %v3604
    %v3606 = vlaneseq
    %v3607 = vshrl.u32 %v3606, 7
    %v3608 = vsub.s32 1, %v3607
    %v3609 = vrot.slane %v3555, %v3608
    %v3610 = vlaneseq
    %v3611 = vshrl.u32 %v3610, 7
    %v3612 = vsub.s32 2, %v3611
    %v3613 = vrot.slane %v3555, %v3612
    %v3614 = vlaneseq
    %v3615 = vshrl.u32 %v3614, 7
    %v3616 = vsub.s32 3, %v3615
    %v3617 = vrot.slane %v3555, %v3616
    %v3618 = vlaneseq
    %v3619 = vshrl.u32 %v3618, 7
    %v3620 = vsub.s32 4, %v3619
    %v3621 = vrot.slane %v3555, %v3620
    %v3622 = vlaneseq
    %v3623 = vshrl.u32 %v3622, 7
    %v3624 = vsub.s32 0, %v3623
    %v3625 = vrot.slane %v3559, %v3624
    %v3626 = vlaneseq
    %v3627 = vshrl.u32 %v3626, 7
    %v3628 = vsub.s32 1, %v3627
    %v3629 = vrot.slane %v3559, %v3628
    %v3630 = vlaneseq
    %v3631 = vshrl.u32 %v3630, 7
    %v3632 = vsub.s32 2, %v3631
    %v3633 = vrot.slane %v3559, %v3632
    %v3634 = vlaneseq
    %v3635 = vshrl.u32 %v3634, 7
    %v3636 = vsub.s32 3, %v3635
    %v3637 = vrot.slane %v3559, %v3636
    %v3638 = vlaneseq
    %v3639 = vshrl.u32 %v3638, 7
    %v3640 = vsub.s32 4, %v3639
    %v3641 = vrot.slane %v3559, %v3640
    %v3642 = vlaneseq
    %v3643 = vshrl.u32 %v3642, 7
    %v3644 = vsub.s32 0, %v3643
    %v3645 = vrot.slane %v3556, %v3644
    %v3646 = vlaneseq
    %v3647 = vshrl.u32 %v3646, 7
    %v3648 = vsub.s32 1, %v3647
    %v3649 = vrot.slane %v3556, %v3648
    %v3650 = vlaneseq
    %v3651 = vshrl.u32 %v3650, 7
    %v3652 = vsub.s32 2, %v3651
    %v3653 = vrot.slane %v3556, %v3652
    %v3654 = vlaneseq
    %v3655 = vshrl.u32 %v3654, 7
    %v3656 = vsub.s32 3, %v3655
    %v3657 = vrot.slane %v3556, %v3656
    %v3658 = vlaneseq
    %v3659 = vshrl.u32 %v3658, 7
    %v3660 = vsub.s32 4, %v3659
    %v3661 = vrot.slane %v3556, %v3660
    %v3662 = vlaneseq
    %v3663 = vshrl.u32 %v3662, 7
    %v3664 = vsub.s32 0, %v3663
    %v3665 = vrot.slane %v3560, %v3664
    %v3666 = vlaneseq
    %v3667 = vshrl.u32 %v3666, 7
    %v3668 = vsub.s32 1, %v3667
    %v3669 = vrot.slane %v3560, %v3668
    %v3670 = vlaneseq
    %v3671 = vshrl.u32 %v3670, 7
    %v3672 = vsub.s32 2, %v3671
    %v3673 = vrot.slane %v3560, %v3672
    %v3674 = vlaneseq
    %v3675 = vshrl.u32 %v3674, 7
    %v3676 = vsub.s32 3, %v3675
    %v3677 = vrot.slane %v3560, %v3676
    %v3678 = vlaneseq
    %v3679 = vshrl.u32 %v3678, 7
    %v3680 = vsub.s32 4, %v3679
    %v3681 = vrot.slane %v3560, %v3680
    %v3682 = vlaneseq
    %v3683 = vshrl.u32 %v3682, 7
    %v3684 = vsub.s32 0, %v3683
    %v3685 = vrot.slane %v3557, %v3684
    %v3686 = vlaneseq
    %v3687 = vshrl.u32 %v3686, 7
    %v3688 = vsub.s32 1, %v3687
    %v3689 = vrot.slane %v3557, %v3688
    %v3690 = vlaneseq
    %v3691 = vshrl.u32 %v3690, 7
    %v3692 = vsub.s32 2, %v3691
    %v3693 = vrot.slane %v3557, %v3692
    %v3694 = vlaneseq
    %v3695 = vshrl.u32 %v3694, 7
    %v3696 = vsub.s32 3, %v3695
    %v3697 = vrot.slane %v3557, %v3696
    %v3698 = vlaneseq
    %v3699 = vshrl.u32 %v3698, 7
    %v3700 = vsub.s32 4, %v3699
    %v3701 = vrot.slane %v3557, %v3700
    %v3702 = vlaneseq
    %v3703 = vshrl.u32 %v3702, 7
    %v3704 = vsub.s32 0, %v3703
    %v3705 = vrot.slane %v3561, %v3704
    %v3706 = vlaneseq
    %v3707 = vshrl.u32 %v3706, 7
    %v3708 = vsub.s32 1, %v3707
    %v3709 = vrot.slane %v3561, %v3708
    %v3710 = vlaneseq
    %v3711 = vshrl.u32 %v3710, 7
    %v3712 = vsub.s32 2, %v3711
    %v3713 = vrot.slane %v3561, %v3712
    %v3714 = vlaneseq
    %v3715 = vshrl.u32 %v3714, 7
    %v3716 = vsub.s32 3, %v3715
    %v3717 = vrot.slane %v3561, %v3716
    %v3718 = vlaneseq
    %v3719 = vshrl.u32 %v3718, 7
    %v3720 = vsub.s32 4, %v3719
    %v3721 = vrot.slane %v3561, %v3720
    %v3762 = vmul.f32 %v3565, %v217
    %v3763 = vmul.f32 %v3569, %v586
    %v3764 = vmul.f32 %v3573, %v218
    %v3765 = vmul.f32 %v3577, %v587
    %v3766 = vmul.f32 %v3581, %v219
    %v3767 = vmul.f32 %v3585, %v220
    %v3768 = vmul.f32 %v3589, %v588
    %v3769 = vmul.f32 %v3593, %v221
    %v3770 = vmul.f32 %v3597, %v589
    %v3771 = vmul.f32 %v3601, %v222
    %v3772 = vmul.f32 %v3605, %v223
    %v3773 = vmul.f32 %v3609, %v590
    %v3774 = vmul.f32 %v3613, %v224
    %v3775 = vmul.f32 %v3617, %v591
    %v3776 = vmul.f32 %v3621, %v225
    %v3777 = vmul.f32 %v3625, %v226
    %v3778 = vmul.f32 %v3629, %v592
    %v3779 = vmul.f32 %v3633, %v227
    %v3780 = vmul.f32 %v3637, %v593
    %v3781 = vmul.f32 %v3641, %v228
    %v3782 = vmul.f32 %v3645, %v229
    %v3783 = vmul.f32 %v3649, %v594
    %v3784 = vmul.f32 %v3653, %v230
    %v3785 = vmul.f32 %v3657, %v595
    %v3786 = vmul.f32 %v3661, %v231
    %v3787 = vmul.f32 %v3665, %v232
    %v3788 = vmul.f32 %v3669, %v596
    %v3789 = vmul.f32 %v3673, %v233
    %v3790 = vmul.f32 %v3677, %v597
    %v3791 = vmul.f32 %v3681, %v234
    %v3792 = vmul.f32 %v3685, %v235
    %v3793 = vmul.f32 %v3689, %v598
    %v3794 = vmul.f32 %v3693, %v236
    %v3795 = vmul.f32 %v3697, %v599
    %v3796 = vmul.f32 %v3701, %v237
    %v3797 = vmul.f32 %v3705, %v238
    %v3798 = vmul.f32 %v3709, %v600
    %v3799 = vmul.f32 %v3713, %v239
    %v3800 = vmul.f32 %v3717, %v601
    %v3801 = vmul.f32 %v3721, %v240
    %v3802 = vsel %vm658, %v3762, 0.0
    %v3803 = vsel %vm658, %v3763, 0.0
    %v3804 = vadd.f32 %v3802, %v3803
    %v3805 = vsel %vm658, %v3764, 0.0
    %v3806 = vadd.f32 %v3804, %v3805
    %v3807 = vsel %vm658, %v3765, 0.0
    %v3808 = vadd.f32 %v3806, %v3807
    %v3809 = vsel %vm658, %v3766, 0.0
    %v3810 = vadd.f32 %v3808, %v3809
    %3811 = vadd.xlane.f32.xlu0 %v3810
    %v3812 = vpop.xlane.xlu0 %3811
    %v3813 = vsel %vm658, %v3767, 0.0
    %v3814 = vsel %vm658, %v3768, 0.0
    %v3815 = vadd.f32 %v3813, %v3814
    %v3816 = vsel %vm658, %v3769, 0.0
    %v3817 = vadd.f32 %v3815, %v3816
    %v3818 = vsel %vm658, %v3770, 0.0
    %v3819 = vadd.f32 %v3817, %v3818
    %v3820 = vsel %vm658, %v3771, 0.0
    %v3821 = vadd.f32 %v3819, %v3820
    %3822 = vadd.xlane.f32.xlu0 %v3821
    %v3823 = vpop.xlane.xlu0 %3822
    %v3824 = vsel %vm658, %v3772, 0.0
    %v3825 = vsel %vm658, %v3773, 0.0
    %v3826 = vadd.f32 %v3824, %v3825
    %v3827 = vsel %vm658, %v3774, 0.0
    %v3828 = vadd.f32 %v3826, %v3827
    %v3829 = vsel %vm658, %v3775, 0.0
    %v3830 = vadd.f32 %v3828, %v3829
    %v3831 = vsel %vm658, %v3776, 0.0
    %v3832 = vadd.f32 %v3830, %v3831
    %3833 = vadd.xlane.f32.xlu0 %v3832
    %v3834 = vpop.xlane.xlu0 %3833
    %v3835 = vsel %vm658, %v3777, 0.0
    %v3836 = vsel %vm658, %v3778, 0.0
    %v3837 = vadd.f32 %v3835, %v3836
    %v3838 = vsel %vm658, %v3779, 0.0
    %v3839 = vadd.f32 %v3837, %v3838
    %v3840 = vsel %vm658, %v3780, 0.0
    %v3841 = vadd.f32 %v3839, %v3840
    %v3842 = vsel %vm658, %v3781, 0.0
    %v3843 = vadd.f32 %v3841, %v3842
    %3844 = vadd.xlane.f32.xlu0 %v3843
    %v3845 = vpop.xlane.xlu0 %3844
    %v3846 = vsel %vm658, %v3782, 0.0
    %v3847 = vsel %vm658, %v3783, 0.0
    %v3848 = vadd.f32 %v3846, %v3847
    %v3849 = vsel %vm658, %v3784, 0.0
    %v3850 = vadd.f32 %v3848, %v3849
    %v3851 = vsel %vm658, %v3785, 0.0
    %v3852 = vadd.f32 %v3850, %v3851
    %v3853 = vsel %vm658, %v3786, 0.0
    %v3854 = vadd.f32 %v3852, %v3853
    %3855 = vadd.xlane.f32.xlu0 %v3854
    %v3856 = vpop.xlane.xlu0 %3855
    %v3857 = vsel %vm658, %v3787, 0.0
    %v3858 = vsel %vm658, %v3788, 0.0
    %v3859 = vadd.f32 %v3857, %v3858
    %v3860 = vsel %vm658, %v3789, 0.0
    %v3861 = vadd.f32 %v3859, %v3860
    %v3862 = vsel %vm658, %v3790, 0.0
    %v3863 = vadd.f32 %v3861, %v3862
    %v3864 = vsel %vm658, %v3791, 0.0
    %v3865 = vadd.f32 %v3863, %v3864
    %3866 = vadd.xlane.f32.xlu0 %v3865
    %v3867 = vpop.xlane.xlu0 %3866
    %v3868 = vsel %vm658, %v3792, 0.0
    %v3869 = vsel %vm658, %v3793, 0.0
    %v3870 = vadd.f32 %v3868, %v3869
    %v3871 = vsel %vm658, %v3794, 0.0
    %v3872 = vadd.f32 %v3870, %v3871
    %v3873 = vsel %vm658, %v3795, 0.0
    %v3874 = vadd.f32 %v3872, %v3873
    %v3875 = vsel %vm658, %v3796, 0.0
    %v3876 = vadd.f32 %v3874, %v3875
    %3877 = vadd.xlane.f32.xlu0 %v3876
    %v3878 = vpop.xlane.xlu0 %3877
    %v3879 = vsel %vm658, %v3797, 0.0
    %v3880 = vsel %vm658, %v3798, 0.0
    %v3881 = vadd.f32 %v3879, %v3880
    %v3882 = vsel %vm658, %v3799, 0.0
    %v3883 = vadd.f32 %v3881, %v3882
    %v3884 = vsel %vm658, %v3800, 0.0
    %v3885 = vadd.f32 %v3883, %v3884
    %v3886 = vsel %vm658, %v3801, 0.0
    %v3887 = vadd.f32 %v3885, %v3886
    %3888 = vadd.xlane.f32.xlu0 %v3887
    %v3889 = vpop.xlane.xlu0 %3888
    %v3890 = vadd.f32 %v3812, %v754
    %v3891 = vadd.f32 %v3823, %v761
    %v3892 = vadd.f32 %v3834, %v768
    %v3893 = vadd.f32 %v3845, %v775
    %v3894 = vadd.f32 %v3856, %v782
    %v3895 = vadd.f32 %v3867, %v789
    %v3896 = vadd.f32 %v3878, %v796
    %v3897 = vadd.f32 %v3889, %v803
    %v3898 = vmul.f32 %v3890, %v827
    %v3899 = vmul.f32 %v3891, %v827
    %v3900 = vmul.f32 %v3892, %v827
    %v3901 = vmul.f32 %v3893, %v827
    %v3902 = vmul.f32 %v3894, %v827
    %v3903 = vmul.f32 %v3895, %v827
    %v3904 = vmul.f32 %v3896, %v827
    %v3905 = vmul.f32 %v3897, %v827
    %v3907 = vlaneseq
    %v3908 = vshrl.u32 %v3907, 7
    %v3909 = vsub.s32 0, %v3908
    %v3910 = vrot.slane %v3439, %v3909
    %3912 = vbcast.lane.b32.xlu0 %v3910, 256
    %v3913 = vpop.permute.xlu0 %3912
    %v3914 = vlaneseq
    %v3915 = vshrl.u32 %v3914, 7
    %v3916 = vsub.s32 1, %v3915
    %v3917 = vrot.slane %v3439, %v3916
    %3919 = vbcast.lane.b32.xlu0 %v3917, 256
    %v3920 = vpop.permute.xlu0 %3919
    %v3921 = vlaneseq
    %v3922 = vshrl.u32 %v3921, 7
    %v3923 = vsub.s32 2, %v3922
    %v3924 = vrot.slane %v3439, %v3923
    %3926 = vbcast.lane.b32.xlu0 %v3924, 256
    %v3927 = vpop.permute.xlu0 %3926
    %v3928 = vlaneseq
    %v3929 = vshrl.u32 %v3928, 7
    %v3930 = vsub.s32 3, %v3929
    %v3931 = vrot.slane %v3439, %v3930
    %3933 = vbcast.lane.b32.xlu0 %v3931, 256
    %v3934 = vpop.permute.xlu0 %3933
    %v3935 = vlaneseq
    %v3936 = vshrl.u32 %v3935, 7
    %v3937 = vsub.s32 4, %v3936
    %v3938 = vrot.slane %v3439, %v3937
    %3940 = vbcast.lane.b32.xlu0 %v3938, 256
    %v3941 = vpop.permute.xlu0 %3940
    %v3942 = vlaneseq
    %v3943 = vshrl.u32 %v3942, 7
    %v3944 = vsub.s32 5, %v3943
    %v3945 = vrot.slane %v3439, %v3944
    %3947 = vbcast.lane.b32.xlu0 %v3945, 256
    %v3948 = vpop.permute.xlu0 %3947
    %v3949 = vlaneseq
    %v3950 = vshrl.u32 %v3949, 7
    %v3951 = vsub.s32 6, %v3950
    %v3952 = vrot.slane %v3439, %v3951
    %3954 = vbcast.lane.b32.xlu0 %v3952, 256
    %v3955 = vpop.permute.xlu0 %3954
    %v3956 = vlaneseq
    %v3957 = vshrl.u32 %v3956, 7
    %v3958 = vsub.s32 7, %v3957
    %v3959 = vrot.slane %v3439, %v3958
    %3961 = vbcast.lane.b32.xlu0 %v3959, 256
    %v3962 = vpop.permute.xlu0 %3961
    %v3971 = vadd.f32 %v3898, %v3913
    %v3972 = vadd.f32 %v3899, %v3920
    %v3973 = vadd.f32 %v3900, %v3927
    %v3974 = vadd.f32 %v3901, %v3934
    %v3975 = vadd.f32 %v3902, %v3941
    %v3976 = vadd.f32 %v3903, %v3948
    %v3977 = vadd.f32 %v3904, %v3955
    %v3978 = vadd.f32 %v3905, %v3962
    %3987 = vset.pattern.permute.xlu0 0
    %3988 = vperm.xlu0 %3987, %v3971
    %v3989 = vpop.permute.xlu0 %3988
    %3990 = vset.pattern.permute.xlu0 0
    %3991 = vperm.xlu0 %3990, %v3972
    %v3992 = vpop.permute.xlu0 %3991
    %3993 = vset.pattern.permute.xlu0 0
    %3994 = vperm.xlu0 %3993, %v3973
    %v3995 = vpop.permute.xlu0 %3994
    %3996 = vset.pattern.permute.xlu0 0
    %3997 = vperm.xlu0 %3996, %v3974
    %v3998 = vpop.permute.xlu0 %3997
    %3999 = vset.pattern.permute.xlu0 0
    %4000 = vperm.xlu0 %3999, %v3975
    %v4001 = vpop.permute.xlu0 %4000
    %4002 = vset.pattern.permute.xlu0 0
    %4003 = vperm.xlu0 %4002, %v3976
    %v4004 = vpop.permute.xlu0 %4003
    %4005 = vset.pattern.permute.xlu0 0
    %4006 = vperm.xlu0 %4005, %v3977
    %v4007 = vpop.permute.xlu0 %4006
    %4008 = vset.pattern.permute.xlu0 0
    %4009 = vperm.xlu0 %4008, %v3978
    %v4010 = vpop.permute.xlu0 %4009
    %v4011 = vlaneseq
    %v4012 = vshrl.u32 %v4011, 7
    %v4013 = vsub.s32 %v943, %v4012
    %v4014 = vrot.slane %v3989, %v4013
    %v4015 = vlaneseq
    %v4016 = vshrl.u32 %v4015, 7
    %v4017 = vsub.s32 %v943, %v4016
    %v4018 = vrot.slane %v3992, %v4017
    %v4019 = vlaneseq
    %v4020 = vshrl.u32 %v4019, 7
    %v4021 = vsub.s32 %v943, %v4020
    %v4022 = vrot.slane %v3995, %v4021
    %v4023 = vlaneseq
    %v4024 = vshrl.u32 %v4023, 7
    %v4025 = vsub.s32 %v943, %v4024
    %v4026 = vrot.slane %v3998, %v4025
    %v4027 = vlaneseq
    %v4028 = vshrl.u32 %v4027, 7
    %v4029 = vsub.s32 %v943, %v4028
    %v4030 = vrot.slane %v4001, %v4029
    %v4031 = vlaneseq
    %v4032 = vshrl.u32 %v4031, 7
    %v4033 = vsub.s32 %v943, %v4032
    %v4034 = vrot.slane %v4004, %v4033
    %v4035 = vlaneseq
    %v4036 = vshrl.u32 %v4035, 7
    %v4037 = vsub.s32 %v943, %v4036
    %v4038 = vrot.slane %v4007, %v4037
    %v4039 = vlaneseq
    %v4040 = vshrl.u32 %v4039, 7
    %v4041 = vsub.s32 %v943, %v4040
    %v4042 = vrot.slane %v4010, %v4041
    %v4043 = vsel %vm976, %v4018, %v4014
    %v4044 = vsel %vm978, %v4022, %v4043
    %v4045 = vsel %vm980, %v4026, %v4044
    %v4046 = vsel %vm982, %v4030, %v4045
    %v4047 = vsel %vm984, %v4034, %v4046
    %v4048 = vsel %vm986, %v4038, %v4047
    %v4049 = vsel %vm988, %v4042, %v4048
    %s4051 = scalar_lea.vmem %s9, 24
    %4052 = vst.msk [vmem:[%s4051] sm:$0xff] %vm991, %v4049
    // Predicated region
    $region42: #{tpu_custom_call.1} parent=1 // pred_check
      _
    $region43: #{tpu_custom_call.1} parent=1 // pred_check_branch
      %4054 = sbr.rel (0) target = $region45
    $region44: #{tpu_custom_call.1} parent=1 // pred_region
      _
    $region45: #{tpu_custom_call.1} parent=1 // pred_fallthru
      _
    // Predicated region
    $region46: #{tpu_custom_call.1} parent=1 // pred_check
      _
    $region47: #{tpu_custom_call.1} parent=1 // pred_check_branch
      %4056 = sbr.rel (0) target = $region49
    $region48: #{tpu_custom_call.1} parent=1 // pred_region
      _
    $region49: #{tpu_custom_call.1} parent=1 // pred_fallthru
      _
    %4057 = vsyncpa [#allocation3], 1

</llo_original>
